<compile_context>
chip_gen: v7x
topology: tpu7x:2x2x1
jax: 0.10.0
libtpu: 0.0.40
codegen_flags: <defaults>
</compile_context>

<pallas_src>
import functools

import jax
import jax.numpy as jnp
import numpy as np
from jax import lax
from jax.experimental import pallas as pl
from jax.experimental.pallas import tpu as pltpu


def _const_spec(shape):
    """Full-array block that is identical for every grid step (weights)."""
    zeros = (0,) * len(shape)
    return pl.BlockSpec(tuple(shape), lambda i: zeros)


# ----------------------------------------------------------------------------
# Fused kernel: whole forward pass for one batch block (tb images)
# ----------------------------------------------------------------------------
def _fused_cnn_kernel(x_ref, w1_ref, b1_ref, w2_ref, b2_ref, w3_ref, b3_ref,
                      wl1_ref, bl1_ref, wl2_ref, bl2_ref, wl3_ref, bl3_ref,
                      out_ref, p2_ref, *, tb):
    f32 = jnp.float32

    # ---- stage 1: conv1 (1x1, 1->24) + 2x2 maxpool + ReLU -> s1 (tb,14,16,24)
    # x_ref: (tb, 28, 16, 2); W padded 14->16 with zeros; last dim = W pool pair.
    xe = x_ref[:, :, :, 0:1]                        # (tb, 28, 16, 1)
    xo = x_ref[:, :, :, 1:2]
    wmax = jnp.maximum(xe, xo)                      # pool the 1-channel image
    wmin = jnp.minimum(xe, xo)                      #   before the channel bcast
    wmax = wmax.reshape(tb, 14, 2, 16, 1)           # leading-dim split: free
    wmin = wmin.reshape(tb, 14, 2, 16, 1)
    pmax = jnp.maximum(wmax[:, :, 0], wmax[:, :, 1])    # (tb, 14, 16, 1)
    pmin = jnp.minimum(wmin[:, :, 0], wmin[:, :, 1])
    w1 = w1_ref[...]                                # (1, 24)
    # max over the 2x2 window of (p*w) == max(w*max_p, w*min_p) for any sign(w)
    m = jnp.maximum(pmax * w1, pmin * w1)           # (tb, 14, 16, 24)
    s1 = jnp.maximum(m + b1_ref[...], 0.0)          # pad cols are finite junk

    # ---- stage 2: conv2 (3x3, 24->16) + 2x2 maxpool + ReLU -> s2 (tb,6,8,16)
    # ONE matmul for the whole stage, one lane-dense store into p2 scratch.
    s1f = s1.reshape(tb * 224, 24)                  # free: 16 is 8-aligned
    p2 = jnp.dot(s1f, w2_ref[...], preferred_element_type=f32)   # (tb*224, 144)
    p2_ref[...] = p2.reshape(tb, 14, 16, 144)       # free reshape, single store

    conv2 = None                                    # 9-tap shift-sum
    for kh in range(3):
        for kw in range(3):
            c0 = (kh * 3 + kw) * 16
            piece = p2_ref[:, kh:kh + 12, kw:kw + 12, c0:c0 + 16]   # (tb,12,12,16)
            conv2 = piece if conv2 is None else conv2 + piece
    conv2 = conv2 + b2_ref[...]                     # (tb, 12, 12, 16)
    c2 = conv2.reshape(tb, 6, 2, 12, 16)            # free (leading split)
    hm2 = jnp.maximum(c2[:, :, 0], c2[:, :, 1])     # (tb, 6, 12, 16) H-pooled
    # W-pool as value-level pair maxes; append the 2 zero pad columns (6->8)
    # in the same concatenate so the next flatten stays sublane-aligned.
    cols = [jnp.maximum(hm2[:, :, 2 * j:2 * j + 1, :],
                        hm2[:, :, 2 * j + 1:2 * j + 2, :]) for j in range(6)]
    cols.append(jnp.zeros((tb, 6, 2, 16), f32))
    s2 = jnp.maximum(jnp.concatenate(cols, axis=2), 0.0)   # (tb, 6, 8, 16)

    # ---- stage 3: conv3 (3x3, 16->8) + 2x2 maxpool + ReLU -> feat (tb, 32)
    s2f = s2.reshape(tb * 48, 16)                   # free
    p3 = jnp.dot(s2f, w3_ref[...], preferred_element_type=f32)    # (tb*48, 72)
    p3 = p3.reshape(tb, 6, 8, 72)                   # free; small, stays a value
    conv3 = None
    for kh in range(3):
        for kw in range(3):
            c0 = (kh * 3 + kw) * 8
            piece = p3[:, kh:kh + 4, kw:kw + 4, c0:c0 + 8]   # (tb, 4, 4, 8)
            conv3 = piece if conv3 is None else conv3 + piece
    conv3 = conv3 + b3_ref[...]                     # (tb, 4, 4, 8)
    c3 = conv3.reshape(tb, 2, 2, 4, 8)              # free (leading split)
    hm3 = jnp.maximum(c3[:, :, 0], c3[:, :, 1])     # (tb, 2, 4, 8) H-pooled
    # W-pool + flatten to 32 lanes, order = (h2, w2, c); wl1 rows were permuted
    # at init to match this order, so no feat scratch / extra stores needed.
    feats = []
    for h2 in range(2):
        for w2 in range(2):
            piece = jnp.maximum(hm3[:, h2, 2 * w2:2 * w2 + 1, :],
                                hm3[:, h2, 2 * w2 + 1:2 * w2 + 2, :])  # (tb,1,8)
            feats.append(jnp.maximum(piece, 0.0).reshape(tb, 8))
    feat = jnp.concatenate(feats, axis=1)           # (tb, 32)

    # ---- FC stack: 32 -> 64 -> 128 -> 10 -------------------------------------
    h1 = jnp.maximum(jnp.dot(feat, wl1_ref[...], preferred_element_type=f32)
                     + bl1_ref[...], 0.0)           # (tb, 64)
    h2 = jnp.maximum(jnp.dot(h1, wl2_ref[...], preferred_element_type=f32)
                     + bl2_ref[...], 0.0)           # (tb, 128)
    logits = jnp.dot(h2, wl3_ref[...], preferred_element_type=f32) + bl3_ref[...]
    out_ref[...] = logits.reshape(tb, 1, 10)


# ----------------------------------------------------------------------------
# Wrapper
# ----------------------------------------------------------------------------
def prepare_params(p):
    """One-time repack of PyTorch-convention params into the kernel layout."""
    # 3x3 conv kernels -> (Cin, KH*KW*Cout), column index = (kh*3+kw)*Cout + cout
    w2k = jnp.transpose(p['w2'], (1, 2, 3, 0)).reshape(24, 9 * 16)
    w3k = jnp.transpose(p['w3'], (1, 2, 3, 0)).reshape(16, 9 * 8)
    # linear1 expects PyTorch's NCHW flatten order (c, h, w); our in-kernel
    # features are flattened channel-last (h, w, c) -> permute rows once here.
    perm = np.array([c * 4 + h * 2 + w
                     for h in range(2) for w in range(2) for c in range(8)],
                    dtype=np.int32)
    wl1k = p['wl1'].T[perm]                               # (32, 64)
    return {
        'w1': p['w1'].reshape(1, 24), 'b1': p['b1'].reshape(1, 24),
        'w2': w2k, 'b2': p['b2'].reshape(1, 16),
        'w3': w3k, 'b3': p['b3'].reshape(1, 8),
        'wl1': wl1k, 'bl1': p['bl1'].reshape(1, 64),
        'wl2': p['wl2'].T, 'bl2': p['bl2'].reshape(1, 128),
        'wl3': p['wl3'].T, 'bl3': p['bl3'].reshape(1, 10),
    }


@jax.jit
def forward(x, kp):
    """x: (B, 1, 28, 28) NCHW float32, kp: prepare_params() output -> (B, 10)."""
    B = x.shape[0]
    tb = 1                                    # batch block: one image / grid step
    # (h, w) -> (h, w//2, pool-pair), then zero-pad W 14 -> 16 so all in-kernel
    # flattens keep the sublane dim 8-aligned (3 KB/image of wrapper work).
    xq = jnp.pad(x.reshape(B, 28, 14, 2), ((0, 0), (0, 0), (0, 2), (0, 0)))
    args = (xq,
            kp['w1'], kp['b1'], kp['w2'], kp['b2'], kp['w3'], kp['b3'],
            kp['wl1'], kp['bl1'], kp['wl2'], kp['bl2'], kp['wl3'], kp['bl3'])
    in_specs = [pl.BlockSpec((tb, 28, 16, 2), lambda i: (i, 0, 0, 0))]
    in_specs += [_const_spec(a.shape) for a in args[1:]]
    out = pl.pallas_call(
        functools.partial(_fused_cnn_kernel, tb=tb),
        out_shape=jax.ShapeDtypeStruct((B, 1, 10), jnp.float32),
        grid=(B // tb,),
        in_specs=in_specs,
        out_specs=pl.BlockSpec((tb, 1, 10), lambda i: (i, 0, 0)),
        scratch_shapes=[
            pltpu.VMEM((tb, 14, 16, 144), jnp.float32),   # p2: conv2 partials
        ],
        compiler_params=pltpu.CompilerParams(
            dimension_semantics=("parallel",)),
    )(*args)
    return out.reshape(B, 10)


# ----------------------------------------------------------------------------
# Pure-JAX reference (PyTorch-convention params) for a numerical sanity check
# ----------------------------------------------------------------------------
def ref_forward(x, p):
    def conv_ref(x, w, b):
        out = lax.conv_general_dilated(
            x, w, (1, 1), 'VALID', dimension_numbers=('NCHW', 'OIHW', 'NCHW'))
        return out + b.reshape(1, -1, 1, 1)

    def mp_relu_ref(x):
        B, C, H, W = x.shape
        x = x[:, :, :H // 2 * 2, :W // 2 * 2].reshape(B, C, H // 2, 2, W // 2, 2)
        return jnp.maximum(x.max(axis=(3, 5)), 0.0)

    x = mp_relu_ref(conv_ref(x, p['w1'], p['b1']))
    x = mp_relu_ref(conv_ref(x, p['w2'], p['b2']))
    x = mp_relu_ref(conv_ref(x, p['w3'], p['b3']))
    x = x.reshape(x.shape[0], -1)
    x = jnp.maximum(x @ p['wl1'].T + p['bl1'], 0.0)
    x = jnp.maximum(x @ p['wl2'].T + p['bl2'], 0.0)
    return x @ p['wl3'].T + p['bl3']


def init_params(key):
    """Deterministic PyTorch-style uniform(-1/sqrt(fan_in), 1/sqrt(fan_in)) init."""
    keys = jax.random.split(key, 12)

    def u(k, shape, fan_in):
        bound = 1.0 / float(np.sqrt(fan_in))
        return jax.random.uniform(k, shape, jnp.float32, -bound, bound)

    return {
        'w1': u(keys[0], (24, 1, 1, 1), 1),   'b1': u(keys[1], (24,), 1),
        'w2': u(keys[2], (16, 24, 3, 3), 24 * 9), 'b2': u(keys[3], (16,), 24 * 9),
        'w3': u(keys[4], (8, 16, 3, 3), 16 * 9),  'b3': u(keys[5], (8,), 16 * 9),
        'wl1': u(keys[6], (64, 32), 32),    'bl1': u(keys[7], (64,), 32),
        'wl2': u(keys[8], (128, 64), 64),   'bl2': u(keys[9], (128,), 64),
        'wl3': u(keys[10], (10, 128), 128), 'bl3': u(keys[11], (10,), 128),
    }


if __name__ == "__main__":
    key = jax.random.PRNGKey(0)
    pkey, xkey = jax.random.split(key)
    params = init_params(pkey)
    kparams = prepare_params(params)

    # MNIST-shaped input (linear1 in_features=32 forces 1x28x28); batch=2.
    x = jax.random.normal(xkey, (2, 1, 28, 28), dtype=jnp.float32)

    out = jax.block_until_ready(forward(x, kparams))
    ref = jax.block_until_ready(ref_forward(x, params))

    assert out.shape == (2, 10), out.shape
    np.testing.assert_allclose(np.asarray(out), np.asarray(ref), rtol=2e-2, atol=2e-2)
    print("KERNEL_OK")
</pallas_src>

<mosaic_0001>
module attributes {stable_mosaic.version = 11 : i64} {
  func.func @_fused_cnn_kernel(%arg0: i32, %arg1: memref<1x28x16x2xf32, #tpu.memory_space<vmem>>, %arg2: memref<1x24xf32, #tpu.memory_space<vmem>>, %arg3: memref<1x24xf32, #tpu.memory_space<vmem>>, %arg4: memref<24x144xf32, #tpu.memory_space<vmem>>, %arg5: memref<1x16xf32, #tpu.memory_space<vmem>>, %arg6: memref<16x72xf32, #tpu.memory_space<vmem>>, %arg7: memref<1x8xf32, #tpu.memory_space<vmem>>, %arg8: memref<32x64xf32, #tpu.memory_space<vmem>>, %arg9: memref<1x64xf32, #tpu.memory_space<vmem>>, %arg10: memref<64x128xf32, #tpu.memory_space<vmem>>, %arg11: memref<1x128xf32, #tpu.memory_space<vmem>>, %arg12: memref<128x10xf32, #tpu.memory_space<vmem>>, %arg13: memref<1x10xf32, #tpu.memory_space<vmem>>, %arg14: memref<1x1x10xf32, #tpu.memory_space<vmem>>, %arg15: memref<1x14x16x144xf32, #tpu.memory_space<vmem>>) attributes {dimension_semantics = [#tpu.dimension_semantics<parallel>], iteration_bounds = array<i64: 2>, scalar_prefetch = 0 : i64, scratch_operands = 1 : i64, tpu.core_type = #tpu.core_type<tc>, window_params = [{transform_indices = @transform_0, window_bounds = array<i64: 1, 28, 16, 2>}, {pipeline_mode = #tpu.pipeline_mode<synchronous>, transform_indices = @transform_1, window_bounds = array<i64: 1, 24>}, {pipeline_mode = #tpu.pipeline_mode<synchronous>, transform_indices = @transform_2, window_bounds = array<i64: 1, 24>}, {pipeline_mode = #tpu.pipeline_mode<synchronous>, transform_indices = @transform_3, window_bounds = array<i64: 24, 144>}, {pipeline_mode = #tpu.pipeline_mode<synchronous>, transform_indices = @transform_4, window_bounds = array<i64: 1, 16>}, {pipeline_mode = #tpu.pipeline_mode<synchronous>, transform_indices = @transform_5, window_bounds = array<i64: 16, 72>}, {pipeline_mode = #tpu.pipeline_mode<synchronous>, transform_indices = @transform_6, window_bounds = array<i64: 1, 8>}, {pipeline_mode = #tpu.pipeline_mode<synchronous>, transform_indices = @transform_7, window_bounds = array<i64: 32, 64>}, {pipeline_mode = #tpu.pipeline_mode<synchronous>, transform_indices = @transform_8, window_bounds = array<i64: 1, 64>}, {pipeline_mode = #tpu.pipeline_mode<synchronous>, transform_indices = @transform_9, window_bounds = array<i64: 64, 128>}, {pipeline_mode = #tpu.pipeline_mode<synchronous>, transform_indices = @transform_10, window_bounds = array<i64: 1, 128>}, {pipeline_mode = #tpu.pipeline_mode<synchronous>, transform_indices = @transform_11, window_bounds = array<i64: 128, 10>}, {pipeline_mode = #tpu.pipeline_mode<synchronous>, transform_indices = @transform_12, window_bounds = array<i64: 1, 10>}, {transform_indices = @transform_13, window_bounds = array<i64: 1, 1, 10>}]} {
    %c0 = arith.constant 0 : index
    %c0_0 = arith.constant 0 : index
    %c0_1 = arith.constant 0 : index
    %c0_2 = arith.constant 0 : index
    %0 = vector.load %arg1[%c0, %c0_0, %c0_1, %c0_2] : memref<1x28x16x2xf32, #tpu.memory_space<vmem>>, vector<1x28x16x1xf32>
    %c0_3 = arith.constant 0 : index
    %c0_4 = arith.constant 0 : index
    %c0_5 = arith.constant 0 : index
    %c1 = arith.constant 1 : index
    %1 = vector.load %arg1[%c0_3, %c0_4, %c0_5, %c1] : memref<1x28x16x2xf32, #tpu.memory_space<vmem>>, vector<1x28x16x1xf32>
    %2 = arith.maximumf %0, %1 : vector<1x28x16x1xf32>
    %3 = arith.minimumf %0, %1 : vector<1x28x16x1xf32>
    %4 = vector.shape_cast %2 : vector<1x28x16x1xf32> to vector<1x14x2x16x1xf32>
    %5 = vector.shape_cast %3 : vector<1x28x16x1xf32> to vector<1x14x2x16x1xf32>
    %6 = vector.extract_strided_slice %4 {offsets = [0, 0, 0, 0, 0], sizes = [1, 14, 1, 16, 1], strides = [1, 1, 1, 1, 1]} : vector<1x14x2x16x1xf32> to vector<1x14x1x16x1xf32>
    %7 = vector.shape_cast %6 : vector<1x14x1x16x1xf32> to vector<1x14x16x1xf32>
    %8 = vector.extract_strided_slice %4 {offsets = [0, 0, 1, 0, 0], sizes = [1, 14, 1, 16, 1], strides = [1, 1, 1, 1, 1]} : vector<1x14x2x16x1xf32> to vector<1x14x1x16x1xf32>
    %9 = vector.shape_cast %8 : vector<1x14x1x16x1xf32> to vector<1x14x16x1xf32>
    %10 = arith.maximumf %7, %9 : vector<1x14x16x1xf32>
    %11 = vector.extract_strided_slice %5 {offsets = [0, 0, 0, 0, 0], sizes = [1, 14, 1, 16, 1], strides = [1, 1, 1, 1, 1]} : vector<1x14x2x16x1xf32> to vector<1x14x1x16x1xf32>
    %12 = vector.shape_cast %11 : vector<1x14x1x16x1xf32> to vector<1x14x16x1xf32>
    %13 = vector.extract_strided_slice %5 {offsets = [0, 0, 1, 0, 0], sizes = [1, 14, 1, 16, 1], strides = [1, 1, 1, 1, 1]} : vector<1x14x2x16x1xf32> to vector<1x14x1x16x1xf32>
    %14 = vector.shape_cast %13 : vector<1x14x1x16x1xf32> to vector<1x14x16x1xf32>
    %15 = arith.minimumf %12, %14 : vector<1x14x16x1xf32>
    %c0_6 = arith.constant 0 : index
    %c0_7 = arith.constant 0 : index
    %16 = vector.load %arg2[%c0_6, %c0_7] : memref<1x24xf32, #tpu.memory_space<vmem>>, vector<1x24xf32>
    %17 = vector.shape_cast %16 : vector<1x24xf32> to vector<1x1x1x24xf32>
    %18 = vector.broadcast %10 : vector<1x14x16x1xf32> to vector<1x14x16x24xf32>
    %19 = vector.broadcast %17 : vector<1x1x1x24xf32> to vector<1x14x16x24xf32>
    %20 = arith.mulf %18, %19 : vector<1x14x16x24xf32>
    %21 = vector.shape_cast %16 : vector<1x24xf32> to vector<1x1x1x24xf32>
    %22 = vector.broadcast %15 : vector<1x14x16x1xf32> to vector<1x14x16x24xf32>
    %23 = vector.broadcast %21 : vector<1x1x1x24xf32> to vector<1x14x16x24xf32>
    %24 = arith.mulf %22, %23 : vector<1x14x16x24xf32>
    %25 = arith.maximumf %20, %24 : vector<1x14x16x24xf32>
    %c0_8 = arith.constant 0 : index
    %c0_9 = arith.constant 0 : index
    %26 = vector.load %arg3[%c0_8, %c0_9] : memref<1x24xf32, #tpu.memory_space<vmem>>, vector<1x24xf32>
    %27 = vector.shape_cast %26 : vector<1x24xf32> to vector<1x1x1x24xf32>
    %28 = vector.broadcast %27 : vector<1x1x1x24xf32> to vector<1x14x16x24xf32>
    %29 = arith.addf %25, %28 : vector<1x14x16x24xf32>
    %cst = arith.constant 0.000000e+00 : f32
    %30 = vector.broadcast %cst : f32 to vector<1x14x16x24xf32>
    %31 = arith.maximumf %29, %30 : vector<1x14x16x24xf32>
    %32 = vector.shape_cast %31 : vector<1x14x16x24xf32> to vector<224x24xf32>
    %c0_10 = arith.constant 0 : index
    %c0_11 = arith.constant 0 : index
    %33 = vector.load %arg4[%c0_10, %c0_11] : memref<24x144xf32, #tpu.memory_space<vmem>>, vector<24x144xf32>
    %cst_12 = arith.constant dense<0.000000e+00> : vector<224x144xf32>
    %34 = tpu.matmul %32, %33, %cst_12 {dimension_numbers = #tpu.dot_dimension_numbers<[1], [0], [0], [1], [0, 0, 1, 1], [], []>} : vector<224x24xf32>, vector<24x144xf32>, vector<224x144xf32> -> vector<224x144xf32>
    %35 = vector.shape_cast %34 : vector<224x144xf32> to vector<1x14x16x144xf32>
    %c0_13 = arith.constant 0 : index
    %c0_14 = arith.constant 0 : index
    %c0_15 = arith.constant 0 : index
    %c0_16 = arith.constant 0 : index
    %36 = vector.load %arg15[%c0_13, %c0_14, %c0_15, %c0_16] : memref<1x14x16x144xf32, #tpu.memory_space<vmem>>, vector<1x14x16x144xf32>
    tpu.vector_store %arg15[%c0_13, %c0_14, %c0_15, %c0_16], %35 {strides = array<i32>} : memref<1x14x16x144xf32, #tpu.memory_space<vmem>>, vector<1x14x16x144xf32>,
    %c0_17 = arith.constant 0 : index
    %c0_18 = arith.constant 0 : index
    %c0_19 = arith.constant 0 : index
    %c0_20 = arith.constant 0 : index
    %37 = vector.load %arg15[%c0_17, %c0_18, %c0_19, %c0_20] : memref<1x14x16x144xf32, #tpu.memory_space<vmem>>, vector<1x12x12x16xf32>
    %c0_21 = arith.constant 0 : index
    %c0_22 = arith.constant 0 : index
    %c1_23 = arith.constant 1 : index
    %c16 = arith.constant 16 : index
    %38 = vector.load %arg15[%c0_21, %c0_22, %c1_23, %c16] : memref<1x14x16x144xf32, #tpu.memory_space<vmem>>, vector<1x12x12x16xf32>
    %39 = arith.addf %37, %38 : vector<1x12x12x16xf32>
    %c0_24 = arith.constant 0 : index
    %c0_25 = arith.constant 0 : index
    %c2 = arith.constant 2 : index
    %c32 = arith.constant 32 : index
    %40 = vector.load %arg15[%c0_24, %c0_25, %c2, %c32] : memref<1x14x16x144xf32, #tpu.memory_space<vmem>>, vector<1x12x12x16xf32>
    %41 = arith.addf %39, %40 : vector<1x12x12x16xf32>
    %c0_26 = arith.constant 0 : index
    %c1_27 = arith.constant 1 : index
    %c0_28 = arith.constant 0 : index
    %c48 = arith.constant 48 : index
    %42 = vector.load %arg15[%c0_26, %c1_27, %c0_28, %c48] : memref<1x14x16x144xf32, #tpu.memory_space<vmem>>, vector<1x12x12x16xf32>
    %43 = arith.addf %41, %42 : vector<1x12x12x16xf32>
    %c0_29 = arith.constant 0 : index
    %c1_30 = arith.constant 1 : index
    %c1_31 = arith.constant 1 : index
    %c64 = arith.constant 64 : index
    %44 = vector.load %arg15[%c0_29, %c1_30, %c1_31, %c64] : memref<1x14x16x144xf32, #tpu.memory_space<vmem>>, vector<1x12x12x16xf32>
    %45 = arith.addf %43, %44 : vector<1x12x12x16xf32>
    %c0_32 = arith.constant 0 : index
    %c1_33 = arith.constant 1 : index
    %c2_34 = arith.constant 2 : index
    %c80 = arith.constant 80 : index
    %46 = vector.load %arg15[%c0_32, %c1_33, %c2_34, %c80] : memref<1x14x16x144xf32, #tpu.memory_space<vmem>>, vector<1x12x12x16xf32>
    %47 = arith.addf %45, %46 : vector<1x12x12x16xf32>
    %c0_35 = arith.constant 0 : index
    %c2_36 = arith.constant 2 : index
    %c0_37 = arith.constant 0 : index
    %c96 = arith.constant 96 : index
    %48 = vector.load %arg15[%c0_35, %c2_36, %c0_37, %c96] : memref<1x14x16x144xf32, #tpu.memory_space<vmem>>, vector<1x12x12x16xf32>
    %49 = arith.addf %47, %48 : vector<1x12x12x16xf32>
    %c0_38 = arith.constant 0 : index
    %c2_39 = arith.constant 2 : index
    %c1_40 = arith.constant 1 : index
    %c112 = arith.constant 112 : index
    %50 = vector.load %arg15[%c0_38, %c2_39, %c1_40, %c112] : memref<1x14x16x144xf32, #tpu.memory_space<vmem>>, vector<1x12x12x16xf32>
    %51 = arith.addf %49, %50 : vector<1x12x12x16xf32>
    %c0_41 = arith.constant 0 : index
    %c2_42 = arith.constant 2 : index
    %c2_43 = arith.constant 2 : index
    %c128 = arith.constant 128 : index
    %52 = vector.load %arg15[%c0_41, %c2_42, %c2_43, %c128] : memref<1x14x16x144xf32, #tpu.memory_space<vmem>>, vector<1x12x12x16xf32>
    %53 = arith.addf %51, %52 : vector<1x12x12x16xf32>
    %c0_44 = arith.constant 0 : index
    %c0_45 = arith.constant 0 : index
    %54 = vector.load %arg5[%c0_44, %c0_45] : memref<1x16xf32, #tpu.memory_space<vmem>>, vector<1x16xf32>
    %55 = vector.shape_cast %54 : vector<1x16xf32> to vector<1x1x1x16xf32>
    %56 = vector.broadcast %55 : vector<1x1x1x16xf32> to vector<1x12x12x16xf32>
    %57 = arith.addf %53, %56 : vector<1x12x12x16xf32>
    %58 = vector.shape_cast %57 : vector<1x12x12x16xf32> to vector<1x6x2x12x16xf32>
    %59 = vector.extract_strided_slice %58 {offsets = [0, 0, 0, 0, 0], sizes = [1, 6, 1, 12, 16], strides = [1, 1, 1, 1, 1]} : vector<1x6x2x12x16xf32> to vector<1x6x1x12x16xf32>
    %60 = vector.shape_cast %59 : vector<1x6x1x12x16xf32> to vector<1x6x12x16xf32>
    %61 = vector.extract_strided_slice %58 {offsets = [0, 0, 1, 0, 0], sizes = [1, 6, 1, 12, 16], strides = [1, 1, 1, 1, 1]} : vector<1x6x2x12x16xf32> to vector<1x6x1x12x16xf32>
    %62 = vector.shape_cast %61 : vector<1x6x1x12x16xf32> to vector<1x6x12x16xf32>
    %63 = arith.maximumf %60, %62 : vector<1x6x12x16xf32>
    %64 = vector.extract_strided_slice %63 {offsets = [0, 0, 0, 0], sizes = [1, 6, 1, 16], strides = [1, 1, 1, 1]} : vector<1x6x12x16xf32> to vector<1x6x1x16xf32>
    %65 = vector.extract_strided_slice %63 {offsets = [0, 0, 1, 0], sizes = [1, 6, 1, 16], strides = [1, 1, 1, 1]} : vector<1x6x12x16xf32> to vector<1x6x1x16xf32>
    %66 = arith.maximumf %64, %65 : vector<1x6x1x16xf32>
    %67 = vector.extract_strided_slice %63 {offsets = [0, 0, 2, 0], sizes = [1, 6, 1, 16], strides = [1, 1, 1, 1]} : vector<1x6x12x16xf32> to vector<1x6x1x16xf32>
    %68 = vector.extract_strided_slice %63 {offsets = [0, 0, 3, 0], sizes = [1, 6, 1, 16], strides = [1, 1, 1, 1]} : vector<1x6x12x16xf32> to vector<1x6x1x16xf32>
    %69 = arith.maximumf %67, %68 : vector<1x6x1x16xf32>
    %70 = vector.extract_strided_slice %63 {offsets = [0, 0, 4, 0], sizes = [1, 6, 1, 16], strides = [1, 1, 1, 1]} : vector<1x6x12x16xf32> to vector<1x6x1x16xf32>
    %71 = vector.extract_strided_slice %63 {offsets = [0, 0, 5, 0], sizes = [1, 6, 1, 16], strides = [1, 1, 1, 1]} : vector<1x6x12x16xf32> to vector<1x6x1x16xf32>
    %72 = arith.maximumf %70, %71 : vector<1x6x1x16xf32>
    %73 = vector.extract_strided_slice %63 {offsets = [0, 0, 6, 0], sizes = [1, 6, 1, 16], strides = [1, 1, 1, 1]} : vector<1x6x12x16xf32> to vector<1x6x1x16xf32>
    %74 = vector.extract_strided_slice %63 {offsets = [0, 0, 7, 0], sizes = [1, 6, 1, 16], strides = [1, 1, 1, 1]} : vector<1x6x12x16xf32> to vector<1x6x1x16xf32>
    %75 = arith.maximumf %73, %74 : vector<1x6x1x16xf32>
    %76 = vector.extract_strided_slice %63 {offsets = [0, 0, 8, 0], sizes = [1, 6, 1, 16], strides = [1, 1, 1, 1]} : vector<1x6x12x16xf32> to vector<1x6x1x16xf32>
    %77 = vector.extract_strided_slice %63 {offsets = [0, 0, 9, 0], sizes = [1, 6, 1, 16], strides = [1, 1, 1, 1]} : vector<1x6x12x16xf32> to vector<1x6x1x16xf32>
    %78 = arith.maximumf %76, %77 : vector<1x6x1x16xf32>
    %79 = vector.extract_strided_slice %63 {offsets = [0, 0, 10, 0], sizes = [1, 6, 1, 16], strides = [1, 1, 1, 1]} : vector<1x6x12x16xf32> to vector<1x6x1x16xf32>
    %80 = vector.extract_strided_slice %63 {offsets = [0, 0, 11, 0], sizes = [1, 6, 1, 16], strides = [1, 1, 1, 1]} : vector<1x6x12x16xf32> to vector<1x6x1x16xf32>
    %81 = arith.maximumf %79, %80 : vector<1x6x1x16xf32>
    %cst_46 = arith.constant 0.000000e+00 : f32
    %82 = vector.broadcast %cst_46 : f32 to vector<1x6x2x16xf32>
    %83 = tpu.concatenate %66, %69, %72, %75, %78, %81, %82 in 2 : vector<1x6x1x16xf32>, vector<1x6x1x16xf32>, vector<1x6x1x16xf32>, vector<1x6x1x16xf32>, vector<1x6x1x16xf32>, vector<1x6x1x16xf32>, vector<1x6x2x16xf32> -> vector<1x6x8x16xf32>
    %cst_47 = arith.constant 0.000000e+00 : f32
    %84 = vector.broadcast %cst_47 : f32 to vector<1x6x8x16xf32>
    %85 = arith.maximumf %83, %84 : vector<1x6x8x16xf32>
    %86 = vector.shape_cast %85 : vector<1x6x8x16xf32> to vector<48x16xf32>
    %c0_48 = arith.constant 0 : index
    %c0_49 = arith.constant 0 : index
    %87 = vector.load %arg6[%c0_48, %c0_49] : memref<16x72xf32, #tpu.memory_space<vmem>>, vector<16x72xf32>
    %cst_50 = arith.constant dense<0.000000e+00> : vector<48x72xf32>
    %88 = tpu.matmul %86, %87, %cst_50 {dimension_numbers = #tpu.dot_dimension_numbers<[1], [0], [0], [1], [0, 0, 1, 1], [], []>} : vector<48x16xf32>, vector<16x72xf32>, vector<48x72xf32> -> vector<48x72xf32>
    %89 = vector.shape_cast %88 : vector<48x72xf32> to vector<1x6x8x72xf32>
    %90 = vector.extract_strided_slice %89 {offsets = [0, 0, 0, 0], sizes = [1, 4, 4, 8], strides = [1, 1, 1, 1]} : vector<1x6x8x72xf32> to vector<1x4x4x8xf32>
    %91 = vector.extract_strided_slice %89 {offsets = [0, 0, 1, 8], sizes = [1, 4, 4, 8], strides = [1, 1, 1, 1]} : vector<1x6x8x72xf32> to vector<1x4x4x8xf32>
    %92 = arith.addf %90, %91 : vector<1x4x4x8xf32>
    %93 = vector.extract_strided_slice %89 {offsets = [0, 0, 2, 16], sizes = [1, 4, 4, 8], strides = [1, 1, 1, 1]} : vector<1x6x8x72xf32> to vector<1x4x4x8xf32>
    %94 = arith.addf %92, %93 : vector<1x4x4x8xf32>
    %95 = vector.extract_strided_slice %89 {offsets = [0, 1, 0, 24], sizes = [1, 4, 4, 8], strides = [1, 1, 1, 1]} : vector<1x6x8x72xf32> to vector<1x4x4x8xf32>
    %96 = arith.addf %94, %95 : vector<1x4x4x8xf32>
    %97 = vector.extract_strided_slice %89 {offsets = [0, 1, 1, 32], sizes = [1, 4, 4, 8], strides = [1, 1, 1, 1]} : vector<1x6x8x72xf32> to vector<1x4x4x8xf32>
    %98 = arith.addf %96, %97 : vector<1x4x4x8xf32>
    %99 = vector.extract_strided_slice %89 {offsets = [0, 1, 2, 40], sizes = [1, 4, 4, 8], strides = [1, 1, 1, 1]} : vector<1x6x8x72xf32> to vector<1x4x4x8xf32>
    %100 = arith.addf %98, %99 : vector<1x4x4x8xf32>
    %101 = vector.extract_strided_slice %89 {offsets = [0, 2, 0, 48], sizes = [1, 4, 4, 8], strides = [1, 1, 1, 1]} : vector<1x6x8x72xf32> to vector<1x4x4x8xf32>
    %102 = arith.addf %100, %101 : vector<1x4x4x8xf32>
    %103 = vector.extract_strided_slice %89 {offsets = [0, 2, 1, 56], sizes = [1, 4, 4, 8], strides = [1, 1, 1, 1]} : vector<1x6x8x72xf32> to vector<1x4x4x8xf32>
    %104 = arith.addf %102, %103 : vector<1x4x4x8xf32>
    %105 = vector.extract_strided_slice %89 {offsets = [0, 2, 2, 64], sizes = [1, 4, 4, 8], strides = [1, 1, 1, 1]} : vector<1x6x8x72xf32> to vector<1x4x4x8xf32>
    %106 = arith.addf %104, %105 : vector<1x4x4x8xf32>
    %c0_51 = arith.constant 0 : index
    %c0_52 = arith.constant 0 : index
    %107 = vector.load %arg7[%c0_51, %c0_52] : memref<1x8xf32, #tpu.memory_space<vmem>>, vector<1x8xf32>
    %108 = vector.shape_cast %107 : vector<1x8xf32> to vector<1x1x1x8xf32>
    %109 = vector.broadcast %108 : vector<1x1x1x8xf32> to vector<1x4x4x8xf32>
    %110 = arith.addf %106, %109 : vector<1x4x4x8xf32>
    %111 = vector.shape_cast %110 : vector<1x4x4x8xf32> to vector<1x2x2x4x8xf32>
    %112 = vector.extract_strided_slice %111 {offsets = [0, 0, 0, 0, 0], sizes = [1, 2, 1, 4, 8], strides = [1, 1, 1, 1, 1]} : vector<1x2x2x4x8xf32> to vector<1x2x1x4x8xf32>
    %113 = vector.shape_cast %112 : vector<1x2x1x4x8xf32> to vector<1x2x4x8xf32>
    %114 = vector.extract_strided_slice %111 {offsets = [0, 0, 1, 0, 0], sizes = [1, 2, 1, 4, 8], strides = [1, 1, 1, 1, 1]} : vector<1x2x2x4x8xf32> to vector<1x2x1x4x8xf32>
    %115 = vector.shape_cast %114 : vector<1x2x1x4x8xf32> to vector<1x2x4x8xf32>
    %116 = arith.maximumf %113, %115 : vector<1x2x4x8xf32>
    %117 = vector.extract_strided_slice %116 {offsets = [0, 0, 0, 0], sizes = [1, 1, 1, 8], strides = [1, 1, 1, 1]} : vector<1x2x4x8xf32> to vector<1x1x1x8xf32>
    %118 = vector.shape_cast %117 : vector<1x1x1x8xf32> to vector<1x1x8xf32>
    %119 = vector.extract_strided_slice %116 {offsets = [0, 0, 1, 0], sizes = [1, 1, 1, 8], strides = [1, 1, 1, 1]} : vector<1x2x4x8xf32> to vector<1x1x1x8xf32>
    %120 = vector.shape_cast %119 : vector<1x1x1x8xf32> to vector<1x1x8xf32>
    %121 = arith.maximumf %118, %120 : vector<1x1x8xf32>
    %cst_53 = arith.constant 0.000000e+00 : f32
    %122 = vector.broadcast %cst_53 : f32 to vector<1x1x8xf32>
    %123 = arith.maximumf %121, %122 : vector<1x1x8xf32>
    %124 = vector.shape_cast %123 : vector<1x1x8xf32> to vector<1x8xf32>
    %125 = vector.extract_strided_slice %116 {offsets = [0, 0, 2, 0], sizes = [1, 1, 1, 8], strides = [1, 1, 1, 1]} : vector<1x2x4x8xf32> to vector<1x1x1x8xf32>
    %126 = vector.shape_cast %125 : vector<1x1x1x8xf32> to vector<1x1x8xf32>
    %127 = vector.extract_strided_slice %116 {offsets = [0, 0, 3, 0], sizes = [1, 1, 1, 8], strides = [1, 1, 1, 1]} : vector<1x2x4x8xf32> to vector<1x1x1x8xf32>
    %128 = vector.shape_cast %127 : vector<1x1x1x8xf32> to vector<1x1x8xf32>
    %129 = arith.maximumf %126, %128 : vector<1x1x8xf32>
    %cst_54 = arith.constant 0.000000e+00 : f32
    %130 = vector.broadcast %cst_54 : f32 to vector<1x1x8xf32>
    %131 = arith.maximumf %129, %130 : vector<1x1x8xf32>
    %132 = vector.shape_cast %131 : vector<1x1x8xf32> to vector<1x8xf32>
    %133 = vector.extract_strided_slice %116 {offsets = [0, 1, 0, 0], sizes = [1, 1, 1, 8], strides = [1, 1, 1, 1]} : vector<1x2x4x8xf32> to vector<1x1x1x8xf32>
    %134 = vector.shape_cast %133 : vector<1x1x1x8xf32> to vector<1x1x8xf32>
    %135 = vector.extract_strided_slice %116 {offsets = [0, 1, 1, 0], sizes = [1, 1, 1, 8], strides = [1, 1, 1, 1]} : vector<1x2x4x8xf32> to vector<1x1x1x8xf32>
    %136 = vector.shape_cast %135 : vector<1x1x1x8xf32> to vector<1x1x8xf32>
    %137 = arith.maximumf %134, %136 : vector<1x1x8xf32>
    %cst_55 = arith.constant 0.000000e+00 : f32
    %138 = vector.broadcast %cst_55 : f32 to vector<1x1x8xf32>
    %139 = arith.maximumf %137, %138 : vector<1x1x8xf32>
    %140 = vector.shape_cast %139 : vector<1x1x8xf32> to vector<1x8xf32>
    %141 = vector.extract_strided_slice %116 {offsets = [0, 1, 2, 0], sizes = [1, 1, 1, 8], strides = [1, 1, 1, 1]} : vector<1x2x4x8xf32> to vector<1x1x1x8xf32>
    %142 = vector.shape_cast %141 : vector<1x1x1x8xf32> to vector<1x1x8xf32>
    %143 = vector.extract_strided_slice %116 {offsets = [0, 1, 3, 0], sizes = [1, 1, 1, 8], strides = [1, 1, 1, 1]} : vector<1x2x4x8xf32> to vector<1x1x1x8xf32>
    %144 = vector.shape_cast %143 : vector<1x1x1x8xf32> to vector<1x1x8xf32>
    %145 = arith.maximumf %142, %144 : vector<1x1x8xf32>
    %cst_56 = arith.constant 0.000000e+00 : f32
    %146 = vector.broadcast %cst_56 : f32 to vector<1x1x8xf32>
    %147 = arith.maximumf %145, %146 : vector<1x1x8xf32>
    %148 = vector.shape_cast %147 : vector<1x1x8xf32> to vector<1x8xf32>
    %149 = tpu.concatenate %124, %132, %140, %148 in 1 : vector<1x8xf32>, vector<1x8xf32>, vector<1x8xf32>, vector<1x8xf32> -> vector<1x32xf32>
    %c0_57 = arith.constant 0 : index
    %c0_58 = arith.constant 0 : index
    %150 = vector.load %arg8[%c0_57, %c0_58] : memref<32x64xf32, #tpu.memory_space<vmem>>, vector<32x64xf32>
    %cst_59 = arith.constant dense<0.000000e+00> : vector<1x64xf32>
    %151 = tpu.matmul %149, %150, %cst_59 {dimension_numbers = #tpu.dot_dimension_numbers<[1], [0], [0], [1], [0, 0, 1, 1], [], []>} : vector<1x32xf32>, vector<32x64xf32>, vector<1x64xf32> -> vector<1x64xf32>
    %c0_60 = arith.constant 0 : index
    %c0_61 = arith.constant 0 : index
    %152 = vector.load %arg9[%c0_60, %c0_61] : memref<1x64xf32, #tpu.memory_space<vmem>>, vector<1x64xf32>
    %153 = arith.addf %151, %152 : vector<1x64xf32>
    %cst_62 = arith.constant 0.000000e+00 : f32
    %154 = vector.broadcast %cst_62 : f32 to vector<1x64xf32>
    %155 = arith.maximumf %153, %154 : vector<1x64xf32>
    %c0_63 = arith.constant 0 : index
    %c0_64 = arith.constant 0 : index
    %156 = vector.load %arg10[%c0_63, %c0_64] : memref<64x128xf32, #tpu.memory_space<vmem>>, vector<64x128xf32>
    %cst_65 = arith.constant dense<0.000000e+00> : vector<1x128xf32>
    %157 = tpu.matmul %155, %156, %cst_65 {dimension_numbers = #tpu.dot_dimension_numbers<[1], [0], [0], [1], [0, 0, 1, 1], [], []>} : vector<1x64xf32>, vector<64x128xf32>, vector<1x128xf32> -> vector<1x128xf32>
    %c0_66 = arith.constant 0 : index
    %c0_67 = arith.constant 0 : index
    %158 = vector.load %arg11[%c0_66, %c0_67] : memref<1x128xf32, #tpu.memory_space<vmem>>, vector<1x128xf32>
    %159 = arith.addf %157, %158 : vector<1x128xf32>
    %cst_68 = arith.constant 0.000000e+00 : f32
    %160 = vector.broadcast %cst_68 : f32 to vector<1x128xf32>
    %161 = arith.maximumf %159, %160 : vector<1x128xf32>
    %c0_69 = arith.constant 0 : index
    %c0_70 = arith.constant 0 : index
    %162 = vector.load %arg12[%c0_69, %c0_70] : memref<128x10xf32, #tpu.memory_space<vmem>>, vector<128x10xf32>
    %cst_71 = arith.constant dense<0.000000e+00> : vector<1x10xf32>
    %163 = tpu.matmul %161, %162, %cst_71 {dimension_numbers = #tpu.dot_dimension_numbers<[1], [0], [0], [1], [0, 0, 1, 1], [], []>} : vector<1x128xf32>, vector<128x10xf32>, vector<1x10xf32> -> vector<1x10xf32>
    %c0_72 = arith.constant 0 : index
    %c0_73 = arith.constant 0 : index
    %164 = vector.load %arg13[%c0_72, %c0_73] : memref<1x10xf32, #tpu.memory_space<vmem>>, vector<1x10xf32>
    %165 = arith.addf %163, %164 : vector<1x10xf32>
    %166 = vector.shape_cast %165 : vector<1x10xf32> to vector<1x1x10xf32>
    %c0_74 = arith.constant 0 : index
    %c0_75 = arith.constant 0 : index
    %c0_76 = arith.constant 0 : index
    %167 = vector.load %arg14[%c0_74, %c0_75, %c0_76] : memref<1x1x10xf32, #tpu.memory_space<vmem>>, vector<1x1x10xf32>
    tpu.vector_store %arg14[%c0_74, %c0_75, %c0_76], %166 {strides = array<i32>} : memref<1x1x10xf32, #tpu.memory_space<vmem>>, vector<1x1x10xf32>,
    return
  }
  func.func @transform_0(%arg0: i32) -> (i32, i32, i32, i32) {
    %c0_i32 = arith.constant 0 : i32
    %c0_i32_0 = arith.constant 0 : i32
    %c0_i32_1 = arith.constant 0 : i32
    %c0_i32_2 = arith.constant 0 : i32
    return %arg0, %c0_i32, %c0_i32_0, %c0_i32_1 : i32, i32, i32, i32
  }
  func.func @transform_1(%arg0: i32) -> (i32, i32) {
    %c0_i32 = arith.constant 0 : i32
    %c0_i32_0 = arith.constant 0 : i32
    %c0_i32_1 = arith.constant 0 : i32
    return %c0_i32, %c0_i32_0 : i32, i32
  }
  func.func @transform_2(%arg0: i32) -> (i32, i32) {
    %c0_i32 = arith.constant 0 : i32
    %c0_i32_0 = arith.constant 0 : i32
    %c0_i32_1 = arith.constant 0 : i32
    return %c0_i32, %c0_i32_0 : i32, i32
  }
  func.func @transform_3(%arg0: i32) -> (i32, i32) {
    %c0_i32 = arith.constant 0 : i32
    %c0_i32_0 = arith.constant 0 : i32
    %c0_i32_1 = arith.constant 0 : i32
    return %c0_i32, %c0_i32_0 : i32, i32
  }
  func.func @transform_4(%arg0: i32) -> (i32, i32) {
    %c0_i32 = arith.constant 0 : i32
    %c0_i32_0 = arith.constant 0 : i32
    %c0_i32_1 = arith.constant 0 : i32
    return %c0_i32, %c0_i32_0 : i32, i32
  }
  func.func @transform_5(%arg0: i32) -> (i32, i32) {
    %c0_i32 = arith.constant 0 : i32
    %c0_i32_0 = arith.constant 0 : i32
    %c0_i32_1 = arith.constant 0 : i32
    return %c0_i32, %c0_i32_0 : i32, i32
  }
  func.func @transform_6(%arg0: i32) -> (i32, i32) {
    %c0_i32 = arith.constant 0 : i32
    %c0_i32_0 = arith.constant 0 : i32
    %c0_i32_1 = arith.constant 0 : i32
    return %c0_i32, %c0_i32_0 : i32, i32
  }
  func.func @transform_7(%arg0: i32) -> (i32, i32) {
    %c0_i32 = arith.constant 0 : i32
    %c0_i32_0 = arith.constant 0 : i32
    %c0_i32_1 = arith.constant 0 : i32
    return %c0_i32, %c0_i32_0 : i32, i32
  }
  func.func @transform_8(%arg0: i32) -> (i32, i32) {
    %c0_i32 = arith.constant 0 : i32
    %c0_i32_0 = arith.constant 0 : i32
    %c0_i32_1 = arith.constant 0 : i32
    return %c0_i32, %c0_i32_0 : i32, i32
  }
  func.func @transform_9(%arg0: i32) -> (i32, i32) {
    %c0_i32 = arith.constant 0 : i32
    %c0_i32_0 = arith.constant 0 : i32
    %c0_i32_1 = arith.constant 0 : i32
    return %c0_i32, %c0_i32_0 : i32, i32
  }
  func.func @transform_10(%arg0: i32) -> (i32, i32) {
    %c0_i32 = arith.constant 0 : i32
    %c0_i32_0 = arith.constant 0 : i32
    %c0_i32_1 = arith.constant 0 : i32
    return %c0_i32, %c0_i32_0 : i32, i32
  }
  func.func @transform_11(%arg0: i32) -> (i32, i32) {
    %c0_i32 = arith.constant 0 : i32
    %c0_i32_0 = arith.constant 0 : i32
    %c0_i32_1 = arith.constant 0 : i32
    return %c0_i32, %c0_i32_0 : i32, i32
  }
  func.func @transform_12(%arg0: i32) -> (i32, i32) {
    %c0_i32 = arith.constant 0 : i32
    %c0_i32_0 = arith.constant 0 : i32
    %c0_i32_1 = arith.constant 0 : i32
    return %c0_i32, %c0_i32_0 : i32, i32
  }
  func.func @transform_13(%arg0: i32) -> (i32, i32, i32) {
    %c0_i32 = arith.constant 0 : i32
    %c0_i32_0 = arith.constant 0 : i32
    %c0_i32_1 = arith.constant 0 : i32
    return %arg0, %c0_i32, %c0_i32_0 : i32, i32, i32
  }
}

</mosaic_0001>

<llo_original>
// kernel: forward.1
$region0: #{forward.1}
  #allocation0 [shape = 'u32[]', space=smem, size = 0x4, offset = 0x4, fixed_abs, tag = 'smem constant byte address 0x4 - core index']
  #allocation1 [shape = 'u32[144,128]{1,0:T(1,128)}', space=vmem, size = 0x12000, scoped, tag = 'internal scratch']
  #allocation2 [shape = 'f32[1,14,16,144]{3,2,1,0:T(8,128)}', space=vmem, size = 0x38000, scoped, tag = 'scratch operand']
  %s0 = inlined_call_operand.vmem [shape: f32[2,28,16,2], index: 0, kind: input, shape index: {}]
  %s1 = inlined_call_operand.vmem [shape: f32[1,24], index: 1, kind: input, shape index: {}]
  %s2 = inlined_call_operand.vmem [shape: f32[1,24], index: 2, kind: input, shape index: {}]
  %s3 = inlined_call_operand.vmem [shape: f32[24,144], index: 3, kind: input, shape index: {}]
  %s4 = inlined_call_operand.vmem [shape: f32[1,16], index: 4, kind: input, shape index: {}]
  %s5 = inlined_call_operand.vmem [shape: f32[16,72], index: 5, kind: input, shape index: {}]
  %s6 = inlined_call_operand.vmem [shape: f32[1,8], index: 6, kind: input, shape index: {}]
  %s7 = inlined_call_operand.vmem [shape: f32[32,64], index: 7, kind: input, shape index: {}]
  %s8 = inlined_call_operand.vmem [shape: f32[1,64], index: 8, kind: input, shape index: {}]
  %s9 = inlined_call_operand.vmem [shape: f32[64,128], index: 9, kind: input, shape index: {}]
  %s10 = inlined_call_operand.vmem [shape: f32[1,128], index: 10, kind: input, shape index: {}]
  %s11 = inlined_call_operand.vmem [shape: f32[128,10], index: 11, kind: input, shape index: {}]
  %s12 = inlined_call_operand.vmem [shape: f32[1,10], index: 12, kind: input, shape index: {}]
  %s13 = inlined_call_operand.hbm [shape: f32[2,1,10], index: 13, kind: output, shape index: {}]
  %s14 = sld [smem:[#allocation0]]
  $region85: #{forward.1} parent=0
    _
  %s16 = ssub.s32 1, %s14
  %s17 = scalar_select 0, %s16, %s14
  $region1: #{forward.1} parent=0
    #allocation3 [shape = 'u8[1024]{0}', space=vmem, size = 0x400, scoped, tag = 'output window, operand 0']
    #allocation4 [shape = 's32[2]{0}', space=sflag, size = 0x8, scoped, tag = 'scoped memory for forward.1']
    %18 = vsyncpa [#allocation4], 0
    %s19 = scalar_lea.sflag [#allocation4], 1
    %20 = vsyncpa %s19, 0
    loop: start=0, step=1, limit=4
    $region2: #{forward.1} parent=1 // loop_pre_header
      _
    $region3: #{forward.1} parent=1 // loop_header
      %s22 = sphi 0, %s26
      %p23 = scmp.ge.s32.totalorder %s22, 4
      %s32 = sphi 0, %s34
      %s35 = sphi 0, %s32
      %s36 = sphi 0, %s35
      %s52 = sphi 0, %s36
      %s56 = sphi 0, %s56
      %s58 = sphi 0, %s56
      %s59 = sphi 0, %s58
      %s73 = sphi 0, %s59
      %s77 = sphi 0, %s77
      %s79 = sphi 0, %s77
      %s80 = sphi 0, %s79
      %s94 = sphi 0, %s80
      %s98 = sphi 0, %s98
      %s100 = sphi 0, %s98
      %s101 = sphi 0, %s100
      %s115 = sphi 0, %s101
      %s119 = sphi 0, %s119
      %s121 = sphi 0, %s119
      %s122 = sphi 0, %s121
      %s136 = sphi 0, %s122
      %s140 = sphi 0, %s140
      %s142 = sphi 0, %s140
      %s143 = sphi 0, %s142
      %s157 = sphi 0, %s143
      %s161 = sphi 0, %s161
      %s163 = sphi 0, %s161
      %s164 = sphi 0, %s163
      %s178 = sphi 0, %s164
      %s182 = sphi 0, %s182
      %s184 = sphi 0, %s182
      %s185 = sphi 0, %s184
      %s199 = sphi 0, %s185
      %s203 = sphi 0, %s203
      %s205 = sphi 0, %s203
      %s206 = sphi 0, %s205
      %s220 = sphi 0, %s206
      %s224 = sphi 0, %s224
      %s226 = sphi 0, %s224
      %s227 = sphi 0, %s226
      %s241 = sphi 0, %s227
      %s245 = sphi 0, %s245
      %s247 = sphi 0, %s245
      %s248 = sphi 0, %s247
      %s262 = sphi 0, %s248
      %s266 = sphi 0, %s266
      %s268 = sphi 0, %s266
      %s269 = sphi 0, %s268
      %s283 = sphi 0, %s269
      %s287 = sphi 0, %s287
      %s289 = sphi 0, %s287
      %s290 = sphi 0, %s289
      %s304 = sphi 0, %s290
      %s310 = sphi 0, %s312
      %s313 = sphi 0, %s310
      %s314 = sphi 0, %s313
      %s330 = sphi 0, %s314
    $region4: #{forward.1} parent=1 // loop_header_branch
      %25 = sbr.rel (%p23) target = $region8
    $region5: #{forward.1} parent=1 // loop_body
      %s27 = ssub.s32 %s22, 1
      %s28 = ssub.s32 %s22, 2
      %s29 = sadd.s32 %s22, 1
      %s30 = ssub.s32 %s22, %s29
      %p31 = scmp.eq.s32.totalorder %s30, 0
      %s33 = sadd.s32 %s32, 1
      %s34 = scalar_select %p31, %s32, %s33
      %p37 = pneg %p31
      %p38 = scmp.eq.s32.totalorder %s22, 1
      %p39 = por %p37, %p38
      %p40 = scmp.ne.s32.totalorder %s32, %s35
      %p41 = scmp.eq.s32.totalorder %s22, 0
      %p42 = por %p40, %p41
      %p43 = scmp.ne.s32.totalorder %s32, %s35
      %p44 = scmp.eq.s32.totalorder %s27, 1
      %p45 = por %p43, %p44
      %p46 = scmp.ne.s32.totalorder %s35, %s36
      %p47 = scmp.eq.s32.totalorder %s27, 0
      %p48 = por %p46, %p47
      %p49 = scmp.ne.s32.totalorder %s35, %s36
      %p50 = scmp.eq.s32.totalorder %s28, 1
      %p51 = por %p49, %p50
      %p53 = scmp.ne.s32.totalorder %s36, %s52
      %p54 = scmp.eq.s32.totalorder %s28, 0
      %p55 = por %p53, %p54
      %s57 = sadd.s32 %s56, 1
      %p60 = scmp.eq.s32.totalorder %s22, 1
      %p61 = scmp.ne.s32.totalorder %s56, %s58
      %p62 = scmp.eq.s32.totalorder %s22, 0
      %p63 = por %p61, %p62
      %p64 = scmp.ne.s32.totalorder %s56, %s58
      %p65 = scmp.eq.s32.totalorder %s27, 1
      %p66 = por %p64, %p65
      %p67 = scmp.ne.s32.totalorder %s58, %s59
      %p68 = scmp.eq.s32.totalorder %s27, 0
      %p69 = por %p67, %p68
      %p70 = scmp.ne.s32.totalorder %s58, %s59
      %p71 = scmp.eq.s32.totalorder %s28, 1
      %p72 = por %p70, %p71
      %p74 = scmp.ne.s32.totalorder %s59, %s73
      %p75 = scmp.eq.s32.totalorder %s28, 0
      %p76 = por %p74, %p75
      %s78 = sadd.s32 %s77, 1
      %p81 = scmp.eq.s32.totalorder %s22, 1
      %p82 = scmp.ne.s32.totalorder %s77, %s79
      %p83 = scmp.eq.s32.totalorder %s22, 0
      %p84 = por %p82, %p83
      %p85 = scmp.ne.s32.totalorder %s77, %s79
      %p86 = scmp.eq.s32.totalorder %s27, 1
      %p87 = por %p85, %p86
      %p88 = scmp.ne.s32.totalorder %s79, %s80
      %p89 = scmp.eq.s32.totalorder %s27, 0
      %p90 = por %p88, %p89
      %p91 = scmp.ne.s32.totalorder %s79, %s80
      %p92 = scmp.eq.s32.totalorder %s28, 1
      %p93 = por %p91, %p92
      %p95 = scmp.ne.s32.totalorder %s80, %s94
      %p96 = scmp.eq.s32.totalorder %s28, 0
      %p97 = por %p95, %p96
      %s99 = sadd.s32 %s98, 1
      %p102 = scmp.eq.s32.totalorder %s22, 1
      %p103 = scmp.ne.s32.totalorder %s98, %s100
      %p104 = scmp.eq.s32.totalorder %s22, 0
      %p105 = por %p103, %p104
      %p106 = scmp.ne.s32.totalorder %s98, %s100
      %p107 = scmp.eq.s32.totalorder %s27, 1
      %p108 = por %p106, %p107
      %p109 = scmp.ne.s32.totalorder %s100, %s101
      %p110 = scmp.eq.s32.totalorder %s27, 0
      %p111 = por %p109, %p110
      %p112 = scmp.ne.s32.totalorder %s100, %s101
      %p113 = scmp.eq.s32.totalorder %s28, 1
      %p114 = por %p112, %p113
      %p116 = scmp.ne.s32.totalorder %s101, %s115
      %p117 = scmp.eq.s32.totalorder %s28, 0
      %p118 = por %p116, %p117
      %s120 = sadd.s32 %s119, 1
      %p123 = scmp.eq.s32.totalorder %s22, 1
      %p124 = scmp.ne.s32.totalorder %s119, %s121
      %p125 = scmp.eq.s32.totalorder %s22, 0
      %p126 = por %p124, %p125
      %p127 = scmp.ne.s32.totalorder %s119, %s121
      %p128 = scmp.eq.s32.totalorder %s27, 1
      %p129 = por %p127, %p128
      %p130 = scmp.ne.s32.totalorder %s121, %s122
      %p131 = scmp.eq.s32.totalorder %s27, 0
      %p132 = por %p130, %p131
      %p133 = scmp.ne.s32.totalorder %s121, %s122
      %p134 = scmp.eq.s32.totalorder %s28, 1
      %p135 = por %p133, %p134
      %p137 = scmp.ne.s32.totalorder %s122, %s136
      %p138 = scmp.eq.s32.totalorder %s28, 0
      %p139 = por %p137, %p138
      %s141 = sadd.s32 %s140, 1
      %p144 = scmp.eq.s32.totalorder %s22, 1
      %p145 = scmp.ne.s32.totalorder %s140, %s142
      %p146 = scmp.eq.s32.totalorder %s22, 0
      %p147 = por %p145, %p146
      %p148 = scmp.ne.s32.totalorder %s140, %s142
      %p149 = scmp.eq.s32.totalorder %s27, 1
      %p150 = por %p148, %p149
      %p151 = scmp.ne.s32.totalorder %s142, %s143
      %p152 = scmp.eq.s32.totalorder %s27, 0
      %p153 = por %p151, %p152
      %p154 = scmp.ne.s32.totalorder %s142, %s143
      %p155 = scmp.eq.s32.totalorder %s28, 1
      %p156 = por %p154, %p155
      %p158 = scmp.ne.s32.totalorder %s143, %s157
      %p159 = scmp.eq.s32.totalorder %s28, 0
      %p160 = por %p158, %p159
      %s162 = sadd.s32 %s161, 1
      %p165 = scmp.eq.s32.totalorder %s22, 1
      %p166 = scmp.ne.s32.totalorder %s161, %s163
      %p167 = scmp.eq.s32.totalorder %s22, 0
      %p168 = por %p166, %p167
      %p169 = scmp.ne.s32.totalorder %s161, %s163
      %p170 = scmp.eq.s32.totalorder %s27, 1
      %p171 = por %p169, %p170
      %p172 = scmp.ne.s32.totalorder %s163, %s164
      %p173 = scmp.eq.s32.totalorder %s27, 0
      %p174 = por %p172, %p173
      %p175 = scmp.ne.s32.totalorder %s163, %s164
      %p176 = scmp.eq.s32.totalorder %s28, 1
      %p177 = por %p175, %p176
      %p179 = scmp.ne.s32.totalorder %s164, %s178
      %p180 = scmp.eq.s32.totalorder %s28, 0
      %p181 = por %p179, %p180
      %s183 = sadd.s32 %s182, 1
      %p186 = scmp.eq.s32.totalorder %s22, 1
      %p187 = scmp.ne.s32.totalorder %s182, %s184
      %p188 = scmp.eq.s32.totalorder %s22, 0
      %p189 = por %p187, %p188
      %p190 = scmp.ne.s32.totalorder %s182, %s184
      %p191 = scmp.eq.s32.totalorder %s27, 1
      %p192 = por %p190, %p191
      %p193 = scmp.ne.s32.totalorder %s184, %s185
      %p194 = scmp.eq.s32.totalorder %s27, 0
      %p195 = por %p193, %p194
      %p196 = scmp.ne.s32.totalorder %s184, %s185
      %p197 = scmp.eq.s32.totalorder %s28, 1
      %p198 = por %p196, %p197
      %p200 = scmp.ne.s32.totalorder %s185, %s199
      %p201 = scmp.eq.s32.totalorder %s28, 0
      %p202 = por %p200, %p201
      %s204 = sadd.s32 %s203, 1
      %p207 = scmp.eq.s32.totalorder %s22, 1
      %p208 = scmp.ne.s32.totalorder %s203, %s205
      %p209 = scmp.eq.s32.totalorder %s22, 0
      %p210 = por %p208, %p209
      %p211 = scmp.ne.s32.totalorder %s203, %s205
      %p212 = scmp.eq.s32.totalorder %s27, 1
      %p213 = por %p211, %p212
      %p214 = scmp.ne.s32.totalorder %s205, %s206
      %p215 = scmp.eq.s32.totalorder %s27, 0
      %p216 = por %p214, %p215
      %p217 = scmp.ne.s32.totalorder %s205, %s206
      %p218 = scmp.eq.s32.totalorder %s28, 1
      %p219 = por %p217, %p218
      %p221 = scmp.ne.s32.totalorder %s206, %s220
      %p222 = scmp.eq.s32.totalorder %s28, 0
      %p223 = por %p221, %p222
      %s225 = sadd.s32 %s224, 1
      %p228 = scmp.eq.s32.totalorder %s22, 1
      %p229 = scmp.ne.s32.totalorder %s224, %s226
      %p230 = scmp.eq.s32.totalorder %s22, 0
      %p231 = por %p229, %p230
      %p232 = scmp.ne.s32.totalorder %s224, %s226
      %p233 = scmp.eq.s32.totalorder %s27, 1
      %p234 = por %p232, %p233
      %p235 = scmp.ne.s32.totalorder %s226, %s227
      %p236 = scmp.eq.s32.totalorder %s27, 0
      %p237 = por %p235, %p236
      %p238 = scmp.ne.s32.totalorder %s226, %s227
      %p239 = scmp.eq.s32.totalorder %s28, 1
      %p240 = por %p238, %p239
      %p242 = scmp.ne.s32.totalorder %s227, %s241
      %p243 = scmp.eq.s32.totalorder %s28, 0
      %p244 = por %p242, %p243
      %s246 = sadd.s32 %s245, 1
      %p249 = scmp.eq.s32.totalorder %s22, 1
      %p250 = scmp.ne.s32.totalorder %s245, %s247
      %p251 = scmp.eq.s32.totalorder %s22, 0
      %p252 = por %p250, %p251
      %p253 = scmp.ne.s32.totalorder %s245, %s247
      %p254 = scmp.eq.s32.totalorder %s27, 1
      %p255 = por %p253, %p254
      %p256 = scmp.ne.s32.totalorder %s247, %s248
      %p257 = scmp.eq.s32.totalorder %s27, 0
      %p258 = por %p256, %p257
      %p259 = scmp.ne.s32.totalorder %s247, %s248
      %p260 = scmp.eq.s32.totalorder %s28, 1
      %p261 = por %p259, %p260
      %p263 = scmp.ne.s32.totalorder %s248, %s262
      %p264 = scmp.eq.s32.totalorder %s28, 0
      %p265 = por %p263, %p264
      %s267 = sadd.s32 %s266, 1
      %p270 = scmp.eq.s32.totalorder %s22, 1
      %p271 = scmp.ne.s32.totalorder %s266, %s268
      %p272 = scmp.eq.s32.totalorder %s22, 0
      %p273 = por %p271, %p272
      %p274 = scmp.ne.s32.totalorder %s266, %s268
      %p275 = scmp.eq.s32.totalorder %s27, 1
      %p276 = por %p274, %p275
      %p277 = scmp.ne.s32.totalorder %s268, %s269
      %p278 = scmp.eq.s32.totalorder %s27, 0
      %p279 = por %p277, %p278
      %p280 = scmp.ne.s32.totalorder %s268, %s269
      %p281 = scmp.eq.s32.totalorder %s28, 1
      %p282 = por %p280, %p281
      %p284 = scmp.ne.s32.totalorder %s269, %s283
      %p285 = scmp.eq.s32.totalorder %s28, 0
      %p286 = por %p284, %p285
      %s288 = sadd.s32 %s287, 1
      %p291 = scmp.eq.s32.totalorder %s22, 1
      %p292 = scmp.ne.s32.totalorder %s287, %s289
      %p293 = scmp.eq.s32.totalorder %s22, 0
      %p294 = por %p292, %p293
      %p295 = scmp.ne.s32.totalorder %s287, %s289
      %p296 = scmp.eq.s32.totalorder %s27, 1
      %p297 = por %p295, %p296
      %p298 = scmp.ne.s32.totalorder %s289, %s290
      %p299 = scmp.eq.s32.totalorder %s27, 0
      %p300 = por %p298, %p299
      %p301 = scmp.ne.s32.totalorder %s289, %s290
      %p302 = scmp.eq.s32.totalorder %s28, 1
      %p303 = por %p301, %p302
      %p305 = scmp.ne.s32.totalorder %s290, %s304
      %p306 = scmp.eq.s32.totalorder %s28, 0
      %p307 = por %p305, %p306
      %s308 = ssub.s32 %s22, %s29
      %p309 = scmp.eq.s32.totalorder %s308, 0
      %s311 = sadd.s32 %s310, 1
      %s312 = scalar_select %p309, %s310, %s311
      %p315 = pneg %p309
      %p316 = scmp.eq.s32.totalorder %s22, 1
      %p317 = por %p315, %p316
      %p318 = scmp.ne.s32.totalorder %s310, %s313
      %p319 = scmp.eq.s32.totalorder %s22, 0
      %p320 = por %p318, %p319
      %p321 = scmp.ne.s32.totalorder %s310, %s313
      %p322 = scmp.eq.s32.totalorder %s27, 1
      %p323 = por %p321, %p322
      %p324 = scmp.ne.s32.totalorder %s313, %s314
      %p325 = scmp.eq.s32.totalorder %s27, 0
      %p326 = por %p324, %p325
      %p327 = scmp.ne.s32.totalorder %s313, %s314
      %p328 = scmp.eq.s32.totalorder %s28, 1
      %p329 = por %p327, %p328
      %p331 = scmp.ne.s32.totalorder %s314, %s330
      %p332 = scmp.eq.s32.totalorder %s28, 0
      %p333 = por %p331, %p332
      %p334 = scmp.le.s32.totalorder 1, %s22
      %p335 = scmp.lt.s32.totalorder %s22, 3
      %p336 = pnand %p334, %p335
      %p337 = pneg %p336
      // Predicated region
      $region9: #{forward.1} parent=5 // pred_check
        _
      $region10: #{forward.1} parent=5 // pred_check_branch
        %339 = sbr.rel (%p336) target = $region12
      $region11: #{forward.1} parent=5 // pred_region
        %s340 = ssub.s32 %s22, 1
        // Predicated region
        $region13: #{forward.1} parent=11 // pred_check
          %p341 = pneg %p69
        $region14: #{forward.1} parent=11 // pred_check_branch
          %343 = sbr.rel (%p341) target = $region16
        $region15: #{forward.1} parent=11 // pred_region
          _
        $region16: #{forward.1} parent=11 // pred_fallthru
          _
        // Predicated region
        $region17: #{forward.1} parent=11 // pred_check
          %p344 = pneg %p90
        $region18: #{forward.1} parent=11 // pred_check_branch
          %346 = sbr.rel (%p344) target = $region20
        $region19: #{forward.1} parent=11 // pred_region
          _
        $region20: #{forward.1} parent=11 // pred_fallthru
          _
        // Predicated region
        $region21: #{forward.1} parent=11 // pred_check
          %p347 = pneg %p111
        $region22: #{forward.1} parent=11 // pred_check_branch
          %349 = sbr.rel (%p347) target = $region24
        $region23: #{forward.1} parent=11 // pred_region
          _
        $region24: #{forward.1} parent=11 // pred_fallthru
          _
        // Predicated region
        $region25: #{forward.1} parent=11 // pred_check
          %p350 = pneg %p132
        $region26: #{forward.1} parent=11 // pred_check_branch
          %352 = sbr.rel (%p350) target = $region28
        $region27: #{forward.1} parent=11 // pred_region
          _
        $region28: #{forward.1} parent=11 // pred_fallthru
          _
        // Predicated region
        $region29: #{forward.1} parent=11 // pred_check
          %p353 = pneg %p153
        $region30: #{forward.1} parent=11 // pred_check_branch
          %355 = sbr.rel (%p353) target = $region32
        $region31: #{forward.1} parent=11 // pred_region
          _
        $region32: #{forward.1} parent=11 // pred_fallthru
          _
        // Predicated region
        $region33: #{forward.1} parent=11 // pred_check
          %p356 = pneg %p174
        $region34: #{forward.1} parent=11 // pred_check_branch
          %358 = sbr.rel (%p356) target = $region36
        $region35: #{forward.1} parent=11 // pred_region
          _
        $region36: #{forward.1} parent=11 // pred_fallthru
          _
        // Predicated region
        $region37: #{forward.1} parent=11 // pred_check
          %p359 = pneg %p195
        $region38: #{forward.1} parent=11 // pred_check_branch
          %361 = sbr.rel (%p359) target = $region40
        $region39: #{forward.1} parent=11 // pred_region
          _
        $region40: #{forward.1} parent=11 // pred_fallthru
          _
        // Predicated region
        $region41: #{forward.1} parent=11 // pred_check
          %p362 = pneg %p216
        $region42: #{forward.1} parent=11 // pred_check_branch
          %364 = sbr.rel (%p362) target = $region44
        $region43: #{forward.1} parent=11 // pred_region
          _
        $region44: #{forward.1} parent=11 // pred_fallthru
          _
        // Predicated region
        $region45: #{forward.1} parent=11 // pred_check
          %p365 = pneg %p237
        $region46: #{forward.1} parent=11 // pred_check_branch
          %367 = sbr.rel (%p365) target = $region48
        $region47: #{forward.1} parent=11 // pred_region
          _
        $region48: #{forward.1} parent=11 // pred_fallthru
          _
        // Predicated region
        $region49: #{forward.1} parent=11 // pred_check
          %p368 = pneg %p258
        $region50: #{forward.1} parent=11 // pred_check_branch
          %370 = sbr.rel (%p368) target = $region52
        $region51: #{forward.1} parent=11 // pred_region
          _
        $region52: #{forward.1} parent=11 // pred_fallthru
          _
        // Predicated region
        $region53: #{forward.1} parent=11 // pred_check
          %p371 = pneg %p279
        $region54: #{forward.1} parent=11 // pred_check_branch
          %373 = sbr.rel (%p371) target = $region56
        $region55: #{forward.1} parent=11 // pred_region
          _
        $region56: #{forward.1} parent=11 // pred_fallthru
          _
        // Predicated region
        $region57: #{forward.1} parent=11 // pred_check
          %p374 = pneg %p300
        $region58: #{forward.1} parent=11 // pred_check_branch
          %376 = sbr.rel (%p374) target = $region60
        $region59: #{forward.1} parent=11 // pred_region
          _
        $region60: #{forward.1} parent=11 // pred_fallthru
          _
      $region12: #{forward.1} parent=5 // pred_fallthru
        _
      %p377 = scmp.lt.s32.totalorder %s22, 2
      // Predicated region
      $region61: #{forward.1} parent=5 // pred_check
        %p378 = pneg %p377
      $region62: #{forward.1} parent=5 // pred_check_branch
        %380 = sbr.rel (%p378) target = $region64
      $region63: #{forward.1} parent=5 // pred_region
        // Predicated region
        $region65: #{forward.1} parent=63 // pred_check
          %p381 = pneg %p42
        $region66: #{forward.1} parent=63 // pred_check_branch
          %383 = sbr.rel (%p381) target = $region68
        $region67: #{forward.1} parent=63 // pred_region
          %p384 = scmp.lt.s32.totalorder %s22, 1
          %s385 = scalar_select %p384, %s22, 1
          %s386 = smul.addr %s385, 56
          %s387 = smul.addr %s386, 8
          %s388 = scalar_lea.vmem %s0, %s387
        $region68: #{forward.1} parent=63 // pred_fallthru
          _
      $region64: #{forward.1} parent=5 // pred_fallthru
        _
      %p389 = scmp.le.s32.totalorder 1, %s22
      %p390 = scmp.lt.s32.totalorder %s22, 3
      %p391 = pnand %p389, %p390
      %p392 = pneg %p391
      // Predicated region
      $region69: #{forward.1} parent=5 // pred_check
        _
      $region70: #{forward.1} parent=5 // pred_check_branch
        %394 = sbr.rel (%p391) target = $region72
      $region71: #{forward.1} parent=5 // pred_region
        %s395 = ssub.s32 %s22, 1
        %p396 = scmp.lt.s32.totalorder %s27, 1
        %s397 = scalar_select %p396, %s27, 1
        %s398 = smul.addr %s397, 56
        %s399 = smul.addr %s398, 8
        %s400 = scalar_lea.vmem %s0, %s399
        %p401 = pneg %p48
        %p402 = pneg %p45
        %p403 = pneg %p69
        %p404 = pneg %p66
        %p405 = pneg %p90
        %p406 = pneg %p87
        %p407 = pneg %p111
        %p408 = pneg %p108
        %p409 = pneg %p132
        %p410 = pneg %p129
        %p411 = pneg %p153
        %p412 = pneg %p150
        %p413 = pneg %p174
        %p414 = pneg %p171
        %p415 = pneg %p195
        %p416 = pneg %p192
        %p417 = pneg %p216
        %p418 = pneg %p213
        %p419 = pneg %p237
        %p420 = pneg %p234
        %p421 = pneg %p258
        %p422 = pneg %p255
        %p423 = pneg %p279
        %p424 = pneg %p276
        %p425 = pneg %p300
        %p426 = pneg %p297
        %p427 = pneg %p326
        %p428 = pneg %p323
        %s429 = sand.u32 %s313, 1
        %s430 = scalar_lea.sflag [#allocation4], %s429
        %s431 = sand.u32 %s313, 1
        %s432 = scalar_lea.vmem [#allocation3], %s431
        %p433 = scmp.lt.s32.totalorder %s27, 1
        %s434 = scalar_select %p433, %s27, 1
        %s435 = smul.addr %s434, 56
        %s436 = smul.addr %s435, 8
        %s437 = scalar_lea.vmem %s0, %s436
        %v438 = vld [vmem:[%s437] sm:$0xff]
        %v439 = vld [vmem:[%s437 + $0x8] sm:$0xff]
        %v440 = vld [vmem:[%s437 + $0x10] sm:$0xff]
        %v441 = vld [vmem:[%s437 + $0x18] sm:$0xff]
        %v442 = vld [vmem:[%s437 + $0x20] sm:$0xff]
        %v443 = vld [vmem:[%s437 + $0x28] sm:$0xff]
        %v444 = vld [vmem:[%s437 + $0x30] sm:$0xff]
        %v445 = vld [vmem:[%s437 + $0x38] sm:$0xff]
        %v446 = vld [vmem:[%s437 + $0x40] sm:$0xff]
        %v447 = vld [vmem:[%s437 + $0x48] sm:$0xff]
        %v448 = vld [vmem:[%s437 + $0x50] sm:$0xff]
        %v449 = vld [vmem:[%s437 + $0x58] sm:$0xff]
        %v450 = vld [vmem:[%s437 + $0x60] sm:$0xff]
        %v451 = vld [vmem:[%s437 + $0x68] sm:$0xff]
        %v452 = vld [vmem:[%s437 + $0x70] sm:$0xff]
        %v453 = vld [vmem:[%s437 + $0x78] sm:$0xff]
        %v454 = vld [vmem:[%s437 + $0x80] sm:$0xff]
        %v455 = vld [vmem:[%s437 + $0x88] sm:$0xff]
        %v456 = vld [vmem:[%s437 + $0x90] sm:$0xff]
        %v457 = vld [vmem:[%s437 + $0x98] sm:$0xff]
        %v458 = vld [vmem:[%s437 + $0xa0] sm:$0xff]
        %v459 = vld [vmem:[%s437 + $0xa8] sm:$0xff]
        %v460 = vld [vmem:[%s437 + $0xb0] sm:$0xff]
        %v461 = vld [vmem:[%s437 + $0xb8] sm:$0xff]
        %v462 = vld [vmem:[%s437 + $0xc0] sm:$0xff]
        %v463 = vld [vmem:[%s437 + $0xc8] sm:$0xff]
        %v464 = vld [vmem:[%s437 + $0xd0] sm:$0xff]
        %v465 = vld [vmem:[%s437 + $0xd8] sm:$0xff]
        %v466 = vld [vmem:[%s437 + $0xe0] sm:$0xff]
        %v467 = vld [vmem:[%s437 + $0xe8] sm:$0xff]
        %v468 = vld [vmem:[%s437 + $0xf0] sm:$0xff]
        %v469 = vld [vmem:[%s437 + $0xf8] sm:$0xff]
        %v470 = vld [vmem:[%s437 + $0x100] sm:$0xff]
        %v471 = vld [vmem:[%s437 + $0x108] sm:$0xff]
        %v472 = vld [vmem:[%s437 + $0x110] sm:$0xff]
        %v473 = vld [vmem:[%s437 + $0x118] sm:$0xff]
        %v474 = vld [vmem:[%s437 + $0x120] sm:$0xff]
        %v475 = vld [vmem:[%s437 + $0x128] sm:$0xff]
        %v476 = vld [vmem:[%s437 + $0x130] sm:$0xff]
        %v477 = vld [vmem:[%s437 + $0x138] sm:$0xff]
        %v478 = vld [vmem:[%s437 + $0x140] sm:$0xff]
        %v479 = vld [vmem:[%s437 + $0x148] sm:$0xff]
        %v480 = vld [vmem:[%s437 + $0x150] sm:$0xff]
        %v481 = vld [vmem:[%s437 + $0x158] sm:$0xff]
        %v482 = vld [vmem:[%s437 + $0x160] sm:$0xff]
        %v483 = vld [vmem:[%s437 + $0x168] sm:$0xff]
        %v484 = vld [vmem:[%s437 + $0x170] sm:$0xff]
        %v485 = vld [vmem:[%s437 + $0x178] sm:$0xff]
        %v486 = vld [vmem:[%s437 + $0x180] sm:$0xff]
        %v487 = vld [vmem:[%s437 + $0x188] sm:$0xff]
        %v488 = vld [vmem:[%s437 + $0x190] sm:$0xff]
        %v489 = vld [vmem:[%s437 + $0x198] sm:$0xff]
        %v490 = vld [vmem:[%s437 + $0x1a0] sm:$0xff]
        %v491 = vld [vmem:[%s437 + $0x1a8] sm:$0xff]
        %v492 = vld [vmem:[%s437 + $0x1b0] sm:$0xff]
        %v493 = vld [vmem:[%s437 + $0x1b8] sm:$0xff]
        %550 = vrot.lane.b32.xlu0 %v438, 127
        %v551 = vpop.permute.xlu0 %550
        %552 = vrot.lane.b32.xlu0 %v439, 127
        %v553 = vpop.permute.xlu0 %552
        %554 = vrot.lane.b32.xlu0 %v440, 127
        %v555 = vpop.permute.xlu0 %554
        %556 = vrot.lane.b32.xlu0 %v441, 127
        %v557 = vpop.permute.xlu0 %556
        %558 = vrot.lane.b32.xlu0 %v442, 127
        %v559 = vpop.permute.xlu0 %558
        %560 = vrot.lane.b32.xlu0 %v443, 127
        %v561 = vpop.permute.xlu0 %560
        %562 = vrot.lane.b32.xlu0 %v444, 127
        %v563 = vpop.permute.xlu0 %562
        %564 = vrot.lane.b32.xlu0 %v445, 127
        %v565 = vpop.permute.xlu0 %564
        %566 = vrot.lane.b32.xlu0 %v446, 127
        %v567 = vpop.permute.xlu0 %566
        %568 = vrot.lane.b32.xlu0 %v447, 127
        %v569 = vpop.permute.xlu0 %568
        %570 = vrot.lane.b32.xlu0 %v448, 127
        %v571 = vpop.permute.xlu0 %570
        %572 = vrot.lane.b32.xlu0 %v449, 127
        %v573 = vpop.permute.xlu0 %572
        %574 = vrot.lane.b32.xlu0 %v450, 127
        %v575 = vpop.permute.xlu0 %574
        %576 = vrot.lane.b32.xlu0 %v451, 127
        %v577 = vpop.permute.xlu0 %576
        %578 = vrot.lane.b32.xlu0 %v452, 127
        %v579 = vpop.permute.xlu0 %578
        %580 = vrot.lane.b32.xlu0 %v453, 127
        %v581 = vpop.permute.xlu0 %580
        %582 = vrot.lane.b32.xlu0 %v454, 127
        %v583 = vpop.permute.xlu0 %582
        %584 = vrot.lane.b32.xlu0 %v455, 127
        %v585 = vpop.permute.xlu0 %584
        %586 = vrot.lane.b32.xlu0 %v456, 127
        %v587 = vpop.permute.xlu0 %586
        %588 = vrot.lane.b32.xlu0 %v457, 127
        %v589 = vpop.permute.xlu0 %588
        %590 = vrot.lane.b32.xlu0 %v458, 127
        %v591 = vpop.permute.xlu0 %590
        %592 = vrot.lane.b32.xlu0 %v459, 127
        %v593 = vpop.permute.xlu0 %592
        %594 = vrot.lane.b32.xlu0 %v460, 127
        %v595 = vpop.permute.xlu0 %594
        %596 = vrot.lane.b32.xlu0 %v461, 127
        %v597 = vpop.permute.xlu0 %596
        %598 = vrot.lane.b32.xlu0 %v462, 127
        %v599 = vpop.permute.xlu0 %598
        %600 = vrot.lane.b32.xlu0 %v463, 127
        %v601 = vpop.permute.xlu0 %600
        %602 = vrot.lane.b32.xlu0 %v464, 127
        %v603 = vpop.permute.xlu0 %602
        %604 = vrot.lane.b32.xlu0 %v465, 127
        %v605 = vpop.permute.xlu0 %604
        %606 = vrot.lane.b32.xlu0 %v466, 127
        %v607 = vpop.permute.xlu0 %606
        %608 = vrot.lane.b32.xlu0 %v467, 127
        %v609 = vpop.permute.xlu0 %608
        %610 = vrot.lane.b32.xlu0 %v468, 127
        %v611 = vpop.permute.xlu0 %610
        %612 = vrot.lane.b32.xlu0 %v469, 127
        %v613 = vpop.permute.xlu0 %612
        %614 = vrot.lane.b32.xlu0 %v470, 127
        %v615 = vpop.permute.xlu0 %614
        %616 = vrot.lane.b32.xlu0 %v471, 127
        %v617 = vpop.permute.xlu0 %616
        %618 = vrot.lane.b32.xlu0 %v472, 127
        %v619 = vpop.permute.xlu0 %618
        %620 = vrot.lane.b32.xlu0 %v473, 127
        %v621 = vpop.permute.xlu0 %620
        %622 = vrot.lane.b32.xlu0 %v474, 127
        %v623 = vpop.permute.xlu0 %622
        %624 = vrot.lane.b32.xlu0 %v475, 127
        %v625 = vpop.permute.xlu0 %624
        %626 = vrot.lane.b32.xlu0 %v476, 127
        %v627 = vpop.permute.xlu0 %626
        %628 = vrot.lane.b32.xlu0 %v477, 127
        %v629 = vpop.permute.xlu0 %628
        %630 = vrot.lane.b32.xlu0 %v478, 127
        %v631 = vpop.permute.xlu0 %630
        %632 = vrot.lane.b32.xlu0 %v479, 127
        %v633 = vpop.permute.xlu0 %632
        %634 = vrot.lane.b32.xlu0 %v480, 127
        %v635 = vpop.permute.xlu0 %634
        %636 = vrot.lane.b32.xlu0 %v481, 127
        %v637 = vpop.permute.xlu0 %636
        %638 = vrot.lane.b32.xlu0 %v482, 127
        %v639 = vpop.permute.xlu0 %638
        %640 = vrot.lane.b32.xlu0 %v483, 127
        %v641 = vpop.permute.xlu0 %640
        %642 = vrot.lane.b32.xlu0 %v484, 127
        %v643 = vpop.permute.xlu0 %642
        %644 = vrot.lane.b32.xlu0 %v485, 127
        %v645 = vpop.permute.xlu0 %644
        %646 = vrot.lane.b32.xlu0 %v486, 127
        %v647 = vpop.permute.xlu0 %646
        %648 = vrot.lane.b32.xlu0 %v487, 127
        %v649 = vpop.permute.xlu0 %648
        %650 = vrot.lane.b32.xlu0 %v488, 127
        %v651 = vpop.permute.xlu0 %650
        %652 = vrot.lane.b32.xlu0 %v489, 127
        %v653 = vpop.permute.xlu0 %652
        %654 = vrot.lane.b32.xlu0 %v490, 127
        %v655 = vpop.permute.xlu0 %654
        %656 = vrot.lane.b32.xlu0 %v491, 127
        %v657 = vpop.permute.xlu0 %656
        %658 = vrot.lane.b32.xlu0 %v492, 127
        %v659 = vpop.permute.xlu0 %658
        %660 = vrot.lane.b32.xlu0 %v493, 127
        %v661 = vpop.permute.xlu0 %660
        %v718 = vmax.f32 %v438, %v551
        %v719 = vmax.f32 %v439, %v553
        %v720 = vmax.f32 %v440, %v555
        %v721 = vmax.f32 %v441, %v557
        %v722 = vmax.f32 %v442, %v559
        %v723 = vmax.f32 %v443, %v561
        %v724 = vmax.f32 %v444, %v563
        %v725 = vmax.f32 %v445, %v565
        %v726 = vmax.f32 %v446, %v567
        %v727 = vmax.f32 %v447, %v569
        %v728 = vmax.f32 %v448, %v571
        %v729 = vmax.f32 %v449, %v573
        %v730 = vmax.f32 %v450, %v575
        %v731 = vmax.f32 %v451, %v577
        %v732 = vmax.f32 %v452, %v579
        %v733 = vmax.f32 %v453, %v581
        %v734 = vmax.f32 %v454, %v583
        %v735 = vmax.f32 %v455, %v585
        %v736 = vmax.f32 %v456, %v587
        %v737 = vmax.f32 %v457, %v589
        %v738 = vmax.f32 %v458, %v591
        %v739 = vmax.f32 %v459, %v593
        %v740 = vmax.f32 %v460, %v595
        %v741 = vmax.f32 %v461, %v597
        %v742 = vmax.f32 %v462, %v599
        %v743 = vmax.f32 %v463, %v601
        %v744 = vmax.f32 %v464, %v603
        %v745 = vmax.f32 %v465, %v605
        %v746 = vmax.f32 %v466, %v607
        %v747 = vmax.f32 %v467, %v609
        %v748 = vmax.f32 %v468, %v611
        %v749 = vmax.f32 %v469, %v613
        %v750 = vmax.f32 %v470, %v615
        %v751 = vmax.f32 %v471, %v617
        %v752 = vmax.f32 %v472, %v619
        %v753 = vmax.f32 %v473, %v621
        %v754 = vmax.f32 %v474, %v623
        %v755 = vmax.f32 %v475, %v625
        %v756 = vmax.f32 %v476, %v627
        %v757 = vmax.f32 %v477, %v629
        %v758 = vmax.f32 %v478, %v631
        %v759 = vmax.f32 %v479, %v633
        %v760 = vmax.f32 %v480, %v635
        %v761 = vmax.f32 %v481, %v637
        %v762 = vmax.f32 %v482, %v639
        %v763 = vmax.f32 %v483, %v641
        %v764 = vmax.f32 %v484, %v643
        %v765 = vmax.f32 %v485, %v645
        %v766 = vmax.f32 %v486, %v647
        %v767 = vmax.f32 %v487, %v649
        %v768 = vmax.f32 %v488, %v651
        %v769 = vmax.f32 %v489, %v653
        %v770 = vmax.f32 %v490, %v655
        %v771 = vmax.f32 %v491, %v657
        %v772 = vmax.f32 %v492, %v659
        %v773 = vmax.f32 %v493, %v661
        %v774 = vmin.f32 %v438, %v551
        %v775 = vmin.f32 %v439, %v553
        %v776 = vmin.f32 %v440, %v555
        %v777 = vmin.f32 %v441, %v557
        %v778 = vmin.f32 %v442, %v559
        %v779 = vmin.f32 %v443, %v561
        %v780 = vmin.f32 %v444, %v563
        %v781 = vmin.f32 %v445, %v565
        %v782 = vmin.f32 %v446, %v567
        %v783 = vmin.f32 %v447, %v569
        %v784 = vmin.f32 %v448, %v571
        %v785 = vmin.f32 %v449, %v573
        %v786 = vmin.f32 %v450, %v575
        %v787 = vmin.f32 %v451, %v577
        %v788 = vmin.f32 %v452, %v579
        %v789 = vmin.f32 %v453, %v581
        %v790 = vmin.f32 %v454, %v583
        %v791 = vmin.f32 %v455, %v585
        %v792 = vmin.f32 %v456, %v587
        %v793 = vmin.f32 %v457, %v589
        %v794 = vmin.f32 %v458, %v591
        %v795 = vmin.f32 %v459, %v593
        %v796 = vmin.f32 %v460, %v595
        %v797 = vmin.f32 %v461, %v597
        %v798 = vmin.f32 %v462, %v599
        %v799 = vmin.f32 %v463, %v601
        %v800 = vmin.f32 %v464, %v603
        %v801 = vmin.f32 %v465, %v605
        %v802 = vmin.f32 %v466, %v607
        %v803 = vmin.f32 %v467, %v609
        %v804 = vmin.f32 %v468, %v611
        %v805 = vmin.f32 %v469, %v613
        %v806 = vmin.f32 %v470, %v615
        %v807 = vmin.f32 %v471, %v617
        %v808 = vmin.f32 %v472, %v619
        %v809 = vmin.f32 %v473, %v621
        %v810 = vmin.f32 %v474, %v623
        %v811 = vmin.f32 %v475, %v625
        %v812 = vmin.f32 %v476, %v627
        %v813 = vmin.f32 %v477, %v629
        %v814 = vmin.f32 %v478, %v631
        %v815 = vmin.f32 %v479, %v633
        %v816 = vmin.f32 %v480, %v635
        %v817 = vmin.f32 %v481, %v637
        %v818 = vmin.f32 %v482, %v639
        %v819 = vmin.f32 %v483, %v641
        %v820 = vmin.f32 %v484, %v643
        %v821 = vmin.f32 %v485, %v645
        %v822 = vmin.f32 %v486, %v647
        %v823 = vmin.f32 %v487, %v649
        %v824 = vmin.f32 %v488, %v651
        %v825 = vmin.f32 %v489, %v653
        %v826 = vmin.f32 %v490, %v655
        %v827 = vmin.f32 %v491, %v657
        %v828 = vmin.f32 %v492, %v659
        %v829 = vmin.f32 %v493, %v661
        %v830 = vmax.f32 %v718, %v720
        %v831 = vmax.f32 %v719, %v721
        %v832 = vmax.f32 %v722, %v724
        %v833 = vmax.f32 %v723, %v725
        %v834 = vmax.f32 %v726, %v728
        %v835 = vmax.f32 %v727, %v729
        %v836 = vmax.f32 %v730, %v732
        %v837 = vmax.f32 %v731, %v733
        %v838 = vmax.f32 %v734, %v736
        %v839 = vmax.f32 %v735, %v737
        %v840 = vmax.f32 %v738, %v740
        %v841 = vmax.f32 %v739, %v741
        %v842 = vmax.f32 %v742, %v744
        %v843 = vmax.f32 %v743, %v745
        %v844 = vmax.f32 %v746, %v748
        %v845 = vmax.f32 %v747, %v749
        %v846 = vmax.f32 %v750, %v752
        %v847 = vmax.f32 %v751, %v753
        %v848 = vmax.f32 %v754, %v756
        %v849 = vmax.f32 %v755, %v757
        %v850 = vmax.f32 %v758, %v760
        %v851 = vmax.f32 %v759, %v761
        %v852 = vmax.f32 %v762, %v764
        %v853 = vmax.f32 %v763, %v765
        %v854 = vmax.f32 %v766, %v768
        %v855 = vmax.f32 %v767, %v769
        %v856 = vmax.f32 %v770, %v772
        %v857 = vmax.f32 %v771, %v773
        %v858 = vmin.f32 %v774, %v776
        %v859 = vmin.f32 %v775, %v777
        %v860 = vmin.f32 %v778, %v780
        %v861 = vmin.f32 %v779, %v781
        %v862 = vmin.f32 %v782, %v784
        %v863 = vmin.f32 %v783, %v785
        %v864 = vmin.f32 %v786, %v788
        %v865 = vmin.f32 %v787, %v789
        %v866 = vmin.f32 %v790, %v792
        %v867 = vmin.f32 %v791, %v793
        %v868 = vmin.f32 %v794, %v796
        %v869 = vmin.f32 %v795, %v797
        %v870 = vmin.f32 %v798, %v800
        %v871 = vmin.f32 %v799, %v801
        %v872 = vmin.f32 %v802, %v804
        %v873 = vmin.f32 %v803, %v805
        %v874 = vmin.f32 %v806, %v808
        %v875 = vmin.f32 %v807, %v809
        %v876 = vmin.f32 %v810, %v812
        %v877 = vmin.f32 %v811, %v813
        %v878 = vmin.f32 %v814, %v816
        %v879 = vmin.f32 %v815, %v817
        %v880 = vmin.f32 %v818, %v820
        %v881 = vmin.f32 %v819, %v821
        %v882 = vmin.f32 %v822, %v824
        %v883 = vmin.f32 %v823, %v825
        %v884 = vmin.f32 %v826, %v828
        %v885 = vmin.f32 %v827, %v829
        %v886 = vld [vmem:[%s1] sm:$0x1]
        %888 = vset.pattern.permute.xlu0 0
        %889 = vperm.xlu0 %888, %v830
        %v890 = vpop.permute.xlu0 %889
        %893 = vset.pattern.permute.xlu0 0
        %894 = vperm.xlu0 %893, %v831
        %v895 = vpop.permute.xlu0 %894
        %898 = vset.pattern.permute.xlu0 0
        %899 = vperm.xlu0 %898, %v832
        %v900 = vpop.permute.xlu0 %899
        %903 = vset.pattern.permute.xlu0 0
        %904 = vperm.xlu0 %903, %v833
        %v905 = vpop.permute.xlu0 %904
        %908 = vset.pattern.permute.xlu0 0
        %909 = vperm.xlu0 %908, %v834
        %v910 = vpop.permute.xlu0 %909
        %913 = vset.pattern.permute.xlu0 0
        %914 = vperm.xlu0 %913, %v835
        %v915 = vpop.permute.xlu0 %914
        %918 = vset.pattern.permute.xlu0 0
        %919 = vperm.xlu0 %918, %v836
        %v920 = vpop.permute.xlu0 %919
        %923 = vset.pattern.permute.xlu0 0
        %924 = vperm.xlu0 %923, %v837
        %v925 = vpop.permute.xlu0 %924
        %928 = vset.pattern.permute.xlu0 0
        %929 = vperm.xlu0 %928, %v838
        %v930 = vpop.permute.xlu0 %929
        %933 = vset.pattern.permute.xlu0 0
        %934 = vperm.xlu0 %933, %v839
        %v935 = vpop.permute.xlu0 %934
        %938 = vset.pattern.permute.xlu0 0
        %939 = vperm.xlu0 %938, %v840
        %v940 = vpop.permute.xlu0 %939
        %943 = vset.pattern.permute.xlu0 0
        %944 = vperm.xlu0 %943, %v841
        %v945 = vpop.permute.xlu0 %944
        %948 = vset.pattern.permute.xlu0 0
        %949 = vperm.xlu0 %948, %v842
        %v950 = vpop.permute.xlu0 %949
        %953 = vset.pattern.permute.xlu0 0
        %954 = vperm.xlu0 %953, %v843
        %v955 = vpop.permute.xlu0 %954
        %958 = vset.pattern.permute.xlu0 0
        %959 = vperm.xlu0 %958, %v844
        %v960 = vpop.permute.xlu0 %959
        %963 = vset.pattern.permute.xlu0 0
        %964 = vperm.xlu0 %963, %v845
        %v965 = vpop.permute.xlu0 %964
        %968 = vset.pattern.permute.xlu0 0
        %969 = vperm.xlu0 %968, %v846
        %v970 = vpop.permute.xlu0 %969
        %973 = vset.pattern.permute.xlu0 0
        %974 = vperm.xlu0 %973, %v847
        %v975 = vpop.permute.xlu0 %974
        %978 = vset.pattern.permute.xlu0 0
        %979 = vperm.xlu0 %978, %v848
        %v980 = vpop.permute.xlu0 %979
        %983 = vset.pattern.permute.xlu0 0
        %984 = vperm.xlu0 %983, %v849
        %v985 = vpop.permute.xlu0 %984
        %988 = vset.pattern.permute.xlu0 0
        %989 = vperm.xlu0 %988, %v850
        %v990 = vpop.permute.xlu0 %989
        %993 = vset.pattern.permute.xlu0 0
        %994 = vperm.xlu0 %993, %v851
        %v995 = vpop.permute.xlu0 %994
        %998 = vset.pattern.permute.xlu0 0
        %999 = vperm.xlu0 %998, %v852
        %v1000 = vpop.permute.xlu0 %999
        %1003 = vset.pattern.permute.xlu0 0
        %1004 = vperm.xlu0 %1003, %v853
        %v1005 = vpop.permute.xlu0 %1004
        %1008 = vset.pattern.permute.xlu0 0
        %1009 = vperm.xlu0 %1008, %v854
        %v1010 = vpop.permute.xlu0 %1009
        %1013 = vset.pattern.permute.xlu0 0
        %1014 = vperm.xlu0 %1013, %v855
        %v1015 = vpop.permute.xlu0 %1014
        %1018 = vset.pattern.permute.xlu0 0
        %1019 = vperm.xlu0 %1018, %v856
        %v1020 = vpop.permute.xlu0 %1019
        %1023 = vset.pattern.permute.xlu0 0
        %1024 = vperm.xlu0 %1023, %v857
        %v1025 = vpop.permute.xlu0 %1024
        %v1028 = vlaneseq
        %v1029 = vshrl.u32 %v1028, 7
        %v1030 = vsub.s32 0, %v1029
        %v1031 = vrot.slane %v886, %v1030
        %v1033 = vmul.f32 %v890, %v1031
        %v1034 = vmul.f32 %v895, %v1031
        %v1035 = vmul.f32 %v900, %v1031
        %v1036 = vmul.f32 %v905, %v1031
        %v1037 = vmul.f32 %v910, %v1031
        %v1038 = vmul.f32 %v915, %v1031
        %v1039 = vmul.f32 %v920, %v1031
        %v1040 = vmul.f32 %v925, %v1031
        %v1041 = vmul.f32 %v930, %v1031
        %v1042 = vmul.f32 %v935, %v1031
        %v1043 = vmul.f32 %v940, %v1031
        %v1044 = vmul.f32 %v945, %v1031
        %v1045 = vmul.f32 %v950, %v1031
        %v1046 = vmul.f32 %v955, %v1031
        %v1047 = vmul.f32 %v960, %v1031
        %v1048 = vmul.f32 %v965, %v1031
        %v1049 = vmul.f32 %v970, %v1031
        %v1050 = vmul.f32 %v975, %v1031
        %v1051 = vmul.f32 %v980, %v1031
        %v1052 = vmul.f32 %v985, %v1031
        %v1053 = vmul.f32 %v990, %v1031
        %v1054 = vmul.f32 %v995, %v1031
        %v1055 = vmul.f32 %v1000, %v1031
        %v1056 = vmul.f32 %v1005, %v1031
        %v1057 = vmul.f32 %v1010, %v1031
        %v1058 = vmul.f32 %v1015, %v1031
        %v1059 = vmul.f32 %v1020, %v1031
        %v1060 = vmul.f32 %v1025, %v1031
        %1062 = vset.pattern.permute.xlu0 0
        %1063 = vperm.xlu0 %1062, %v858
        %v1064 = vpop.permute.xlu0 %1063
        %1067 = vset.pattern.permute.xlu0 0
        %1068 = vperm.xlu0 %1067, %v859
        %v1069 = vpop.permute.xlu0 %1068
        %1072 = vset.pattern.permute.xlu0 0
        %1073 = vperm.xlu0 %1072, %v860
        %v1074 = vpop.permute.xlu0 %1073
        %1077 = vset.pattern.permute.xlu0 0
        %1078 = vperm.xlu0 %1077, %v861
        %v1079 = vpop.permute.xlu0 %1078
        %1082 = vset.pattern.permute.xlu0 0
        %1083 = vperm.xlu0 %1082, %v862
        %v1084 = vpop.permute.xlu0 %1083
        %1087 = vset.pattern.permute.xlu0 0
        %1088 = vperm.xlu0 %1087, %v863
        %v1089 = vpop.permute.xlu0 %1088
        %1092 = vset.pattern.permute.xlu0 0
        %1093 = vperm.xlu0 %1092, %v864
        %v1094 = vpop.permute.xlu0 %1093
        %1097 = vset.pattern.permute.xlu0 0
        %1098 = vperm.xlu0 %1097, %v865
        %v1099 = vpop.permute.xlu0 %1098
        %1102 = vset.pattern.permute.xlu0 0
        %1103 = vperm.xlu0 %1102, %v866
        %v1104 = vpop.permute.xlu0 %1103
        %1107 = vset.pattern.permute.xlu0 0
        %1108 = vperm.xlu0 %1107, %v867
        %v1109 = vpop.permute.xlu0 %1108
        %1112 = vset.pattern.permute.xlu0 0
        %1113 = vperm.xlu0 %1112, %v868
        %v1114 = vpop.permute.xlu0 %1113
        %1117 = vset.pattern.permute.xlu0 0
        %1118 = vperm.xlu0 %1117, %v869
        %v1119 = vpop.permute.xlu0 %1118
        %1122 = vset.pattern.permute.xlu0 0
        %1123 = vperm.xlu0 %1122, %v870
        %v1124 = vpop.permute.xlu0 %1123
        %1127 = vset.pattern.permute.xlu0 0
        %1128 = vperm.xlu0 %1127, %v871
        %v1129 = vpop.permute.xlu0 %1128
        %1132 = vset.pattern.permute.xlu0 0
        %1133 = vperm.xlu0 %1132, %v872
        %v1134 = vpop.permute.xlu0 %1133
        %1137 = vset.pattern.permute.xlu0 0
        %1138 = vperm.xlu0 %1137, %v873
        %v1139 = vpop.permute.xlu0 %1138
        %1142 = vset.pattern.permute.xlu0 0
        %1143 = vperm.xlu0 %1142, %v874
        %v1144 = vpop.permute.xlu0 %1143
        %1147 = vset.pattern.permute.xlu0 0
        %1148 = vperm.xlu0 %1147, %v875
        %v1149 = vpop.permute.xlu0 %1148
        %1152 = vset.pattern.permute.xlu0 0
        %1153 = vperm.xlu0 %1152, %v876
        %v1154 = vpop.permute.xlu0 %1153
        %1157 = vset.pattern.permute.xlu0 0
        %1158 = vperm.xlu0 %1157, %v877
        %v1159 = vpop.permute.xlu0 %1158
        %1162 = vset.pattern.permute.xlu0 0
        %1163 = vperm.xlu0 %1162, %v878
        %v1164 = vpop.permute.xlu0 %1163
        %1167 = vset.pattern.permute.xlu0 0
        %1168 = vperm.xlu0 %1167, %v879
        %v1169 = vpop.permute.xlu0 %1168
        %1172 = vset.pattern.permute.xlu0 0
        %1173 = vperm.xlu0 %1172, %v880
        %v1174 = vpop.permute.xlu0 %1173
        %1177 = vset.pattern.permute.xlu0 0
        %1178 = vperm.xlu0 %1177, %v881
        %v1179 = vpop.permute.xlu0 %1178
        %1182 = vset.pattern.permute.xlu0 0
        %1183 = vperm.xlu0 %1182, %v882
        %v1184 = vpop.permute.xlu0 %1183
        %1187 = vset.pattern.permute.xlu0 0
        %1188 = vperm.xlu0 %1187, %v883
        %v1189 = vpop.permute.xlu0 %1188
        %1192 = vset.pattern.permute.xlu0 0
        %1193 = vperm.xlu0 %1192, %v884
        %v1194 = vpop.permute.xlu0 %1193
        %1197 = vset.pattern.permute.xlu0 0
        %1198 = vperm.xlu0 %1197, %v885
        %v1199 = vpop.permute.xlu0 %1198
        %v1201 = vmul.f32 %v1064, %v1031
        %v1202 = vmul.f32 %v1069, %v1031
        %v1203 = vmul.f32 %v1074, %v1031
        %v1204 = vmul.f32 %v1079, %v1031
        %v1205 = vmul.f32 %v1084, %v1031
        %v1206 = vmul.f32 %v1089, %v1031
        %v1207 = vmul.f32 %v1094, %v1031
        %v1208 = vmul.f32 %v1099, %v1031
        %v1209 = vmul.f32 %v1104, %v1031
        %v1210 = vmul.f32 %v1109, %v1031
        %v1211 = vmul.f32 %v1114, %v1031
        %v1212 = vmul.f32 %v1119, %v1031
        %v1213 = vmul.f32 %v1124, %v1031
        %v1214 = vmul.f32 %v1129, %v1031
        %v1215 = vmul.f32 %v1134, %v1031
        %v1216 = vmul.f32 %v1139, %v1031
        %v1217 = vmul.f32 %v1144, %v1031
        %v1218 = vmul.f32 %v1149, %v1031
        %v1219 = vmul.f32 %v1154, %v1031
        %v1220 = vmul.f32 %v1159, %v1031
        %v1221 = vmul.f32 %v1164, %v1031
        %v1222 = vmul.f32 %v1169, %v1031
        %v1223 = vmul.f32 %v1174, %v1031
        %v1224 = vmul.f32 %v1179, %v1031
        %v1225 = vmul.f32 %v1184, %v1031
        %v1226 = vmul.f32 %v1189, %v1031
        %v1227 = vmul.f32 %v1194, %v1031
        %v1228 = vmul.f32 %v1199, %v1031
        %v1229 = vmax.f32 %v1033, %v1201
        %v1230 = vmax.f32 %v1034, %v1202
        %v1231 = vmax.f32 %v1035, %v1203
        %v1232 = vmax.f32 %v1036, %v1204
        %v1233 = vmax.f32 %v1037, %v1205
        %v1234 = vmax.f32 %v1038, %v1206
        %v1235 = vmax.f32 %v1039, %v1207
        %v1236 = vmax.f32 %v1040, %v1208
        %v1237 = vmax.f32 %v1041, %v1209
        %v1238 = vmax.f32 %v1042, %v1210
        %v1239 = vmax.f32 %v1043, %v1211
        %v1240 = vmax.f32 %v1044, %v1212
        %v1241 = vmax.f32 %v1045, %v1213
        %v1242 = vmax.f32 %v1046, %v1214
        %v1243 = vmax.f32 %v1047, %v1215
        %v1244 = vmax.f32 %v1048, %v1216
        %v1245 = vmax.f32 %v1049, %v1217
        %v1246 = vmax.f32 %v1050, %v1218
        %v1247 = vmax.f32 %v1051, %v1219
        %v1248 = vmax.f32 %v1052, %v1220
        %v1249 = vmax.f32 %v1053, %v1221
        %v1250 = vmax.f32 %v1054, %v1222
        %v1251 = vmax.f32 %v1055, %v1223
        %v1252 = vmax.f32 %v1056, %v1224
        %v1253 = vmax.f32 %v1057, %v1225
        %v1254 = vmax.f32 %v1058, %v1226
        %v1255 = vmax.f32 %v1059, %v1227
        %v1256 = vmax.f32 %v1060, %v1228
        %v1257 = vld [vmem:[%s2] sm:$0x1]
        %v1259 = vlaneseq
        %v1260 = vshrl.u32 %v1259, 7
        %v1261 = vsub.s32 0, %v1260
        %v1262 = vrot.slane %v1257, %v1261
        %v1264 = vadd.f32 %v1229, %v1262
        %v1265 = vadd.f32 %v1230, %v1262
        %v1266 = vadd.f32 %v1231, %v1262
        %v1267 = vadd.f32 %v1232, %v1262
        %v1268 = vadd.f32 %v1233, %v1262
        %v1269 = vadd.f32 %v1234, %v1262
        %v1270 = vadd.f32 %v1235, %v1262
        %v1271 = vadd.f32 %v1236, %v1262
        %v1272 = vadd.f32 %v1237, %v1262
        %v1273 = vadd.f32 %v1238, %v1262
        %v1274 = vadd.f32 %v1239, %v1262
        %v1275 = vadd.f32 %v1240, %v1262
        %v1276 = vadd.f32 %v1241, %v1262
        %v1277 = vadd.f32 %v1242, %v1262
        %v1278 = vadd.f32 %v1243, %v1262
        %v1279 = vadd.f32 %v1244, %v1262
        %v1280 = vadd.f32 %v1245, %v1262
        %v1281 = vadd.f32 %v1246, %v1262
        %v1282 = vadd.f32 %v1247, %v1262
        %v1283 = vadd.f32 %v1248, %v1262
        %v1284 = vadd.f32 %v1249, %v1262
        %v1285 = vadd.f32 %v1250, %v1262
        %v1286 = vadd.f32 %v1251, %v1262
        %v1287 = vadd.f32 %v1252, %v1262
        %v1288 = vadd.f32 %v1253, %v1262
        %v1289 = vadd.f32 %v1254, %v1262
        %v1290 = vadd.f32 %v1255, %v1262
        %v1291 = vadd.f32 %v1256, %v1262
        %v1292 = vmax.f32 %v1264, 0.0
        %v1293 = vmax.f32 %v1265, 0.0
        %v1294 = vmax.f32 %v1266, 0.0
        %v1295 = vmax.f32 %v1267, 0.0
        %v1296 = vmax.f32 %v1268, 0.0
        %v1297 = vmax.f32 %v1269, 0.0
        %v1298 = vmax.f32 %v1270, 0.0
        %v1299 = vmax.f32 %v1271, 0.0
        %v1300 = vmax.f32 %v1272, 0.0
        %v1301 = vmax.f32 %v1273, 0.0
        %v1302 = vmax.f32 %v1274, 0.0
        %v1303 = vmax.f32 %v1275, 0.0
        %v1304 = vmax.f32 %v1276, 0.0
        %v1305 = vmax.f32 %v1277, 0.0
        %v1306 = vmax.f32 %v1278, 0.0
        %v1307 = vmax.f32 %v1279, 0.0
        %v1308 = vmax.f32 %v1280, 0.0
        %v1309 = vmax.f32 %v1281, 0.0
        %v1310 = vmax.f32 %v1282, 0.0
        %v1311 = vmax.f32 %v1283, 0.0
        %v1312 = vmax.f32 %v1284, 0.0
        %v1313 = vmax.f32 %v1285, 0.0
        %v1314 = vmax.f32 %v1286, 0.0
        %v1315 = vmax.f32 %v1287, 0.0
        %v1316 = vmax.f32 %v1288, 0.0
        %v1317 = vmax.f32 %v1289, 0.0
        %v1318 = vmax.f32 %v1290, 0.0
        %v1319 = vmax.f32 %v1291, 0.0
        %v1320 = vld [vmem:[%s3] sm:$0xff]
        %v1321 = vld [vmem:[%s3 + $0x8] sm:$0xff]
        %v1322 = vld [vmem:[%s3 + $0x10] sm:$0xff]
        %v1323 = vld [vmem:[%s3 + $0x18] sm:$0xff]
        %v1324 = vld [vmem:[%s3 + $0x20] sm:$0xff]
        %v1325 = vld [vmem:[%s3 + $0x28] sm:$0xff]
        %vm1326 = vcmask 195584
        %v1328 = vsel %vm1326, %v1292, 0
        %v1331 = vsel %vm1326, %v1293, 0
        %v1334 = vsel %vm1326, %v1294, 0
        %v1337 = vsel %vm1326, %v1295, 0
        %v1340 = vsel %vm1326, %v1296, 0
        %v1343 = vsel %vm1326, %v1297, 0
        %v1346 = vsel %vm1326, %v1298, 0
        %v1349 = vsel %vm1326, %v1299, 0
        %v1352 = vsel %vm1326, %v1300, 0
        %v1355 = vsel %vm1326, %v1301, 0
        %v1358 = vsel %vm1326, %v1302, 0
        %v1361 = vsel %vm1326, %v1303, 0
        %v1364 = vsel %vm1326, %v1304, 0
        %v1367 = vsel %vm1326, %v1305, 0
        %v1370 = vsel %vm1326, %v1306, 0
        %v1373 = vsel %vm1326, %v1307, 0
        %v1376 = vsel %vm1326, %v1308, 0
        %v1379 = vsel %vm1326, %v1309, 0
        %v1382 = vsel %vm1326, %v1310, 0
        %v1385 = vsel %vm1326, %v1311, 0
        %v1388 = vsel %vm1326, %v1312, 0
        %v1391 = vsel %vm1326, %v1313, 0
        %v1394 = vsel %vm1326, %v1314, 0
        %v1397 = vsel %vm1326, %v1315, 0
        %v1400 = vsel %vm1326, %v1316, 0
        %v1403 = vsel %vm1326, %v1317, 0
        %v1406 = vsel %vm1326, %v1318, 0
        %v1409 = vsel %vm1326, %v1319, 0
        %1411 = vmatprep.subr.mxu0 %v1321
        %1412 = vmatpush1.msra.mxu0 %v1320
        %1413 = vmatprep.subr.mxu0 %v1323
        %1414 = vmatpush1.msra.mxu0 %v1322
        %1415 = vmatprep.subr.mxu0 %v1325
        %1416 = vmatpush1.msra.mxu0 %v1324
        %1417 = vmatprep.subr.mxu0 0.0
        %1418 = vmatpush1.msra.mxu0 0.0
        %1419 = vmatprep.subr.mxu0 0.0
        %1420 = vmatpush1.msra.mxu0 0.0
        %1421 = vmatprep.subr.mxu0 0.0
        %1422 = vmatpush1.msra.mxu0 0.0
        %1423 = vmatprep.subr.mxu0 0.0
        %1424 = vmatpush1.msra.mxu0 0.0
        %1425 = vmatprep.subr.mxu0 0.0
        %1426 = vmatpush1.msra.mxu0 0.0
        %1427 = vmatprep.subr.mxu0 0.0
        %1428 = vmatpush1.msra.mxu0 0.0
        %1429 = vmatprep.subr.mxu0 0.0
        %1430 = vmatpush1.msra.mxu0 0.0
        %1431 = vmatprep.subr.mxu0 0.0
        %1432 = vmatpush1.msra.mxu0 0.0
        %1433 = vmatprep.subr.mxu0 0.0
        %1434 = vmatpush1.msra.mxu0 0.0
        %1435 = vmatprep.subr.mxu0 0.0
        %1436 = vmatpush1.msra.mxu0 0.0
        %1437 = vmatprep.subr.mxu0 0.0
        %1438 = vmatpush1.msra.mxu0 0.0
        %1439 = vmatprep.subr.mxu0 0.0
        %1440 = vmatpush1.msra.mxu0 0.0
        %1441 = vmatprep.subr.mxu0 0.0
        %1442 = vmatpush1.msra.mxu0 0.0
        %1443 = vmatprep.subr.mxu0 0.0
        %1444 = vmatpush1.msra.mxu0 0.0
        %1445 = vmatprep.subr.mxu0 0.0
        %1446 = vmatpush1.msra.mxu0 0.0
        %1447 = vmatprep.subr.mxu0 0.0
        %1448 = vmatpush1.msra.mxu0 0.0
        %1449 = vmatprep.subr.mxu0 0.0
        %1450 = vmatpush1.msra.mxu0 0.0
        %1451 = vmatprep.subr.mxu0 0.0
        %1452 = vmatpush1.msra.mxu0 0.0
        %1453 = vmatprep.subr.mxu0 0.0
        %1454 = vmatpush1.msra.mxu0 0.0
        %1455 = vmatprep.subr.mxu0 0.0
        %1456 = vmatpush1.msra.mxu0 0.0
        %1457 = vmatprep.subr.mxu0 0.0
        %1458 = vmatpush1.msra.mxu0 0.0
        %1459 = vmatprep.subr.mxu0 0.0
        %1460 = vmatpush1.msra.mxu0 0.0
        %1461 = vmatprep.subr.mxu0 0.0
        %1462 = vmatpush1.msra.mxu0 0.0
        %1463 = vmatprep.subr.mxu0 0.0
        %1464 = vmatpush1.msra.mxu0 0.0
        %1465 = vmatprep.subr.mxu0 0.0
        %1466 = vmatpush1.msra.mxu0 0.0
        %1467 = vmatprep.subr.mxu0 0.0
        %1468 = vmatpush1.msra.mxu0 0.0
        %1469 = vmatprep.subr.mxu0 0.0
        %1470 = vmatpush1.msra.mxu0 0.0
        %1471 = vmatprep.subr.mxu0 0.0
        %1472 = vmatpush1.msra.mxu0 0.0
        %1473 = vmatprep.subr.mxu0 0.0
        %1474 = vmatpush1.msra.mxu0 0.0
        %1475 = vmatprep.mubr.f32.mxu0 0.0
        %1476 = vmatmul.mubr.f32.gmra.mrb[0].mxu0 %v1328
        %v1477 = vpop.f32.mrb[0].mxu0
        %v1478 = vadd.f32 0.0, %v1477
        %v1479 = vpop.f32.mrb[0].mxu0
        %v1480 = vadd.f32 0.0, %v1479
        %1481 = vmatprep.mubr.f32.mxu0 0.0
        %1482 = vmatmul.mubr.f32.gmra.mrb[0].mxu0 %v1331
        %v1483 = vpop.f32.mrb[0].mxu0
        %v1484 = vadd.f32 0.0, %v1483
        %v1485 = vpop.f32.mrb[0].mxu0
        %v1486 = vadd.f32 0.0, %v1485
        %1487 = vmatprep.mubr.f32.mxu0 0.0
        %1488 = vmatmul.mubr.f32.gmra.mrb[0].mxu0 %v1334
        %v1489 = vpop.f32.mrb[0].mxu0
        %v1490 = vadd.f32 0.0, %v1489
        %v1491 = vpop.f32.mrb[0].mxu0
        %v1492 = vadd.f32 0.0, %v1491
        %1493 = vmatprep.mubr.f32.mxu0 0.0
        %1494 = vmatmul.mubr.f32.gmra.mrb[0].mxu0 %v1337
        %v1495 = vpop.f32.mrb[0].mxu0
        %v1496 = vadd.f32 0.0, %v1495
        %v1497 = vpop.f32.mrb[0].mxu0
        %v1498 = vadd.f32 0.0, %v1497
        %1499 = vmatprep.mubr.f32.mxu0 0.0
        %1500 = vmatmul.mubr.f32.gmra.mrb[0].mxu0 %v1340
        %v1501 = vpop.f32.mrb[0].mxu0
        %v1502 = vadd.f32 0.0, %v1501
        %v1503 = vpop.f32.mrb[0].mxu0
        %v1504 = vadd.f32 0.0, %v1503
        %1505 = vmatprep.mubr.f32.mxu0 0.0
        %1506 = vmatmul.mubr.f32.gmra.mrb[0].mxu0 %v1343
        %v1507 = vpop.f32.mrb[0].mxu0
        %v1508 = vadd.f32 0.0, %v1507
        %v1509 = vpop.f32.mrb[0].mxu0
        %v1510 = vadd.f32 0.0, %v1509
        %1511 = vmatprep.mubr.f32.mxu0 0.0
        %1512 = vmatmul.mubr.f32.gmra.mrb[0].mxu0 %v1346
        %v1513 = vpop.f32.mrb[0].mxu0
        %v1514 = vadd.f32 0.0, %v1513
        %v1515 = vpop.f32.mrb[0].mxu0
        %v1516 = vadd.f32 0.0, %v1515
        %1517 = vmatprep.mubr.f32.mxu0 0.0
        %1518 = vmatmul.mubr.f32.gmra.mrb[0].mxu0 %v1349
        %v1519 = vpop.f32.mrb[0].mxu0
        %v1520 = vadd.f32 0.0, %v1519
        %v1521 = vpop.f32.mrb[0].mxu0
        %v1522 = vadd.f32 0.0, %v1521
        %1523 = vmatprep.mubr.f32.mxu0 0.0
        %1524 = vmatmul.mubr.f32.gmra.mrb[0].mxu0 %v1352
        %v1525 = vpop.f32.mrb[0].mxu0
        %v1526 = vadd.f32 0.0, %v1525
        %v1527 = vpop.f32.mrb[0].mxu0
        %v1528 = vadd.f32 0.0, %v1527
        %1529 = vmatprep.mubr.f32.mxu0 0.0
        %1530 = vmatmul.mubr.f32.gmra.mrb[0].mxu0 %v1355
        %v1531 = vpop.f32.mrb[0].mxu0
        %v1532 = vadd.f32 0.0, %v1531
        %v1533 = vpop.f32.mrb[0].mxu0
        %v1534 = vadd.f32 0.0, %v1533
        %1535 = vmatprep.mubr.f32.mxu0 0.0
        %1536 = vmatmul.mubr.f32.gmra.mrb[0].mxu0 %v1358
        %v1537 = vpop.f32.mrb[0].mxu0
        %v1538 = vadd.f32 0.0, %v1537
        %v1539 = vpop.f32.mrb[0].mxu0
        %v1540 = vadd.f32 0.0, %v1539
        %1541 = vmatprep.mubr.f32.mxu0 0.0
        %1542 = vmatmul.mubr.f32.gmra.mrb[0].mxu0 %v1361
        %v1543 = vpop.f32.mrb[0].mxu0
        %v1544 = vadd.f32 0.0, %v1543
        %v1545 = vpop.f32.mrb[0].mxu0
        %v1546 = vadd.f32 0.0, %v1545
        %1547 = vmatprep.mubr.f32.mxu0 0.0
        %1548 = vmatmul.mubr.f32.gmra.mrb[0].mxu0 %v1364
        %v1549 = vpop.f32.mrb[0].mxu0
        %v1550 = vadd.f32 0.0, %v1549
        %v1551 = vpop.f32.mrb[0].mxu0
        %v1552 = vadd.f32 0.0, %v1551
        %1553 = vmatprep.mubr.f32.mxu0 0.0
        %1554 = vmatmul.mubr.f32.gmra.mrb[0].mxu0 %v1367
        %v1555 = vpop.f32.mrb[0].mxu0
        %v1556 = vadd.f32 0.0, %v1555
        %v1557 = vpop.f32.mrb[0].mxu0
        %v1558 = vadd.f32 0.0, %v1557
        %1559 = vmatprep.mubr.f32.mxu0 0.0
        %1560 = vmatmul.mubr.f32.gmra.mrb[0].mxu0 %v1370
        %v1561 = vpop.f32.mrb[0].mxu0
        %v1562 = vadd.f32 0.0, %v1561
        %v1563 = vpop.f32.mrb[0].mxu0
        %v1564 = vadd.f32 0.0, %v1563
        %1565 = vmatprep.mubr.f32.mxu0 0.0
        %1566 = vmatmul.mubr.f32.gmra.mrb[0].mxu0 %v1373
        %v1567 = vpop.f32.mrb[0].mxu0
        %v1568 = vadd.f32 0.0, %v1567
        %v1569 = vpop.f32.mrb[0].mxu0
        %v1570 = vadd.f32 0.0, %v1569
        %1571 = vmatprep.mubr.f32.mxu0 0.0
        %1572 = vmatmul.mubr.f32.gmra.mrb[0].mxu0 %v1376
        %v1573 = vpop.f32.mrb[0].mxu0
        %v1574 = vadd.f32 0.0, %v1573
        %v1575 = vpop.f32.mrb[0].mxu0
        %v1576 = vadd.f32 0.0, %v1575
        %1577 = vmatprep.mubr.f32.mxu0 0.0
        %1578 = vmatmul.mubr.f32.gmra.mrb[0].mxu0 %v1379
        %v1579 = vpop.f32.mrb[0].mxu0
        %v1580 = vadd.f32 0.0, %v1579
        %v1581 = vpop.f32.mrb[0].mxu0
        %v1582 = vadd.f32 0.0, %v1581
        %1583 = vmatprep.mubr.f32.mxu0 0.0
        %1584 = vmatmul.mubr.f32.gmra.mrb[0].mxu0 %v1382
        %v1585 = vpop.f32.mrb[0].mxu0
        %v1586 = vadd.f32 0.0, %v1585
        %v1587 = vpop.f32.mrb[0].mxu0
        %v1588 = vadd.f32 0.0, %v1587
        %1589 = vmatprep.mubr.f32.mxu0 0.0
        %1590 = vmatmul.mubr.f32.gmra.mrb[0].mxu0 %v1385
        %v1591 = vpop.f32.mrb[0].mxu0
        %v1592 = vadd.f32 0.0, %v1591
        %v1593 = vpop.f32.mrb[0].mxu0
        %v1594 = vadd.f32 0.0, %v1593
        %1595 = vmatprep.mubr.f32.mxu0 0.0
        %1596 = vmatmul.mubr.f32.gmra.mrb[0].mxu0 %v1388
        %v1597 = vpop.f32.mrb[0].mxu0
        %v1598 = vadd.f32 0.0, %v1597
        %v1599 = vpop.f32.mrb[0].mxu0
        %v1600 = vadd.f32 0.0, %v1599
        %1601 = vmatprep.mubr.f32.mxu0 0.0
        %1602 = vmatmul.mubr.f32.gmra.mrb[0].mxu0 %v1391
        %v1603 = vpop.f32.mrb[0].mxu0
        %v1604 = vadd.f32 0.0, %v1603
        %v1605 = vpop.f32.mrb[0].mxu0
        %v1606 = vadd.f32 0.0, %v1605
        %1607 = vmatprep.mubr.f32.mxu0 0.0
        %1608 = vmatmul.mubr.f32.gmra.mrb[0].mxu0 %v1394
        %v1609 = vpop.f32.mrb[0].mxu0
        %v1610 = vadd.f32 0.0, %v1609
        %v1611 = vpop.f32.mrb[0].mxu0
        %v1612 = vadd.f32 0.0, %v1611
        %1613 = vmatprep.mubr.f32.mxu0 0.0
        %1614 = vmatmul.mubr.f32.gmra.mrb[0].mxu0 %v1397
        %v1615 = vpop.f32.mrb[0].mxu0
        %v1616 = vadd.f32 0.0, %v1615
        %v1617 = vpop.f32.mrb[0].mxu0
        %v1618 = vadd.f32 0.0, %v1617
        %1619 = vmatprep.mubr.f32.mxu0 0.0
        %1620 = vmatmul.mubr.f32.gmra.mrb[0].mxu0 %v1400
        %v1621 = vpop.f32.mrb[0].mxu0
        %v1622 = vadd.f32 0.0, %v1621
        %v1623 = vpop.f32.mrb[0].mxu0
        %v1624 = vadd.f32 0.0, %v1623
        %1625 = vmatprep.mubr.f32.mxu0 0.0
        %1626 = vmatmul.mubr.f32.gmra.mrb[0].mxu0 %v1403
        %v1627 = vpop.f32.mrb[0].mxu0
        %v1628 = vadd.f32 0.0, %v1627
        %v1629 = vpop.f32.mrb[0].mxu0
        %v1630 = vadd.f32 0.0, %v1629
        %1631 = vmatprep.mubr.f32.mxu0 0.0
        %1632 = vmatmul.mubr.f32.gmra.mrb[0].mxu0 %v1406
        %v1633 = vpop.f32.mrb[0].mxu0
        %v1634 = vadd.f32 0.0, %v1633
        %v1635 = vpop.f32.mrb[0].mxu0
        %v1636 = vadd.f32 0.0, %v1635
        %1637 = vmatprep.mubr.f32.mxu0 0.0
        %1638 = vmatmul.mubr.f32.gmra.mrb[0].mxu0 %v1409
        %v1639 = vpop.f32.mrb[0].mxu0
        %v1640 = vadd.f32 0.0, %v1639
        %v1641 = vpop.f32.mrb[0].mxu0
        %v1642 = vadd.f32 0.0, %v1641
        %1643 = vdwg.mxu0
        %1644 = vst [vmem:[#allocation2] sm:$0xff] %v1478
        %vm1645 = vcmask 130048
        %1646 = vst.msk [vmem:[#allocation2 + $0x8] sm:$0xff] %vm1645, %v1480
        %1647 = vst [vmem:[#allocation2 + $0x10] sm:$0xff] %v1484
        %1648 = vst.msk [vmem:[#allocation2 + $0x18] sm:$0xff] %vm1645, %v1486
        %1649 = vst [vmem:[#allocation2 + $0x20] sm:$0xff] %v1490
        %1650 = vst.msk [vmem:[#allocation2 + $0x28] sm:$0xff] %vm1645, %v1492
        %1651 = vst [vmem:[#allocation2 + $0x30] sm:$0xff] %v1496
        %1652 = vst.msk [vmem:[#allocation2 + $0x38] sm:$0xff] %vm1645, %v1498
        %1653 = vst [vmem:[#allocation2 + $0x40] sm:$0xff] %v1502
        %1654 = vst.msk [vmem:[#allocation2 + $0x48] sm:$0xff] %vm1645, %v1504
        %1655 = vst [vmem:[#allocation2 + $0x50] sm:$0xff] %v1508
        %1656 = vst.msk [vmem:[#allocation2 + $0x58] sm:$0xff] %vm1645, %v1510
        %1657 = vst [vmem:[#allocation2 + $0x60] sm:$0xff] %v1514
        %1658 = vst.msk [vmem:[#allocation2 + $0x68] sm:$0xff] %vm1645, %v1516
        %1659 = vst [vmem:[#allocation2 + $0x70] sm:$0xff] %v1520
        %1660 = vst.msk [vmem:[#allocation2 + $0x78] sm:$0xff] %vm1645, %v1522
        %1661 = vst [vmem:[#allocation2 + $0x80] sm:$0xff] %v1526
        %1662 = vst.msk [vmem:[#allocation2 + $0x88] sm:$0xff] %vm1645, %v1528
        %1663 = vst [vmem:[#allocation2 + $0x90] sm:$0xff] %v1532
        %1664 = vst.msk [vmem:[#allocation2 + $0x98] sm:$0xff] %vm1645, %v1534
        %1665 = vst [vmem:[#allocation2 + $0xa0] sm:$0xff] %v1538
        %1666 = vst.msk [vmem:[#allocation2 + $0xa8] sm:$0xff] %vm1645, %v1540
        %1667 = vst [vmem:[#allocation2 + $0xb0] sm:$0xff] %v1544
        %1668 = vst.msk [vmem:[#allocation2 + $0xb8] sm:$0xff] %vm1645, %v1546
        %1669 = vst [vmem:[#allocation2 + $0xc0] sm:$0xff] %v1550
        %1670 = vst.msk [vmem:[#allocation2 + $0xc8] sm:$0xff] %vm1645, %v1552
        %1671 = vst [vmem:[#allocation2 + $0xd0] sm:$0xff] %v1556
        %1672 = vst.msk [vmem:[#allocation2 + $0xd8] sm:$0xff] %vm1645, %v1558
        %1673 = vst [vmem:[#allocation2 + $0xe0] sm:$0xff] %v1562
        %1674 = vst.msk [vmem:[#allocation2 + $0xe8] sm:$0xff] %vm1645, %v1564
        %1675 = vst [vmem:[#allocation2 + $0xf0] sm:$0xff] %v1568
        %1676 = vst.msk [vmem:[#allocation2 + $0xf8] sm:$0xff] %vm1645, %v1570
        %1677 = vst [vmem:[#allocation2 + $0x100] sm:$0xff] %v1574
        %1678 = vst.msk [vmem:[#allocation2 + $0x108] sm:$0xff] %vm1645, %v1576
        %1679 = vst [vmem:[#allocation2 + $0x110] sm:$0xff] %v1580
        %1680 = vst.msk [vmem:[#allocation2 + $0x118] sm:$0xff] %vm1645, %v1582
        %1681 = vst [vmem:[#allocation2 + $0x120] sm:$0xff] %v1586
        %1682 = vst.msk [vmem:[#allocation2 + $0x128] sm:$0xff] %vm1645, %v1588
        %1683 = vst [vmem:[#allocation2 + $0x130] sm:$0xff] %v1592
        %1684 = vst.msk [vmem:[#allocation2 + $0x138] sm:$0xff] %vm1645, %v1594
        %1685 = vst [vmem:[#allocation2 + $0x140] sm:$0xff] %v1598
        %1686 = vst.msk [vmem:[#allocation2 + $0x148] sm:$0xff] %vm1645, %v1600
        %1687 = vst [vmem:[#allocation2 + $0x150] sm:$0xff] %v1604
        %1688 = vst.msk [vmem:[#allocation2 + $0x158] sm:$0xff] %vm1645, %v1606
        %1689 = vst [vmem:[#allocation2 + $0x160] sm:$0xff] %v1610
        %1690 = vst.msk [vmem:[#allocation2 + $0x168] sm:$0xff] %vm1645, %v1612
        %1691 = vst [vmem:[#allocation2 + $0x170] sm:$0xff] %v1616
        %1692 = vst.msk [vmem:[#allocation2 + $0x178] sm:$0xff] %vm1645, %v1618
        %1693 = vst [vmem:[#allocation2 + $0x180] sm:$0xff] %v1622
        %1694 = vst.msk [vmem:[#allocation2 + $0x188] sm:$0xff] %vm1645, %v1624
        %1695 = vst [vmem:[#allocation2 + $0x190] sm:$0xff] %v1628
        %1696 = vst.msk [vmem:[#allocation2 + $0x198] sm:$0xff] %vm1645, %v1630
        %1697 = vst [vmem:[#allocation2 + $0x1a0] sm:$0xff] %v1634
        %1698 = vst.msk [vmem:[#allocation2 + $0x1a8] sm:$0xff] %vm1645, %v1636
        %1699 = vst [vmem:[#allocation2 + $0x1b0] sm:$0xff] %v1640
        %1700 = vst.msk [vmem:[#allocation2 + $0x1b8] sm:$0xff] %vm1645, %v1642
        %v1701 = vld [vmem:[#allocation2] sm:$0xff]
        %v1702 = vld [vmem:[#allocation2 + $0x10] sm:$0xf]
        %v1703 = vld [vmem:[#allocation2 + $0x20] sm:$0xff]
        %v1704 = vld [vmem:[#allocation2 + $0x30] sm:$0xf]
        %v1705 = vld [vmem:[#allocation2 + $0x40] sm:$0xff]
        %v1706 = vld [vmem:[#allocation2 + $0x50] sm:$0xf]
        %v1707 = vld [vmem:[#allocation2 + $0x60] sm:$0xff]
        %v1708 = vld [vmem:[#allocation2 + $0x70] sm:$0xf]
        %v1709 = vld [vmem:[#allocation2 + $0x80] sm:$0xff]
        %v1710 = vld [vmem:[#allocation2 + $0x90] sm:$0xf]
        %v1711 = vld [vmem:[#allocation2 + $0xa0] sm:$0xff]
        %v1712 = vld [vmem:[#allocation2 + $0xb0] sm:$0xf]
        %v1713 = vld [vmem:[#allocation2 + $0xc0] sm:$0xff]
        %v1714 = vld [vmem:[#allocation2 + $0xd0] sm:$0xf]
        %v1715 = vld [vmem:[#allocation2 + $0xe0] sm:$0xff]
        %v1716 = vld [vmem:[#allocation2 + $0xf0] sm:$0xf]
        %v1717 = vld [vmem:[#allocation2 + $0x100] sm:$0xff]
        %v1718 = vld [vmem:[#allocation2 + $0x110] sm:$0xf]
        %v1719 = vld [vmem:[#allocation2 + $0x120] sm:$0xff]
        %v1720 = vld [vmem:[#allocation2 + $0x130] sm:$0xf]
        %v1721 = vld [vmem:[#allocation2 + $0x140] sm:$0xff]
        %v1722 = vld [vmem:[#allocation2 + $0x150] sm:$0xf]
        %v1723 = vld [vmem:[#allocation2 + $0x160] sm:$0xff]
        %v1724 = vld [vmem:[#allocation2 + $0x170] sm:$0xf]
        %v1725 = vld [vmem:[#allocation2] sm:$0xfe]
        %v1726 = vld [vmem:[#allocation2 + $0x10] sm:$0x1f]
        %v1727 = vld [vmem:[#allocation2 + $0x20] sm:$0xfe]
        %v1728 = vld [vmem:[#allocation2 + $0x30] sm:$0x1f]
        %v1729 = vld [vmem:[#allocation2 + $0x40] sm:$0xfe]
        %v1730 = vld [vmem:[#allocation2 + $0x50] sm:$0x1f]
        %v1731 = vld [vmem:[#allocation2 + $0x60] sm:$0xfe]
        %v1732 = vld [vmem:[#allocation2 + $0x70] sm:$0x1f]
        %v1733 = vld [vmem:[#allocation2 + $0x80] sm:$0xfe]
        %v1734 = vld [vmem:[#allocation2 + $0x90] sm:$0x1f]
        %v1735 = vld [vmem:[#allocation2 + $0xa0] sm:$0xfe]
        %v1736 = vld [vmem:[#allocation2 + $0xb0] sm:$0x1f]
        %v1737 = vld [vmem:[#allocation2 + $0xc0] sm:$0xfe]
        %v1738 = vld [vmem:[#allocation2 + $0xd0] sm:$0x1f]
        %v1739 = vld [vmem:[#allocation2 + $0xe0] sm:$0xfe]
        %v1740 = vld [vmem:[#allocation2 + $0xf0] sm:$0x1f]
        %v1741 = vld [vmem:[#allocation2 + $0x100] sm:$0xfe]
        %v1742 = vld [vmem:[#allocation2 + $0x110] sm:$0x1f]
        %v1743 = vld [vmem:[#allocation2 + $0x120] sm:$0xfe]
        %v1744 = vld [vmem:[#allocation2 + $0x130] sm:$0x1f]
        %v1745 = vld [vmem:[#allocation2 + $0x140] sm:$0xfe]
        %v1746 = vld [vmem:[#allocation2 + $0x150] sm:$0x1f]
        %v1747 = vld [vmem:[#allocation2 + $0x160] sm:$0xfe]
        %v1748 = vld [vmem:[#allocation2 + $0x170] sm:$0x1f]
        %vm1773 = vcmask 1046528
        %v1774 = vrot.slane %v1725, 1
        %v1775 = vrot.slane %v1726, 1
        %v1776 = vsel %vm1773, %v1774, %v1775
        %v1777 = vrot.slane %v1727, 1
        %v1778 = vrot.slane %v1728, 1
        %v1779 = vsel %vm1773, %v1777, %v1778
        %v1780 = vrot.slane %v1729, 1
        %v1781 = vrot.slane %v1730, 1
        %v1782 = vsel %vm1773, %v1780, %v1781
        %v1783 = vrot.slane %v1731, 1
        %v1784 = vrot.slane %v1732, 1
        %v1785 = vsel %vm1773, %v1783, %v1784
        %v1786 = vrot.slane %v1733, 1
        %v1787 = vrot.slane %v1734, 1
        %v1788 = vsel %vm1773, %v1786, %v1787
        %v1789 = vrot.slane %v1735, 1
        %v1790 = vrot.slane %v1736, 1
        %v1791 = vsel %vm1773, %v1789, %v1790
        %v1792 = vrot.slane %v1737, 1
        %v1793 = vrot.slane %v1738, 1
        %v1794 = vsel %vm1773, %v1792, %v1793
        %v1795 = vrot.slane %v1739, 1
        %v1796 = vrot.slane %v1740, 1
        %v1797 = vsel %vm1773, %v1795, %v1796
        %v1798 = vrot.slane %v1741, 1
        %v1799 = vrot.slane %v1742, 1
        %v1800 = vsel %vm1773, %v1798, %v1799
        %v1801 = vrot.slane %v1743, 1
        %v1802 = vrot.slane %v1744, 1
        %v1803 = vsel %vm1773, %v1801, %v1802
        %v1804 = vrot.slane %v1745, 1
        %v1805 = vrot.slane %v1746, 1
        %v1806 = vsel %vm1773, %v1804, %v1805
        %v1807 = vrot.slane %v1747, 1
        %v1808 = vrot.slane %v1748, 1
        %v1809 = vsel %vm1773, %v1807, %v1808
        %1810 = vrot.lane.b32.xlu0 %v1776, 112
        %v1811 = vpop.permute.xlu0 %1810
        %1812 = vrot.lane.b32.xlu0 %v1775, 112
        %v1813 = vpop.permute.xlu0 %1812
        %1814 = vrot.lane.b32.xlu0 %v1779, 112
        %v1815 = vpop.permute.xlu0 %1814
        %1816 = vrot.lane.b32.xlu0 %v1778, 112
        %v1817 = vpop.permute.xlu0 %1816
        %1818 = vrot.lane.b32.xlu0 %v1782, 112
        %v1819 = vpop.permute.xlu0 %1818
        %1820 = vrot.lane.b32.xlu0 %v1781, 112
        %v1821 = vpop.permute.xlu0 %1820
        %1822 = vrot.lane.b32.xlu0 %v1785, 112
        %v1823 = vpop.permute.xlu0 %1822
        %1824 = vrot.lane.b32.xlu0 %v1784, 112
        %v1825 = vpop.permute.xlu0 %1824
        %1826 = vrot.lane.b32.xlu0 %v1788, 112
        %v1827 = vpop.permute.xlu0 %1826
        %1828 = vrot.lane.b32.xlu0 %v1787, 112
        %v1829 = vpop.permute.xlu0 %1828
        %1830 = vrot.lane.b32.xlu0 %v1791, 112
        %v1831 = vpop.permute.xlu0 %1830
        %1832 = vrot.lane.b32.xlu0 %v1790, 112
        %v1833 = vpop.permute.xlu0 %1832
        %1834 = vrot.lane.b32.xlu0 %v1794, 112
        %v1835 = vpop.permute.xlu0 %1834
        %1836 = vrot.lane.b32.xlu0 %v1793, 112
        %v1837 = vpop.permute.xlu0 %1836
        %1838 = vrot.lane.b32.xlu0 %v1797, 112
        %v1839 = vpop.permute.xlu0 %1838
        %1840 = vrot.lane.b32.xlu0 %v1796, 112
        %v1841 = vpop.permute.xlu0 %1840
        %1842 = vrot.lane.b32.xlu0 %v1800, 112
        %v1843 = vpop.permute.xlu0 %1842
        %1844 = vrot.lane.b32.xlu0 %v1799, 112
        %v1845 = vpop.permute.xlu0 %1844
        %1846 = vrot.lane.b32.xlu0 %v1803, 112
        %v1847 = vpop.permute.xlu0 %1846
        %1848 = vrot.lane.b32.xlu0 %v1802, 112
        %v1849 = vpop.permute.xlu0 %1848
        %1850 = vrot.lane.b32.xlu0 %v1806, 112
        %v1851 = vpop.permute.xlu0 %1850
        %1852 = vrot.lane.b32.xlu0 %v1805, 112
        %v1853 = vpop.permute.xlu0 %1852
        %1854 = vrot.lane.b32.xlu0 %v1809, 112
        %v1855 = vpop.permute.xlu0 %1854
        %1856 = vrot.lane.b32.xlu0 %v1808, 112
        %v1857 = vpop.permute.xlu0 %1856
        %v1882 = vadd.f32 %v1701, %v1811
        %v1883 = vadd.f32 %v1702, %v1813
        %v1884 = vadd.f32 %v1703, %v1815
        %v1885 = vadd.f32 %v1704, %v1817
        %v1886 = vadd.f32 %v1705, %v1819
        %v1887 = vadd.f32 %v1706, %v1821
        %v1888 = vadd.f32 %v1707, %v1823
        %v1889 = vadd.f32 %v1708, %v1825
        %v1890 = vadd.f32 %v1709, %v1827
        %v1891 = vadd.f32 %v1710, %v1829
        %v1892 = vadd.f32 %v1711, %v1831
        %v1893 = vadd.f32 %v1712, %v1833
        %v1894 = vadd.f32 %v1713, %v1835
        %v1895 = vadd.f32 %v1714, %v1837
        %v1896 = vadd.f32 %v1715, %v1839
        %v1897 = vadd.f32 %v1716, %v1841
        %v1898 = vadd.f32 %v1717, %v1843
        %v1899 = vadd.f32 %v1718, %v1845
        %v1900 = vadd.f32 %v1719, %v1847
        %v1901 = vadd.f32 %v1720, %v1849
        %v1902 = vadd.f32 %v1721, %v1851
        %v1903 = vadd.f32 %v1722, %v1853
        %v1904 = vadd.f32 %v1723, %v1855
        %v1905 = vadd.f32 %v1724, %v1857
        %v1906 = vld [vmem:[#allocation2] sm:$0xfc]
        %v1907 = vld [vmem:[#allocation2 + $0x10] sm:$0x3f]
        %v1908 = vld [vmem:[#allocation2 + $0x20] sm:$0xfc]
        %v1909 = vld [vmem:[#allocation2 + $0x30] sm:$0x3f]
        %v1910 = vld [vmem:[#allocation2 + $0x40] sm:$0xfc]
        %v1911 = vld [vmem:[#allocation2 + $0x50] sm:$0x3f]
        %v1912 = vld [vmem:[#allocation2 + $0x60] sm:$0xfc]
        %v1913 = vld [vmem:[#allocation2 + $0x70] sm:$0x3f]
        %v1914 = vld [vmem:[#allocation2 + $0x80] sm:$0xfc]
        %v1915 = vld [vmem:[#allocation2 + $0x90] sm:$0x3f]
        %v1916 = vld [vmem:[#allocation2 + $0xa0] sm:$0xfc]
        %v1917 = vld [vmem:[#allocation2 + $0xb0] sm:$0x3f]
        %v1918 = vld [vmem:[#allocation2 + $0xc0] sm:$0xfc]
        %v1919 = vld [vmem:[#allocation2 + $0xd0] sm:$0x3f]
        %v1920 = vld [vmem:[#allocation2 + $0xe0] sm:$0xfc]
        %v1921 = vld [vmem:[#allocation2 + $0xf0] sm:$0x3f]
        %v1922 = vld [vmem:[#allocation2 + $0x100] sm:$0xfc]
        %v1923 = vld [vmem:[#allocation2 + $0x110] sm:$0x3f]
        %v1924 = vld [vmem:[#allocation2 + $0x120] sm:$0xfc]
        %v1925 = vld [vmem:[#allocation2 + $0x130] sm:$0x3f]
        %v1926 = vld [vmem:[#allocation2 + $0x140] sm:$0xfc]
        %v1927 = vld [vmem:[#allocation2 + $0x150] sm:$0x3f]
        %v1928 = vld [vmem:[#allocation2 + $0x160] sm:$0xfc]
        %v1929 = vld [vmem:[#allocation2 + $0x170] sm:$0x3f]
        %vm1954 = vcmask 1045504
        %v1955 = vrot.slane %v1906, 2
        %v1956 = vrot.slane %v1907, 2
        %v1957 = vsel %vm1954, %v1955, %v1956
        %v1958 = vrot.slane %v1908, 2
        %v1959 = vrot.slane %v1909, 2
        %v1960 = vsel %vm1954, %v1958, %v1959
        %v1961 = vrot.slane %v1910, 2
        %v1962 = vrot.slane %v1911, 2
        %v1963 = vsel %vm1954, %v1961, %v1962
        %v1964 = vrot.slane %v1912, 2
        %v1965 = vrot.slane %v1913, 2
        %v1966 = vsel %vm1954, %v1964, %v1965
        %v1967 = vrot.slane %v1914, 2
        %v1968 = vrot.slane %v1915, 2
        %v1969 = vsel %vm1954, %v1967, %v1968
        %v1970 = vrot.slane %v1916, 2
        %v1971 = vrot.slane %v1917, 2
        %v1972 = vsel %vm1954, %v1970, %v1971
        %v1973 = vrot.slane %v1918, 2
        %v1974 = vrot.slane %v1919, 2
        %v1975 = vsel %vm1954, %v1973, %v1974
        %v1976 = vrot.slane %v1920, 2
        %v1977 = vrot.slane %v1921, 2
        %v1978 = vsel %vm1954, %v1976, %v1977
        %v1979 = vrot.slane %v1922, 2
        %v1980 = vrot.slane %v1923, 2
        %v1981 = vsel %vm1954, %v1979, %v1980
        %v1982 = vrot.slane %v1924, 2
        %v1983 = vrot.slane %v1925, 2
        %v1984 = vsel %vm1954, %v1982, %v1983
        %v1985 = vrot.slane %v1926, 2
        %v1986 = vrot.slane %v1927, 2
        %v1987 = vsel %vm1954, %v1985, %v1986
        %v1988 = vrot.slane %v1928, 2
        %v1989 = vrot.slane %v1929, 2
        %v1990 = vsel %vm1954, %v1988, %v1989
        %1991 = vrot.lane.b32.xlu0 %v1957, 96
        %v1992 = vpop.permute.xlu0 %1991
        %1993 = vrot.lane.b32.xlu0 %v1956, 96
        %v1994 = vpop.permute.xlu0 %1993
        %1995 = vrot.lane.b32.xlu0 %v1960, 96
        %v1996 = vpop.permute.xlu0 %1995
        %1997 = vrot.lane.b32.xlu0 %v1959, 96
        %v1998 = vpop.permute.xlu0 %1997
        %1999 = vrot.lane.b32.xlu0 %v1963, 96
        %v2000 = vpop.permute.xlu0 %1999
        %2001 = vrot.lane.b32.xlu0 %v1962, 96
        %v2002 = vpop.permute.xlu0 %2001
        %2003 = vrot.lane.b32.xlu0 %v1966, 96
        %v2004 = vpop.permute.xlu0 %2003
        %2005 = vrot.lane.b32.xlu0 %v1965, 96
        %v2006 = vpop.permute.xlu0 %2005
        %2007 = vrot.lane.b32.xlu0 %v1969, 96
        %v2008 = vpop.permute.xlu0 %2007
        %2009 = vrot.lane.b32.xlu0 %v1968, 96
        %v2010 = vpop.permute.xlu0 %2009
        %2011 = vrot.lane.b32.xlu0 %v1972, 96
        %v2012 = vpop.permute.xlu0 %2011
        %2013 = vrot.lane.b32.xlu0 %v1971, 96
        %v2014 = vpop.permute.xlu0 %2013
        %2015 = vrot.lane.b32.xlu0 %v1975, 96
        %v2016 = vpop.permute.xlu0 %2015
        %2017 = vrot.lane.b32.xlu0 %v1974, 96
        %v2018 = vpop.permute.xlu0 %2017
        %2019 = vrot.lane.b32.xlu0 %v1978, 96
        %v2020 = vpop.permute.xlu0 %2019
        %2021 = vrot.lane.b32.xlu0 %v1977, 96
        %v2022 = vpop.permute.xlu0 %2021
        %2023 = vrot.lane.b32.xlu0 %v1981, 96
        %v2024 = vpop.permute.xlu0 %2023
        %2025 = vrot.lane.b32.xlu0 %v1980, 96
        %v2026 = vpop.permute.xlu0 %2025
        %2027 = vrot.lane.b32.xlu0 %v1984, 96
        %v2028 = vpop.permute.xlu0 %2027
        %2029 = vrot.lane.b32.xlu0 %v1983, 96
        %v2030 = vpop.permute.xlu0 %2029
        %2031 = vrot.lane.b32.xlu0 %v1987, 96
        %v2032 = vpop.permute.xlu0 %2031
        %2033 = vrot.lane.b32.xlu0 %v1986, 96
        %v2034 = vpop.permute.xlu0 %2033
        %2035 = vrot.lane.b32.xlu0 %v1990, 96
        %v2036 = vpop.permute.xlu0 %2035
        %2037 = vrot.lane.b32.xlu0 %v1989, 96
        %v2038 = vpop.permute.xlu0 %2037
        %v2063 = vadd.f32 %v1882, %v1992
        %v2064 = vadd.f32 %v1883, %v1994
        %v2065 = vadd.f32 %v1884, %v1996
        %v2066 = vadd.f32 %v1885, %v1998
        %v2067 = vadd.f32 %v1886, %v2000
        %v2068 = vadd.f32 %v1887, %v2002
        %v2069 = vadd.f32 %v1888, %v2004
        %v2070 = vadd.f32 %v1889, %v2006
        %v2071 = vadd.f32 %v1890, %v2008
        %v2072 = vadd.f32 %v1891, %v2010
        %v2073 = vadd.f32 %v1892, %v2012
        %v2074 = vadd.f32 %v1893, %v2014
        %v2075 = vadd.f32 %v1894, %v2016
        %v2076 = vadd.f32 %v1895, %v2018
        %v2077 = vadd.f32 %v1896, %v2020
        %v2078 = vadd.f32 %v1897, %v2022
        %v2079 = vadd.f32 %v1898, %v2024
        %v2080 = vadd.f32 %v1899, %v2026
        %v2081 = vadd.f32 %v1900, %v2028
        %v2082 = vadd.f32 %v1901, %v2030
        %v2083 = vadd.f32 %v1902, %v2032
        %v2084 = vadd.f32 %v1903, %v2034
        %v2085 = vadd.f32 %v1904, %v2036
        %v2086 = vadd.f32 %v1905, %v2038
        %s2087 = scalar_lea.vmem [#allocation2], 32
        %v2088 = vld [vmem:[%s2087] sm:$0xff]
        %v2089 = vld [vmem:[%s2087 + $0x10] sm:$0xf]
        %v2090 = vld [vmem:[%s2087 + $0x20] sm:$0xff]
        %v2091 = vld [vmem:[%s2087 + $0x30] sm:$0xf]
        %v2092 = vld [vmem:[%s2087 + $0x40] sm:$0xff]
        %v2093 = vld [vmem:[%s2087 + $0x50] sm:$0xf]
        %v2094 = vld [vmem:[%s2087 + $0x60] sm:$0xff]
        %v2095 = vld [vmem:[%s2087 + $0x70] sm:$0xf]
        %v2096 = vld [vmem:[%s2087 + $0x80] sm:$0xff]
        %v2097 = vld [vmem:[%s2087 + $0x90] sm:$0xf]
        %v2098 = vld [vmem:[%s2087 + $0xa0] sm:$0xff]
        %v2099 = vld [vmem:[%s2087 + $0xb0] sm:$0xf]
        %v2100 = vld [vmem:[%s2087 + $0xc0] sm:$0xff]
        %v2101 = vld [vmem:[%s2087 + $0xd0] sm:$0xf]
        %v2102 = vld [vmem:[%s2087 + $0xe0] sm:$0xff]
        %v2103 = vld [vmem:[%s2087 + $0xf0] sm:$0xf]
        %v2104 = vld [vmem:[%s2087 + $0x100] sm:$0xff]
        %v2105 = vld [vmem:[%s2087 + $0x110] sm:$0xf]
        %v2106 = vld [vmem:[%s2087 + $0x120] sm:$0xff]
        %v2107 = vld [vmem:[%s2087 + $0x130] sm:$0xf]
        %v2108 = vld [vmem:[%s2087 + $0x140] sm:$0xff]
        %v2109 = vld [vmem:[%s2087 + $0x150] sm:$0xf]
        %v2110 = vld [vmem:[%s2087 + $0x160] sm:$0xff]
        %v2111 = vld [vmem:[%s2087 + $0x170] sm:$0xf]
        %2136 = vrot.lane.b32.xlu0 %v2088, 80
        %v2137 = vpop.permute.xlu0 %2136
        %2138 = vrot.lane.b32.xlu0 %v2089, 80
        %v2139 = vpop.permute.xlu0 %2138
        %2140 = vrot.lane.b32.xlu0 %v2090, 80
        %v2141 = vpop.permute.xlu0 %2140
        %2142 = vrot.lane.b32.xlu0 %v2091, 80
        %v2143 = vpop.permute.xlu0 %2142
        %2144 = vrot.lane.b32.xlu0 %v2092, 80
        %v2145 = vpop.permute.xlu0 %2144
        %2146 = vrot.lane.b32.xlu0 %v2093, 80
        %v2147 = vpop.permute.xlu0 %2146
        %2148 = vrot.lane.b32.xlu0 %v2094, 80
        %v2149 = vpop.permute.xlu0 %2148
        %2150 = vrot.lane.b32.xlu0 %v2095, 80
        %v2151 = vpop.permute.xlu0 %2150
        %2152 = vrot.lane.b32.xlu0 %v2096, 80
        %v2153 = vpop.permute.xlu0 %2152
        %2154 = vrot.lane.b32.xlu0 %v2097, 80
        %v2155 = vpop.permute.xlu0 %2154
        %2156 = vrot.lane.b32.xlu0 %v2098, 80
        %v2157 = vpop.permute.xlu0 %2156
        %2158 = vrot.lane.b32.xlu0 %v2099, 80
        %v2159 = vpop.permute.xlu0 %2158
        %2160 = vrot.lane.b32.xlu0 %v2100, 80
        %v2161 = vpop.permute.xlu0 %2160
        %2162 = vrot.lane.b32.xlu0 %v2101, 80
        %v2163 = vpop.permute.xlu0 %2162
        %2164 = vrot.lane.b32.xlu0 %v2102, 80
        %v2165 = vpop.permute.xlu0 %2164
        %2166 = vrot.lane.b32.xlu0 %v2103, 80
        %v2167 = vpop.permute.xlu0 %2166
        %2168 = vrot.lane.b32.xlu0 %v2104, 80
        %v2169 = vpop.permute.xlu0 %2168
        %2170 = vrot.lane.b32.xlu0 %v2105, 80
        %v2171 = vpop.permute.xlu0 %2170
        %2172 = vrot.lane.b32.xlu0 %v2106, 80
        %v2173 = vpop.permute.xlu0 %2172
        %2174 = vrot.lane.b32.xlu0 %v2107, 80
        %v2175 = vpop.permute.xlu0 %2174
        %2176 = vrot.lane.b32.xlu0 %v2108, 80
        %v2177 = vpop.permute.xlu0 %2176
        %2178 = vrot.lane.b32.xlu0 %v2109, 80
        %v2179 = vpop.permute.xlu0 %2178
        %2180 = vrot.lane.b32.xlu0 %v2110, 80
        %v2181 = vpop.permute.xlu0 %2180
        %2182 = vrot.lane.b32.xlu0 %v2111, 80
        %v2183 = vpop.permute.xlu0 %2182
        %v2208 = vadd.f32 %v2063, %v2137
        %v2209 = vadd.f32 %v2064, %v2139
        %v2210 = vadd.f32 %v2065, %v2141
        %v2211 = vadd.f32 %v2066, %v2143
        %v2212 = vadd.f32 %v2067, %v2145
        %v2213 = vadd.f32 %v2068, %v2147
        %v2214 = vadd.f32 %v2069, %v2149
        %v2215 = vadd.f32 %v2070, %v2151
        %v2216 = vadd.f32 %v2071, %v2153
        %v2217 = vadd.f32 %v2072, %v2155
        %v2218 = vadd.f32 %v2073, %v2157
        %v2219 = vadd.f32 %v2074, %v2159
        %v2220 = vadd.f32 %v2075, %v2161
        %v2221 = vadd.f32 %v2076, %v2163
        %v2222 = vadd.f32 %v2077, %v2165
        %v2223 = vadd.f32 %v2078, %v2167
        %v2224 = vadd.f32 %v2079, %v2169
        %v2225 = vadd.f32 %v2080, %v2171
        %v2226 = vadd.f32 %v2081, %v2173
        %v2227 = vadd.f32 %v2082, %v2175
        %v2228 = vadd.f32 %v2083, %v2177
        %v2229 = vadd.f32 %v2084, %v2179
        %v2230 = vadd.f32 %v2085, %v2181
        %v2231 = vadd.f32 %v2086, %v2183
        %v2232 = vld [vmem:[%s2087] sm:$0xfe]
        %v2233 = vld [vmem:[%s2087 + $0x10] sm:$0x1f]
        %v2234 = vld [vmem:[%s2087 + $0x20] sm:$0xfe]
        %v2235 = vld [vmem:[%s2087 + $0x30] sm:$0x1f]
        %v2236 = vld [vmem:[%s2087 + $0x40] sm:$0xfe]
        %v2237 = vld [vmem:[%s2087 + $0x50] sm:$0x1f]
        %v2238 = vld [vmem:[%s2087 + $0x60] sm:$0xfe]
        %v2239 = vld [vmem:[%s2087 + $0x70] sm:$0x1f]
        %v2240 = vld [vmem:[%s2087 + $0x80] sm:$0xfe]
        %v2241 = vld [vmem:[%s2087 + $0x90] sm:$0x1f]
        %v2242 = vld [vmem:[%s2087 + $0xa0] sm:$0xfe]
        %v2243 = vld [vmem:[%s2087 + $0xb0] sm:$0x1f]
        %v2244 = vld [vmem:[%s2087 + $0xc0] sm:$0xfe]
        %v2245 = vld [vmem:[%s2087 + $0xd0] sm:$0x1f]
        %v2246 = vld [vmem:[%s2087 + $0xe0] sm:$0xfe]
        %v2247 = vld [vmem:[%s2087 + $0xf0] sm:$0x1f]
        %v2248 = vld [vmem:[%s2087 + $0x100] sm:$0xfe]
        %v2249 = vld [vmem:[%s2087 + $0x110] sm:$0x1f]
        %v2250 = vld [vmem:[%s2087 + $0x120] sm:$0xfe]
        %v2251 = vld [vmem:[%s2087 + $0x130] sm:$0x1f]
        %v2252 = vld [vmem:[%s2087 + $0x140] sm:$0xfe]
        %v2253 = vld [vmem:[%s2087 + $0x150] sm:$0x1f]
        %v2254 = vld [vmem:[%s2087 + $0x160] sm:$0xfe]
        %v2255 = vld [vmem:[%s2087 + $0x170] sm:$0x1f]
        %v2280 = vrot.slane %v2232, 1
        %v2281 = vrot.slane %v2233, 1
        %v2282 = vsel %vm1773, %v2280, %v2281
        %v2283 = vrot.slane %v2234, 1
        %v2284 = vrot.slane %v2235, 1
        %v2285 = vsel %vm1773, %v2283, %v2284
        %v2286 = vrot.slane %v2236, 1
        %v2287 = vrot.slane %v2237, 1
        %v2288 = vsel %vm1773, %v2286, %v2287
        %v2289 = vrot.slane %v2238, 1
        %v2290 = vrot.slane %v2239, 1
        %v2291 = vsel %vm1773, %v2289, %v2290
        %v2292 = vrot.slane %v2240, 1
        %v2293 = vrot.slane %v2241, 1
        %v2294 = vsel %vm1773, %v2292, %v2293
        %v2295 = vrot.slane %v2242, 1
        %v2296 = vrot.slane %v2243, 1
        %v2297 = vsel %vm1773, %v2295, %v2296
        %v2298 = vrot.slane %v2244, 1
        %v2299 = vrot.slane %v2245, 1
        %v2300 = vsel %vm1773, %v2298, %v2299
        %v2301 = vrot.slane %v2246, 1
        %v2302 = vrot.slane %v2247, 1
        %v2303 = vsel %vm1773, %v2301, %v2302
        %v2304 = vrot.slane %v2248, 1
        %v2305 = vrot.slane %v2249, 1
        %v2306 = vsel %vm1773, %v2304, %v2305
        %v2307 = vrot.slane %v2250, 1
        %v2308 = vrot.slane %v2251, 1
        %v2309 = vsel %vm1773, %v2307, %v2308
        %v2310 = vrot.slane %v2252, 1
        %v2311 = vrot.slane %v2253, 1
        %v2312 = vsel %vm1773, %v2310, %v2311
        %v2313 = vrot.slane %v2254, 1
        %v2314 = vrot.slane %v2255, 1
        %v2315 = vsel %vm1773, %v2313, %v2314
        %2316 = vrot.lane.b32.xlu0 %v2282, 64
        %v2317 = vpop.permute.xlu0 %2316
        %2318 = vrot.lane.b32.xlu0 %v2281, 64
        %v2319 = vpop.permute.xlu0 %2318
        %2320 = vrot.lane.b32.xlu0 %v2285, 64
        %v2321 = vpop.permute.xlu0 %2320
        %2322 = vrot.lane.b32.xlu0 %v2284, 64
        %v2323 = vpop.permute.xlu0 %2322
        %2324 = vrot.lane.b32.xlu0 %v2288, 64
        %v2325 = vpop.permute.xlu0 %2324
        %2326 = vrot.lane.b32.xlu0 %v2287, 64
        %v2327 = vpop.permute.xlu0 %2326
        %2328 = vrot.lane.b32.xlu0 %v2291, 64
        %v2329 = vpop.permute.xlu0 %2328
        %2330 = vrot.lane.b32.xlu0 %v2290, 64
        %v2331 = vpop.permute.xlu0 %2330
        %2332 = vrot.lane.b32.xlu0 %v2294, 64
        %v2333 = vpop.permute.xlu0 %2332
        %2334 = vrot.lane.b32.xlu0 %v2293, 64
        %v2335 = vpop.permute.xlu0 %2334
        %2336 = vrot.lane.b32.xlu0 %v2297, 64
        %v2337 = vpop.permute.xlu0 %2336
        %2338 = vrot.lane.b32.xlu0 %v2296, 64
        %v2339 = vpop.permute.xlu0 %2338
        %2340 = vrot.lane.b32.xlu0 %v2300, 64
        %v2341 = vpop.permute.xlu0 %2340
        %2342 = vrot.lane.b32.xlu0 %v2299, 64
        %v2343 = vpop.permute.xlu0 %2342
        %2344 = vrot.lane.b32.xlu0 %v2303, 64
        %v2345 = vpop.permute.xlu0 %2344
        %2346 = vrot.lane.b32.xlu0 %v2302, 64
        %v2347 = vpop.permute.xlu0 %2346
        %2348 = vrot.lane.b32.xlu0 %v2306, 64
        %v2349 = vpop.permute.xlu0 %2348
        %2350 = vrot.lane.b32.xlu0 %v2305, 64
        %v2351 = vpop.permute.xlu0 %2350
        %2352 = vrot.lane.b32.xlu0 %v2309, 64
        %v2353 = vpop.permute.xlu0 %2352
        %2354 = vrot.lane.b32.xlu0 %v2308, 64
        %v2355 = vpop.permute.xlu0 %2354
        %2356 = vrot.lane.b32.xlu0 %v2312, 64
        %v2357 = vpop.permute.xlu0 %2356
        %2358 = vrot.lane.b32.xlu0 %v2311, 64
        %v2359 = vpop.permute.xlu0 %2358
        %2360 = vrot.lane.b32.xlu0 %v2315, 64
        %v2361 = vpop.permute.xlu0 %2360
        %2362 = vrot.lane.b32.xlu0 %v2314, 64
        %v2363 = vpop.permute.xlu0 %2362
        %v2388 = vadd.f32 %v2208, %v2317
        %v2389 = vadd.f32 %v2209, %v2319
        %v2390 = vadd.f32 %v2210, %v2321
        %v2391 = vadd.f32 %v2211, %v2323
        %v2392 = vadd.f32 %v2212, %v2325
        %v2393 = vadd.f32 %v2213, %v2327
        %v2394 = vadd.f32 %v2214, %v2329
        %v2395 = vadd.f32 %v2215, %v2331
        %v2396 = vadd.f32 %v2216, %v2333
        %v2397 = vadd.f32 %v2217, %v2335
        %v2398 = vadd.f32 %v2218, %v2337
        %v2399 = vadd.f32 %v2219, %v2339
        %v2400 = vadd.f32 %v2220, %v2341
        %v2401 = vadd.f32 %v2221, %v2343
        %v2402 = vadd.f32 %v2222, %v2345
        %v2403 = vadd.f32 %v2223, %v2347
        %v2404 = vadd.f32 %v2224, %v2349
        %v2405 = vadd.f32 %v2225, %v2351
        %v2406 = vadd.f32 %v2226, %v2353
        %v2407 = vadd.f32 %v2227, %v2355
        %v2408 = vadd.f32 %v2228, %v2357
        %v2409 = vadd.f32 %v2229, %v2359
        %v2410 = vadd.f32 %v2230, %v2361
        %v2411 = vadd.f32 %v2231, %v2363
        %v2412 = vld [vmem:[%s2087] sm:$0xfc]
        %v2413 = vld [vmem:[%s2087 + $0x10] sm:$0x3f]
        %v2414 = vld [vmem:[%s2087 + $0x20] sm:$0xfc]
        %v2415 = vld [vmem:[%s2087 + $0x30] sm:$0x3f]
        %v2416 = vld [vmem:[%s2087 + $0x40] sm:$0xfc]
        %v2417 = vld [vmem:[%s2087 + $0x50] sm:$0x3f]
        %v2418 = vld [vmem:[%s2087 + $0x60] sm:$0xfc]
        %v2419 = vld [vmem:[%s2087 + $0x70] sm:$0x3f]
        %v2420 = vld [vmem:[%s2087 + $0x80] sm:$0xfc]
        %v2421 = vld [vmem:[%s2087 + $0x90] sm:$0x3f]
        %v2422 = vld [vmem:[%s2087 + $0xa0] sm:$0xfc]
        %v2423 = vld [vmem:[%s2087 + $0xb0] sm:$0x3f]
        %v2424 = vld [vmem:[%s2087 + $0xc0] sm:$0xfc]
        %v2425 = vld [vmem:[%s2087 + $0xd0] sm:$0x3f]
        %v2426 = vld [vmem:[%s2087 + $0xe0] sm:$0xfc]
        %v2427 = vld [vmem:[%s2087 + $0xf0] sm:$0x3f]
        %v2428 = vld [vmem:[%s2087 + $0x100] sm:$0xfc]
        %v2429 = vld [vmem:[%s2087 + $0x110] sm:$0x3f]
        %v2430 = vld [vmem:[%s2087 + $0x120] sm:$0xfc]
        %v2431 = vld [vmem:[%s2087 + $0x130] sm:$0x3f]
        %v2432 = vld [vmem:[%s2087 + $0x140] sm:$0xfc]
        %v2433 = vld [vmem:[%s2087 + $0x150] sm:$0x3f]
        %v2434 = vld [vmem:[%s2087 + $0x160] sm:$0xfc]
        %v2435 = vld [vmem:[%s2087 + $0x170] sm:$0x3f]
        %v2460 = vrot.slane %v2412, 2
        %v2461 = vrot.slane %v2413, 2
        %v2462 = vsel %vm1954, %v2460, %v2461
        %v2463 = vrot.slane %v2414, 2
        %v2464 = vrot.slane %v2415, 2
        %v2465 = vsel %vm1954, %v2463, %v2464
        %v2466 = vrot.slane %v2416, 2
        %v2467 = vrot.slane %v2417, 2
        %v2468 = vsel %vm1954, %v2466, %v2467
        %v2469 = vrot.slane %v2418, 2
        %v2470 = vrot.slane %v2419, 2
        %v2471 = vsel %vm1954, %v2469, %v2470
        %v2472 = vrot.slane %v2420, 2
        %v2473 = vrot.slane %v2421, 2
        %v2474 = vsel %vm1954, %v2472, %v2473
        %v2475 = vrot.slane %v2422, 2
        %v2476 = vrot.slane %v2423, 2
        %v2477 = vsel %vm1954, %v2475, %v2476
        %v2478 = vrot.slane %v2424, 2
        %v2479 = vrot.slane %v2425, 2
        %v2480 = vsel %vm1954, %v2478, %v2479
        %v2481 = vrot.slane %v2426, 2
        %v2482 = vrot.slane %v2427, 2
        %v2483 = vsel %vm1954, %v2481, %v2482
        %v2484 = vrot.slane %v2428, 2
        %v2485 = vrot.slane %v2429, 2
        %v2486 = vsel %vm1954, %v2484, %v2485
        %v2487 = vrot.slane %v2430, 2
        %v2488 = vrot.slane %v2431, 2
        %v2489 = vsel %vm1954, %v2487, %v2488
        %v2490 = vrot.slane %v2432, 2
        %v2491 = vrot.slane %v2433, 2
        %v2492 = vsel %vm1954, %v2490, %v2491
        %v2493 = vrot.slane %v2434, 2
        %v2494 = vrot.slane %v2435, 2
        %v2495 = vsel %vm1954, %v2493, %v2494
        %2496 = vrot.lane.b32.xlu0 %v2462, 48
        %v2497 = vpop.permute.xlu0 %2496
        %2498 = vrot.lane.b32.xlu0 %v2461, 48
        %v2499 = vpop.permute.xlu0 %2498
        %2500 = vrot.lane.b32.xlu0 %v2465, 48
        %v2501 = vpop.permute.xlu0 %2500
        %2502 = vrot.lane.b32.xlu0 %v2464, 48
        %v2503 = vpop.permute.xlu0 %2502
        %2504 = vrot.lane.b32.xlu0 %v2468, 48
        %v2505 = vpop.permute.xlu0 %2504
        %2506 = vrot.lane.b32.xlu0 %v2467, 48
        %v2507 = vpop.permute.xlu0 %2506
        %2508 = vrot.lane.b32.xlu0 %v2471, 48
        %v2509 = vpop.permute.xlu0 %2508
        %2510 = vrot.lane.b32.xlu0 %v2470, 48
        %v2511 = vpop.permute.xlu0 %2510
        %2512 = vrot.lane.b32.xlu0 %v2474, 48
        %v2513 = vpop.permute.xlu0 %2512
        %2514 = vrot.lane.b32.xlu0 %v2473, 48
        %v2515 = vpop.permute.xlu0 %2514
        %2516 = vrot.lane.b32.xlu0 %v2477, 48
        %v2517 = vpop.permute.xlu0 %2516
        %2518 = vrot.lane.b32.xlu0 %v2476, 48
        %v2519 = vpop.permute.xlu0 %2518
        %2520 = vrot.lane.b32.xlu0 %v2480, 48
        %v2521 = vpop.permute.xlu0 %2520
        %2522 = vrot.lane.b32.xlu0 %v2479, 48
        %v2523 = vpop.permute.xlu0 %2522
        %2524 = vrot.lane.b32.xlu0 %v2483, 48
        %v2525 = vpop.permute.xlu0 %2524
        %2526 = vrot.lane.b32.xlu0 %v2482, 48
        %v2527 = vpop.permute.xlu0 %2526
        %2528 = vrot.lane.b32.xlu0 %v2486, 48
        %v2529 = vpop.permute.xlu0 %2528
        %2530 = vrot.lane.b32.xlu0 %v2485, 48
        %v2531 = vpop.permute.xlu0 %2530
        %2532 = vrot.lane.b32.xlu0 %v2489, 48
        %v2533 = vpop.permute.xlu0 %2532
        %2534 = vrot.lane.b32.xlu0 %v2488, 48
        %v2535 = vpop.permute.xlu0 %2534
        %2536 = vrot.lane.b32.xlu0 %v2492, 48
        %v2537 = vpop.permute.xlu0 %2536
        %2538 = vrot.lane.b32.xlu0 %v2491, 48
        %v2539 = vpop.permute.xlu0 %2538
        %2540 = vrot.lane.b32.xlu0 %v2495, 48
        %v2541 = vpop.permute.xlu0 %2540
        %2542 = vrot.lane.b32.xlu0 %v2494, 48
        %v2543 = vpop.permute.xlu0 %2542
        %v2568 = vadd.f32 %v2388, %v2497
        %v2569 = vadd.f32 %v2389, %v2499
        %v2570 = vadd.f32 %v2390, %v2501
        %v2571 = vadd.f32 %v2391, %v2503
        %v2572 = vadd.f32 %v2392, %v2505
        %v2573 = vadd.f32 %v2393, %v2507
        %v2574 = vadd.f32 %v2394, %v2509
        %v2575 = vadd.f32 %v2395, %v2511
        %v2576 = vadd.f32 %v2396, %v2513
        %v2577 = vadd.f32 %v2397, %v2515
        %v2578 = vadd.f32 %v2398, %v2517
        %v2579 = vadd.f32 %v2399, %v2519
        %v2580 = vadd.f32 %v2400, %v2521
        %v2581 = vadd.f32 %v2401, %v2523
        %v2582 = vadd.f32 %v2402, %v2525
        %v2583 = vadd.f32 %v2403, %v2527
        %v2584 = vadd.f32 %v2404, %v2529
        %v2585 = vadd.f32 %v2405, %v2531
        %v2586 = vadd.f32 %v2406, %v2533
        %v2587 = vadd.f32 %v2407, %v2535
        %v2588 = vadd.f32 %v2408, %v2537
        %v2589 = vadd.f32 %v2409, %v2539
        %v2590 = vadd.f32 %v2410, %v2541
        %v2591 = vadd.f32 %v2411, %v2543
        %s2592 = scalar_lea.vmem [#allocation2], 64
        %v2593 = vld [vmem:[%s2592] sm:$0xff]
        %v2594 = vld [vmem:[%s2592 + $0x10] sm:$0xf]
        %v2595 = vld [vmem:[%s2592 + $0x20] sm:$0xff]
        %v2596 = vld [vmem:[%s2592 + $0x30] sm:$0xf]
        %v2597 = vld [vmem:[%s2592 + $0x40] sm:$0xff]
        %v2598 = vld [vmem:[%s2592 + $0x50] sm:$0xf]
        %v2599 = vld [vmem:[%s2592 + $0x60] sm:$0xff]
        %v2600 = vld [vmem:[%s2592 + $0x70] sm:$0xf]
        %v2601 = vld [vmem:[%s2592 + $0x80] sm:$0xff]
        %v2602 = vld [vmem:[%s2592 + $0x90] sm:$0xf]
        %v2603 = vld [vmem:[%s2592 + $0xa0] sm:$0xff]
        %v2604 = vld [vmem:[%s2592 + $0xb0] sm:$0xf]
        %v2605 = vld [vmem:[%s2592 + $0xc0] sm:$0xff]
        %v2606 = vld [vmem:[%s2592 + $0xd0] sm:$0xf]
        %v2607 = vld [vmem:[%s2592 + $0xe0] sm:$0xff]
        %v2608 = vld [vmem:[%s2592 + $0xf0] sm:$0xf]
        %v2609 = vld [vmem:[%s2592 + $0x100] sm:$0xff]
        %v2610 = vld [vmem:[%s2592 + $0x110] sm:$0xf]
        %v2611 = vld [vmem:[%s2592 + $0x120] sm:$0xff]
        %v2612 = vld [vmem:[%s2592 + $0x130] sm:$0xf]
        %v2613 = vld [vmem:[%s2592 + $0x140] sm:$0xff]
        %v2614 = vld [vmem:[%s2592 + $0x150] sm:$0xf]
        %v2615 = vld [vmem:[%s2592 + $0x160] sm:$0xff]
        %v2616 = vld [vmem:[%s2592 + $0x170] sm:$0xf]
        %2641 = vrot.lane.b32.xlu0 %v2593, 32
        %v2642 = vpop.permute.xlu0 %2641
        %2643 = vrot.lane.b32.xlu0 %v2594, 32
        %v2644 = vpop.permute.xlu0 %2643
        %2645 = vrot.lane.b32.xlu0 %v2595, 32
        %v2646 = vpop.permute.xlu0 %2645
        %2647 = vrot.lane.b32.xlu0 %v2596, 32
        %v2648 = vpop.permute.xlu0 %2647
        %2649 = vrot.lane.b32.xlu0 %v2597, 32
        %v2650 = vpop.permute.xlu0 %2649
        %2651 = vrot.lane.b32.xlu0 %v2598, 32
        %v2652 = vpop.permute.xlu0 %2651
        %2653 = vrot.lane.b32.xlu0 %v2599, 32
        %v2654 = vpop.permute.xlu0 %2653
        %2655 = vrot.lane.b32.xlu0 %v2600, 32
        %v2656 = vpop.permute.xlu0 %2655
        %2657 = vrot.lane.b32.xlu0 %v2601, 32
        %v2658 = vpop.permute.xlu0 %2657
        %2659 = vrot.lane.b32.xlu0 %v2602, 32
        %v2660 = vpop.permute.xlu0 %2659
        %2661 = vrot.lane.b32.xlu0 %v2603, 32
        %v2662 = vpop.permute.xlu0 %2661
        %2663 = vrot.lane.b32.xlu0 %v2604, 32
        %v2664 = vpop.permute.xlu0 %2663
        %2665 = vrot.lane.b32.xlu0 %v2605, 32
        %v2666 = vpop.permute.xlu0 %2665
        %2667 = vrot.lane.b32.xlu0 %v2606, 32
        %v2668 = vpop.permute.xlu0 %2667
        %2669 = vrot.lane.b32.xlu0 %v2607, 32
        %v2670 = vpop.permute.xlu0 %2669
        %2671 = vrot.lane.b32.xlu0 %v2608, 32
        %v2672 = vpop.permute.xlu0 %2671
        %2673 = vrot.lane.b32.xlu0 %v2609, 32
        %v2674 = vpop.permute.xlu0 %2673
        %2675 = vrot.lane.b32.xlu0 %v2610, 32
        %v2676 = vpop.permute.xlu0 %2675
        %2677 = vrot.lane.b32.xlu0 %v2611, 32
        %v2678 = vpop.permute.xlu0 %2677
        %2679 = vrot.lane.b32.xlu0 %v2612, 32
        %v2680 = vpop.permute.xlu0 %2679
        %2681 = vrot.lane.b32.xlu0 %v2613, 32
        %v2682 = vpop.permute.xlu0 %2681
        %2683 = vrot.lane.b32.xlu0 %v2614, 32
        %v2684 = vpop.permute.xlu0 %2683
        %2685 = vrot.lane.b32.xlu0 %v2615, 32
        %v2686 = vpop.permute.xlu0 %2685
        %2687 = vrot.lane.b32.xlu0 %v2616, 32
        %v2688 = vpop.permute.xlu0 %2687
        %v2713 = vadd.f32 %v2568, %v2642
        %v2714 = vadd.f32 %v2569, %v2644
        %v2715 = vadd.f32 %v2570, %v2646
        %v2716 = vadd.f32 %v2571, %v2648
        %v2717 = vadd.f32 %v2572, %v2650
        %v2718 = vadd.f32 %v2573, %v2652
        %v2719 = vadd.f32 %v2574, %v2654
        %v2720 = vadd.f32 %v2575, %v2656
        %v2721 = vadd.f32 %v2576, %v2658
        %v2722 = vadd.f32 %v2577, %v2660
        %v2723 = vadd.f32 %v2578, %v2662
        %v2724 = vadd.f32 %v2579, %v2664
        %v2725 = vadd.f32 %v2580, %v2666
        %v2726 = vadd.f32 %v2581, %v2668
        %v2727 = vadd.f32 %v2582, %v2670
        %v2728 = vadd.f32 %v2583, %v2672
        %v2729 = vadd.f32 %v2584, %v2674
        %v2730 = vadd.f32 %v2585, %v2676
        %v2731 = vadd.f32 %v2586, %v2678
        %v2732 = vadd.f32 %v2587, %v2680
        %v2733 = vadd.f32 %v2588, %v2682
        %v2734 = vadd.f32 %v2589, %v2684
        %v2735 = vadd.f32 %v2590, %v2686
        %v2736 = vadd.f32 %v2591, %v2688
        %v2737 = vld [vmem:[%s2592] sm:$0xfe]
        %v2738 = vld [vmem:[%s2592 + $0x10] sm:$0x1f]
        %v2739 = vld [vmem:[%s2592 + $0x20] sm:$0xfe]
        %v2740 = vld [vmem:[%s2592 + $0x30] sm:$0x1f]
        %v2741 = vld [vmem:[%s2592 + $0x40] sm:$0xfe]
        %v2742 = vld [vmem:[%s2592 + $0x50] sm:$0x1f]
        %v2743 = vld [vmem:[%s2592 + $0x60] sm:$0xfe]
        %v2744 = vld [vmem:[%s2592 + $0x70] sm:$0x1f]
        %v2745 = vld [vmem:[%s2592 + $0x80] sm:$0xfe]
        %v2746 = vld [vmem:[%s2592 + $0x90] sm:$0x1f]
        %v2747 = vld [vmem:[%s2592 + $0xa0] sm:$0xfe]
        %v2748 = vld [vmem:[%s2592 + $0xb0] sm:$0x1f]
        %v2749 = vld [vmem:[%s2592 + $0xc0] sm:$0xfe]
        %v2750 = vld [vmem:[%s2592 + $0xd0] sm:$0x1f]
        %v2751 = vld [vmem:[%s2592 + $0xe0] sm:$0xfe]
        %v2752 = vld [vmem:[%s2592 + $0xf0] sm:$0x1f]
        %v2753 = vld [vmem:[%s2592 + $0x100] sm:$0xfe]
        %v2754 = vld [vmem:[%s2592 + $0x110] sm:$0x1f]
        %v2755 = vld [vmem:[%s2592 + $0x120] sm:$0xfe]
        %v2756 = vld [vmem:[%s2592 + $0x130] sm:$0x1f]
        %v2757 = vld [vmem:[%s2592 + $0x140] sm:$0xfe]
        %v2758 = vld [vmem:[%s2592 + $0x150] sm:$0x1f]
        %v2759 = vld [vmem:[%s2592 + $0x160] sm:$0xfe]
        %v2760 = vld [vmem:[%s2592 + $0x170] sm:$0x1f]
        %v2785 = vrot.slane %v2737, 1
        %v2786 = vrot.slane %v2738, 1
        %v2787 = vsel %vm1773, %v2785, %v2786
        %v2788 = vrot.slane %v2739, 1
        %v2789 = vrot.slane %v2740, 1
        %v2790 = vsel %vm1773, %v2788, %v2789
        %v2791 = vrot.slane %v2741, 1
        %v2792 = vrot.slane %v2742, 1
        %v2793 = vsel %vm1773, %v2791, %v2792
        %v2794 = vrot.slane %v2743, 1
        %v2795 = vrot.slane %v2744, 1
        %v2796 = vsel %vm1773, %v2794, %v2795
        %v2797 = vrot.slane %v2745, 1
        %v2798 = vrot.slane %v2746, 1
        %v2799 = vsel %vm1773, %v2797, %v2798
        %v2800 = vrot.slane %v2747, 1
        %v2801 = vrot.slane %v2748, 1
        %v2802 = vsel %vm1773, %v2800, %v2801
        %v2803 = vrot.slane %v2749, 1
        %v2804 = vrot.slane %v2750, 1
        %v2805 = vsel %vm1773, %v2803, %v2804
        %v2806 = vrot.slane %v2751, 1
        %v2807 = vrot.slane %v2752, 1
        %v2808 = vsel %vm1773, %v2806, %v2807
        %v2809 = vrot.slane %v2753, 1
        %v2810 = vrot.slane %v2754, 1
        %v2811 = vsel %vm1773, %v2809, %v2810
        %v2812 = vrot.slane %v2755, 1
        %v2813 = vrot.slane %v2756, 1
        %v2814 = vsel %vm1773, %v2812, %v2813
        %v2815 = vrot.slane %v2757, 1
        %v2816 = vrot.slane %v2758, 1
        %v2817 = vsel %vm1773, %v2815, %v2816
        %v2818 = vrot.slane %v2759, 1
        %v2819 = vrot.slane %v2760, 1
        %v2820 = vsel %vm1773, %v2818, %v2819
        %2821 = vrot.lane.b32.xlu0 %v2787, 16
        %v2822 = vpop.permute.xlu0 %2821
        %2823 = vrot.lane.b32.xlu0 %v2786, 16
        %v2824 = vpop.permute.xlu0 %2823
        %2825 = vrot.lane.b32.xlu0 %v2790, 16
        %v2826 = vpop.permute.xlu0 %2825
        %2827 = vrot.lane.b32.xlu0 %v2789, 16
        %v2828 = vpop.permute.xlu0 %2827
        %2829 = vrot.lane.b32.xlu0 %v2793, 16
        %v2830 = vpop.permute.xlu0 %2829
        %2831 = vrot.lane.b32.xlu0 %v2792, 16
        %v2832 = vpop.permute.xlu0 %2831
        %2833 = vrot.lane.b32.xlu0 %v2796, 16
        %v2834 = vpop.permute.xlu0 %2833
        %2835 = vrot.lane.b32.xlu0 %v2795, 16
        %v2836 = vpop.permute.xlu0 %2835
        %2837 = vrot.lane.b32.xlu0 %v2799, 16
        %v2838 = vpop.permute.xlu0 %2837
        %2839 = vrot.lane.b32.xlu0 %v2798, 16
        %v2840 = vpop.permute.xlu0 %2839
        %2841 = vrot.lane.b32.xlu0 %v2802, 16
        %v2842 = vpop.permute.xlu0 %2841
        %2843 = vrot.lane.b32.xlu0 %v2801, 16
        %v2844 = vpop.permute.xlu0 %2843
        %2845 = vrot.lane.b32.xlu0 %v2805, 16
        %v2846 = vpop.permute.xlu0 %2845
        %2847 = vrot.lane.b32.xlu0 %v2804, 16
        %v2848 = vpop.permute.xlu0 %2847
        %2849 = vrot.lane.b32.xlu0 %v2808, 16
        %v2850 = vpop.permute.xlu0 %2849
        %2851 = vrot.lane.b32.xlu0 %v2807, 16
        %v2852 = vpop.permute.xlu0 %2851
        %2853 = vrot.lane.b32.xlu0 %v2811, 16
        %v2854 = vpop.permute.xlu0 %2853
        %2855 = vrot.lane.b32.xlu0 %v2810, 16
        %v2856 = vpop.permute.xlu0 %2855
        %2857 = vrot.lane.b32.xlu0 %v2814, 16
        %v2858 = vpop.permute.xlu0 %2857
        %2859 = vrot.lane.b32.xlu0 %v2813, 16
        %v2860 = vpop.permute.xlu0 %2859
        %2861 = vrot.lane.b32.xlu0 %v2817, 16
        %v2862 = vpop.permute.xlu0 %2861
        %2863 = vrot.lane.b32.xlu0 %v2816, 16
        %v2864 = vpop.permute.xlu0 %2863
        %2865 = vrot.lane.b32.xlu0 %v2820, 16
        %v2866 = vpop.permute.xlu0 %2865
        %2867 = vrot.lane.b32.xlu0 %v2819, 16
        %v2868 = vpop.permute.xlu0 %2867
        %v2893 = vadd.f32 %v2713, %v2822
        %v2894 = vadd.f32 %v2714, %v2824
        %v2895 = vadd.f32 %v2715, %v2826
        %v2896 = vadd.f32 %v2716, %v2828
        %v2897 = vadd.f32 %v2717, %v2830
        %v2898 = vadd.f32 %v2718, %v2832
        %v2899 = vadd.f32 %v2719, %v2834
        %v2900 = vadd.f32 %v2720, %v2836
        %v2901 = vadd.f32 %v2721, %v2838
        %v2902 = vadd.f32 %v2722, %v2840
        %v2903 = vadd.f32 %v2723, %v2842
        %v2904 = vadd.f32 %v2724, %v2844
        %v2905 = vadd.f32 %v2725, %v2846
        %v2906 = vadd.f32 %v2726, %v2848
        %v2907 = vadd.f32 %v2727, %v2850
        %v2908 = vadd.f32 %v2728, %v2852
        %v2909 = vadd.f32 %v2729, %v2854
        %v2910 = vadd.f32 %v2730, %v2856
        %v2911 = vadd.f32 %v2731, %v2858
        %v2912 = vadd.f32 %v2732, %v2860
        %v2913 = vadd.f32 %v2733, %v2862
        %v2914 = vadd.f32 %v2734, %v2864
        %v2915 = vadd.f32 %v2735, %v2866
        %v2916 = vadd.f32 %v2736, %v2868
        %v2917 = vld [vmem:[%s2592 + $0x8] sm:$0xfc]
        %v2918 = vld [vmem:[%s2592 + $0x18] sm:$0x3f]
        %v2919 = vld [vmem:[%s2592 + $0x28] sm:$0xfc]
        %v2920 = vld [vmem:[%s2592 + $0x38] sm:$0x3f]
        %v2921 = vld [vmem:[%s2592 + $0x48] sm:$0xfc]
        %v2922 = vld [vmem:[%s2592 + $0x58] sm:$0x3f]
        %v2923 = vld [vmem:[%s2592 + $0x68] sm:$0xfc]
        %v2924 = vld [vmem:[%s2592 + $0x78] sm:$0x3f]
        %v2925 = vld [vmem:[%s2592 + $0x88] sm:$0xfc]
        %v2926 = vld [vmem:[%s2592 + $0x98] sm:$0x3f]
        %v2927 = vld [vmem:[%s2592 + $0xa8] sm:$0xfc]
        %v2928 = vld [vmem:[%s2592 + $0xb8] sm:$0x3f]
        %v2929 = vld [vmem:[%s2592 + $0xc8] sm:$0xfc]
        %v2930 = vld [vmem:[%s2592 + $0xd8] sm:$0x3f]
        %v2931 = vld [vmem:[%s2592 + $0xe8] sm:$0xfc]
        %v2932 = vld [vmem:[%s2592 + $0xf8] sm:$0x3f]
        %v2933 = vld [vmem:[%s2592 + $0x108] sm:$0xfc]
        %v2934 = vld [vmem:[%s2592 + $0x118] sm:$0x3f]
        %v2935 = vld [vmem:[%s2592 + $0x128] sm:$0xfc]
        %v2936 = vld [vmem:[%s2592 + $0x138] sm:$0x3f]
        %v2937 = vld [vmem:[%s2592 + $0x148] sm:$0xfc]
        %v2938 = vld [vmem:[%s2592 + $0x158] sm:$0x3f]
        %v2939 = vld [vmem:[%s2592 + $0x168] sm:$0xfc]
        %v2940 = vld [vmem:[%s2592 + $0x178] sm:$0x3f]
        %v2965 = vrot.slane %v2917, 2
        %v2966 = vrot.slane %v2918, 2
        %v2967 = vsel %vm1954, %v2965, %v2966
        %v2968 = vrot.slane %v2919, 2
        %v2969 = vrot.slane %v2920, 2
        %v2970 = vsel %vm1954, %v2968, %v2969
        %v2971 = vrot.slane %v2921, 2
        %v2972 = vrot.slane %v2922, 2
        %v2973 = vsel %vm1954, %v2971, %v2972
        %v2974 = vrot.slane %v2923, 2
        %v2975 = vrot.slane %v2924, 2
        %v2976 = vsel %vm1954, %v2974, %v2975
        %v2977 = vrot.slane %v2925, 2
        %v2978 = vrot.slane %v2926, 2
        %v2979 = vsel %vm1954, %v2977, %v2978
        %v2980 = vrot.slane %v2927, 2
        %v2981 = vrot.slane %v2928, 2
        %v2982 = vsel %vm1954, %v2980, %v2981
        %v2983 = vrot.slane %v2929, 2
        %v2984 = vrot.slane %v2930, 2
        %v2985 = vsel %vm1954, %v2983, %v2984
        %v2986 = vrot.slane %v2931, 2
        %v2987 = vrot.slane %v2932, 2
        %v2988 = vsel %vm1954, %v2986, %v2987
        %v2989 = vrot.slane %v2933, 2
        %v2990 = vrot.slane %v2934, 2
        %v2991 = vsel %vm1954, %v2989, %v2990
        %v2992 = vrot.slane %v2935, 2
        %v2993 = vrot.slane %v2936, 2
        %v2994 = vsel %vm1954, %v2992, %v2993
        %v2995 = vrot.slane %v2937, 2
        %v2996 = vrot.slane %v2938, 2
        %v2997 = vsel %vm1954, %v2995, %v2996
        %v2998 = vrot.slane %v2939, 2
        %v2999 = vrot.slane %v2940, 2
        %v3000 = vsel %vm1954, %v2998, %v2999
        %v3025 = vadd.f32 %v2893, %v2967
        %v3026 = vadd.f32 %v2894, %v2966
        %v3027 = vadd.f32 %v2895, %v2970
        %v3028 = vadd.f32 %v2896, %v2969
        %v3029 = vadd.f32 %v2897, %v2973
        %v3030 = vadd.f32 %v2898, %v2972
        %v3031 = vadd.f32 %v2899, %v2976
        %v3032 = vadd.f32 %v2900, %v2975
        %v3033 = vadd.f32 %v2901, %v2979
        %v3034 = vadd.f32 %v2902, %v2978
        %v3035 = vadd.f32 %v2903, %v2982
        %v3036 = vadd.f32 %v2904, %v2981
        %v3037 = vadd.f32 %v2905, %v2985
        %v3038 = vadd.f32 %v2906, %v2984
        %v3039 = vadd.f32 %v2907, %v2988
        %v3040 = vadd.f32 %v2908, %v2987
        %v3041 = vadd.f32 %v2909, %v2991
        %v3042 = vadd.f32 %v2910, %v2990
        %v3043 = vadd.f32 %v2911, %v2994
        %v3044 = vadd.f32 %v2912, %v2993
        %v3045 = vadd.f32 %v2913, %v2997
        %v3046 = vadd.f32 %v2914, %v2996
        %v3047 = vadd.f32 %v2915, %v3000
        %v3048 = vadd.f32 %v2916, %v2999
        %v3049 = vld [vmem:[%s4] sm:$0x1]
        %v3051 = vlaneseq
        %v3052 = vshrl.u32 %v3051, 7
        %v3053 = vsub.s32 0, %v3052
        %v3054 = vrot.slane %v3049, %v3053
        %v3056 = vadd.f32 %v3025, %v3054
        %v3057 = vadd.f32 %v3026, %v3054
        %v3058 = vadd.f32 %v3027, %v3054
        %v3059 = vadd.f32 %v3028, %v3054
        %v3060 = vadd.f32 %v3029, %v3054
        %v3061 = vadd.f32 %v3030, %v3054
        %v3062 = vadd.f32 %v3031, %v3054
        %v3063 = vadd.f32 %v3032, %v3054
        %v3064 = vadd.f32 %v3033, %v3054
        %v3065 = vadd.f32 %v3034, %v3054
        %v3066 = vadd.f32 %v3035, %v3054
        %v3067 = vadd.f32 %v3036, %v3054
        %v3068 = vadd.f32 %v3037, %v3054
        %v3069 = vadd.f32 %v3038, %v3054
        %v3070 = vadd.f32 %v3039, %v3054
        %v3071 = vadd.f32 %v3040, %v3054
        %v3072 = vadd.f32 %v3041, %v3054
        %v3073 = vadd.f32 %v3042, %v3054
        %v3074 = vadd.f32 %v3043, %v3054
        %v3075 = vadd.f32 %v3044, %v3054
        %v3076 = vadd.f32 %v3045, %v3054
        %v3077 = vadd.f32 %v3046, %v3054
        %v3078 = vadd.f32 %v3047, %v3054
        %v3079 = vadd.f32 %v3048, %v3054
        %v3080 = vmax.f32 %v3056, %v3058
        %v3081 = vmax.f32 %v3057, %v3059
        %v3082 = vmax.f32 %v3060, %v3062
        %v3083 = vmax.f32 %v3061, %v3063
        %v3084 = vmax.f32 %v3064, %v3066
        %v3085 = vmax.f32 %v3065, %v3067
        %v3086 = vmax.f32 %v3068, %v3070
        %v3087 = vmax.f32 %v3069, %v3071
        %v3088 = vmax.f32 %v3072, %v3074
        %v3089 = vmax.f32 %v3073, %v3075
        %v3090 = vmax.f32 %v3076, %v3078
        %v3091 = vmax.f32 %v3077, %v3079
        %v3098 = vrot.slane %v3080, 1
        %v3099 = vrot.slane %v3082, 1
        %v3100 = vrot.slane %v3084, 1
        %v3101 = vrot.slane %v3086, 1
        %v3102 = vrot.slane %v3088, 1
        %v3103 = vrot.slane %v3090, 1
        %v3110 = vmax.f32 %v3080, %v3098
        %v3111 = vmax.f32 %v3082, %v3099
        %v3112 = vmax.f32 %v3084, %v3100
        %v3113 = vmax.f32 %v3086, %v3101
        %v3114 = vmax.f32 %v3088, %v3102
        %v3115 = vmax.f32 %v3090, %v3103
        %v3122 = vrot.slane %v3081, 1
        %v3123 = vrot.slane %v3083, 1
        %v3124 = vrot.slane %v3085, 1
        %v3125 = vrot.slane %v3087, 1
        %v3126 = vrot.slane %v3089, 1
        %v3127 = vrot.slane %v3091, 1
        %v3134 = vmax.f32 %v3081, %v3122
        %v3135 = vmax.f32 %v3083, %v3123
        %v3136 = vmax.f32 %v3085, %v3124
        %v3137 = vmax.f32 %v3087, %v3125
        %v3138 = vmax.f32 %v3089, %v3126
        %v3139 = vmax.f32 %v3091, %v3127
        %v3146 = vrot.slane %v3110, 1
        %v3147 = vrot.slane %v3111, 1
        %v3148 = vrot.slane %v3112, 1
        %v3149 = vrot.slane %v3113, 1
        %v3150 = vrot.slane %v3114, 1
        %v3151 = vrot.slane %v3115, 1
        %v3158 = vrot.slane %v3110, 2
        %v3159 = vrot.slane %v3111, 2
        %v3160 = vrot.slane %v3112, 2
        %v3161 = vrot.slane %v3113, 2
        %v3162 = vrot.slane %v3114, 2
        %v3163 = vrot.slane %v3115, 2
        %v3170 = vrot.slane %v3110, 3
        %v3171 = vrot.slane %v3111, 3
        %v3172 = vrot.slane %v3112, 3
        %v3173 = vrot.slane %v3113, 3
        %v3174 = vrot.slane %v3114, 3
        %v3175 = vrot.slane %v3115, 3
        %v3188 = vrot.slane %v3134, 4
        %v3189 = vrot.slane %v3135, 4
        %v3190 = vrot.slane %v3136, 4
        %v3191 = vrot.slane %v3137, 4
        %v3192 = vrot.slane %v3138, 4
        %v3193 = vrot.slane %v3139, 4
        %v3200 = vrot.slane %v3134, 5
        %v3201 = vrot.slane %v3135, 5
        %v3202 = vrot.slane %v3136, 5
        %v3203 = vrot.slane %v3137, 5
        %v3204 = vrot.slane %v3138, 5
        %v3205 = vrot.slane %v3139, 5
        %vm3212 = vcmask 1040384
        %v3213 = vsel %vm3212, %v3110, %v3146
        %v3214 = vsel %vm3212, %v3111, %v3147
        %v3215 = vsel %vm3212, %v3112, %v3148
        %v3216 = vsel %vm3212, %v3113, %v3149
        %v3217 = vsel %vm3212, %v3114, %v3150
        %v3218 = vsel %vm3212, %v3115, %v3151
        %vm3219 = vcmask 1041408
        %v3220 = vsel %vm3219, %v3213, %v3158
        %v3221 = vsel %vm3219, %v3214, %v3159
        %v3222 = vsel %vm3219, %v3215, %v3160
        %v3223 = vsel %vm3219, %v3216, %v3161
        %v3224 = vsel %vm3219, %v3217, %v3162
        %v3225 = vsel %vm3219, %v3218, %v3163
        %vm3226 = vcmask 1042432
        %v3227 = vsel %vm3226, %v3220, %v3170
        %v3228 = vsel %vm3226, %v3221, %v3171
        %v3229 = vsel %vm3226, %v3222, %v3172
        %v3230 = vsel %vm3226, %v3223, %v3173
        %v3231 = vsel %vm3226, %v3224, %v3174
        %v3232 = vsel %vm3226, %v3225, %v3175
        %vm3233 = vcmask 1043456
        %v3234 = vsel %vm3233, %v3227, %v3188
        %v3235 = vsel %vm3233, %v3228, %v3189
        %v3236 = vsel %vm3233, %v3229, %v3190
        %v3237 = vsel %vm3233, %v3230, %v3191
        %v3238 = vsel %vm3233, %v3231, %v3192
        %v3239 = vsel %vm3233, %v3232, %v3193
        %vm3240 = vcmask 1044480
        %v3241 = vsel %vm3240, %v3234, %v3200
        %v3242 = vsel %vm3240, %v3235, %v3201
        %v3243 = vsel %vm3240, %v3236, %v3202
        %v3244 = vsel %vm3240, %v3237, %v3203
        %v3245 = vsel %vm3240, %v3238, %v3204
        %v3246 = vsel %vm3240, %v3239, %v3205
        %v3247 = vsel %vm1954, %v3241, 0.0
        %v3248 = vsel %vm1954, %v3242, 0.0
        %v3249 = vsel %vm1954, %v3243, 0.0
        %v3250 = vsel %vm1954, %v3244, 0.0
        %v3251 = vsel %vm1954, %v3245, 0.0
        %v3252 = vsel %vm1954, %v3246, 0.0
        %v3253 = vmax.f32 %v3247, 0.0
        %v3254 = vmax.f32 %v3248, 0.0
        %v3255 = vmax.f32 %v3249, 0.0
        %v3256 = vmax.f32 %v3250, 0.0
        %v3257 = vmax.f32 %v3251, 0.0
        %v3258 = vmax.f32 %v3252, 0.0
        %v3259 = vld [vmem:[%s5] sm:$0xff]
        %v3260 = vld [vmem:[%s5 + $0x8] sm:$0xff]
        %v3262 = vsel %vm1645, %v3253, 0
        %v3265 = vsel %vm1645, %v3254, 0
        %v3268 = vsel %vm1645, %v3255, 0
        %v3271 = vsel %vm1645, %v3256, 0
        %v3274 = vsel %vm1645, %v3257, 0
        %v3277 = vsel %vm1645, %v3258, 0
        %3279 = vmatprep.subr.mxu0 0.0
        %3280 = vmatpush1.msra.mxu0 %v3259
        %3281 = vmatprep.subr.mxu0 0.0
        %3282 = vmatpush1.msra.mxu0 %v3260
        %3283 = vmatprep.subr.mxu0 0.0
        %3284 = vmatpush1.msra.mxu0 0.0
        %3285 = vmatprep.subr.mxu0 0.0
        %3286 = vmatpush1.msra.mxu0 0.0
        %3287 = vmatprep.subr.mxu0 0.0
        %3288 = vmatpush1.msra.mxu0 0.0
        %3289 = vmatprep.subr.mxu0 0.0
        %3290 = vmatpush1.msra.mxu0 0.0
        %3291 = vmatprep.subr.mxu0 0.0
        %3292 = vmatpush1.msra.mxu0 0.0
        %3293 = vmatprep.subr.mxu0 0.0
        %3294 = vmatpush1.msra.mxu0 0.0
        %3295 = vmatprep.subr.mxu0 0.0
        %3296 = vmatpush1.msra.mxu0 0.0
        %3297 = vmatprep.subr.mxu0 0.0
        %3298 = vmatpush1.msra.mxu0 0.0
        %3299 = vmatprep.subr.mxu0 0.0
        %3300 = vmatpush1.msra.mxu0 0.0
        %3301 = vmatprep.subr.mxu0 0.0
        %3302 = vmatpush1.msra.mxu0 0.0
        %3303 = vmatprep.subr.mxu0 0.0
        %3304 = vmatpush1.msra.mxu0 0.0
        %3305 = vmatprep.subr.mxu0 0.0
        %3306 = vmatpush1.msra.mxu0 0.0
        %3307 = vmatprep.subr.mxu0 0.0
        %3308 = vmatpush1.msra.mxu0 0.0
        %3309 = vmatprep.subr.mxu0 0.0
        %3310 = vmatpush1.msra.mxu0 0.0
        %3311 = vmatprep.subr.mxu0 0.0
        %3312 = vmatpush1.msra.mxu0 0.0
        %3313 = vmatprep.subr.mxu0 0.0
        %3314 = vmatpush1.msra.mxu0 0.0
        %3315 = vmatprep.subr.mxu0 0.0
        %3316 = vmatpush1.msra.mxu0 0.0
        %3317 = vmatprep.subr.mxu0 0.0
        %3318 = vmatpush1.msra.mxu0 0.0
        %3319 = vmatprep.subr.mxu0 0.0
        %3320 = vmatpush1.msra.mxu0 0.0
        %3321 = vmatprep.subr.mxu0 0.0
        %3322 = vmatpush1.msra.mxu0 0.0
        %3323 = vmatprep.subr.mxu0 0.0
        %3324 = vmatpush1.msra.mxu0 0.0
        %3325 = vmatprep.subr.mxu0 0.0
        %3326 = vmatpush1.msra.mxu0 0.0
        %3327 = vmatprep.subr.mxu0 0.0
        %3328 = vmatpush1.msra.mxu0 0.0
        %3329 = vmatprep.subr.mxu0 0.0
        %3330 = vmatpush1.msra.mxu0 0.0
        %3331 = vmatprep.subr.mxu0 0.0
        %3332 = vmatpush1.msra.mxu0 0.0
        %3333 = vmatprep.subr.mxu0 0.0
        %3334 = vmatpush1.msra.mxu0 0.0
        %3335 = vmatprep.subr.mxu0 0.0
        %3336 = vmatpush1.msra.mxu0 0.0
        %3337 = vmatprep.subr.mxu0 0.0
        %3338 = vmatpush1.msra.mxu0 0.0
        %3339 = vmatprep.subr.mxu0 0.0
        %3340 = vmatpush1.msra.mxu0 0.0
        %3341 = vmatprep.subr.mxu0 0.0
        %3342 = vmatpush1.msra.mxu0 0.0
        %3343 = vmatprep.mubr.f32.mxu0 0.0
        %3344 = vmatmul.mubr.f32.gmra.mrb[0].mxu0 %v3262
        %v3345 = vpop.f32.mrb[0].mxu0
        %v3346 = vadd.f32 0.0, %v3345
        %v3347 = vpop.f32.mrb[0].mxu0
        %3348 = vmatprep.mubr.f32.mxu0 0.0
        %3349 = vmatmul.mubr.f32.gmra.mrb[0].mxu0 %v3265
        %v3350 = vpop.f32.mrb[0].mxu0
        %v3351 = vadd.f32 0.0, %v3350
        %v3352 = vpop.f32.mrb[0].mxu0
        %3353 = vmatprep.mubr.f32.mxu0 0.0
        %3354 = vmatmul.mubr.f32.gmra.mrb[0].mxu0 %v3268
        %v3355 = vpop.f32.mrb[0].mxu0
        %v3356 = vadd.f32 0.0, %v3355
        %v3357 = vpop.f32.mrb[0].mxu0
        %3358 = vmatprep.mubr.f32.mxu0 0.0
        %3359 = vmatmul.mubr.f32.gmra.mrb[0].mxu0 %v3271
        %v3360 = vpop.f32.mrb[0].mxu0
        %v3361 = vadd.f32 0.0, %v3360
        %v3362 = vpop.f32.mrb[0].mxu0
        %3363 = vmatprep.mubr.f32.mxu0 0.0
        %3364 = vmatmul.mubr.f32.gmra.mrb[0].mxu0 %v3274
        %v3365 = vpop.f32.mrb[0].mxu0
        %v3366 = vadd.f32 0.0, %v3365
        %v3367 = vpop.f32.mrb[0].mxu0
        %3368 = vmatprep.mubr.f32.mxu0 0.0
        %3369 = vmatmul.mubr.f32.gmra.mrb[0].mxu0 %v3277
        %v3370 = vpop.f32.mrb[0].mxu0
        %v3371 = vadd.f32 0.0, %v3370
        %v3372 = vpop.f32.mrb[0].mxu0
        %3373 = vdwg.mxu0
        %v3378 = vrot.slane %v3346, 1
        %v3379 = vrot.slane %v3351, 1
        %v3380 = vrot.slane %v3356, 1
        %v3381 = vrot.slane %v3361, 1
        %3382 = vrot.lane.b32.xlu0 %v3378, 120
        %v3383 = vpop.permute.xlu0 %3382
        %3384 = vrot.lane.b32.xlu0 %v3379, 120
        %v3385 = vpop.permute.xlu0 %3384
        %3386 = vrot.lane.b32.xlu0 %v3380, 120
        %v3387 = vpop.permute.xlu0 %3386
        %3388 = vrot.lane.b32.xlu0 %v3381, 120
        %v3389 = vpop.permute.xlu0 %3388
        %v3394 = vadd.f32 %v3346, %v3383
        %v3395 = vadd.f32 %v3351, %v3385
        %v3396 = vadd.f32 %v3356, %v3387
        %v3397 = vadd.f32 %v3361, %v3389
        %v3398 = vrot.slane %v3346, 2
        %v3399 = vrot.slane %v3351, 2
        %v3400 = vrot.slane %v3356, 2
        %v3401 = vrot.slane %v3361, 2
        %3402 = vrot.lane.b32.xlu0 %v3398, 112
        %v3403 = vpop.permute.xlu0 %3402
        %3404 = vrot.lane.b32.xlu0 %v3399, 112
        %v3405 = vpop.permute.xlu0 %3404
        %3406 = vrot.lane.b32.xlu0 %v3400, 112
        %v3407 = vpop.permute.xlu0 %3406
        %3408 = vrot.lane.b32.xlu0 %v3401, 112
        %v3409 = vpop.permute.xlu0 %3408
        %v3414 = vadd.f32 %v3394, %v3403
        %v3415 = vadd.f32 %v3395, %v3405
        %v3416 = vadd.f32 %v3396, %v3407
        %v3417 = vadd.f32 %v3397, %v3409
        %3419 = vrot.lane.b32.xlu0 %v3351, 104
        %v3420 = vpop.permute.xlu0 %3419
        %3421 = vrot.lane.b32.xlu0 %v3356, 104
        %v3422 = vpop.permute.xlu0 %3421
        %3423 = vrot.lane.b32.xlu0 %v3361, 104
        %v3424 = vpop.permute.xlu0 %3423
        %3425 = vrot.lane.b32.xlu0 %v3366, 104
        %v3426 = vpop.permute.xlu0 %3425
        %v3431 = vadd.f32 %v3414, %v3420
        %v3432 = vadd.f32 %v3415, %v3422
        %v3433 = vadd.f32 %v3416, %v3424
        %v3434 = vadd.f32 %v3417, %v3426
        %v3435 = vrot.slane %v3366, 1
        %3436 = vrot.lane.b32.xlu0 %v3379, 96
        %v3437 = vpop.permute.xlu0 %3436
        %3438 = vrot.lane.b32.xlu0 %v3380, 96
        %v3439 = vpop.permute.xlu0 %3438
        %3440 = vrot.lane.b32.xlu0 %v3381, 96
        %v3441 = vpop.permute.xlu0 %3440
        %3442 = vrot.lane.b32.xlu0 %v3435, 96
        %v3443 = vpop.permute.xlu0 %3442
        %v3448 = vadd.f32 %v3431, %v3437
        %v3449 = vadd.f32 %v3432, %v3439
        %v3450 = vadd.f32 %v3433, %v3441
        %v3451 = vadd.f32 %v3434, %v3443
        %v3452 = vrot.slane %v3366, 2
        %3453 = vrot.lane.b32.xlu0 %v3399, 88
        %v3454 = vpop.permute.xlu0 %3453
        %3455 = vrot.lane.b32.xlu0 %v3400, 88
        %v3456 = vpop.permute.xlu0 %3455
        %3457 = vrot.lane.b32.xlu0 %v3401, 88
        %v3458 = vpop.permute.xlu0 %3457
        %3459 = vrot.lane.b32.xlu0 %v3452, 88
        %v3460 = vpop.permute.xlu0 %3459
        %v3465 = vadd.f32 %v3448, %v3454
        %v3466 = vadd.f32 %v3449, %v3456
        %v3467 = vadd.f32 %v3450, %v3458
        %v3468 = vadd.f32 %v3451, %v3460
        %3470 = vrot.lane.b32.xlu0 %v3356, 80
        %v3471 = vpop.permute.xlu0 %3470
        %3472 = vrot.lane.b32.xlu0 %v3361, 80
        %v3473 = vpop.permute.xlu0 %3472
        %3474 = vrot.lane.b32.xlu0 %v3366, 80
        %v3475 = vpop.permute.xlu0 %3474
        %3476 = vrot.lane.b32.xlu0 %v3371, 80
        %v3477 = vpop.permute.xlu0 %3476
        %v3482 = vadd.f32 %v3465, %v3471
        %v3483 = vadd.f32 %v3466, %v3473
        %v3484 = vadd.f32 %v3467, %v3475
        %v3485 = vadd.f32 %v3468, %v3477
        %v3486 = vrot.slane %v3371, 1
        %3487 = vrot.lane.b32.xlu0 %v3380, 72
        %v3488 = vpop.permute.xlu0 %3487
        %3489 = vrot.lane.b32.xlu0 %v3381, 72
        %v3490 = vpop.permute.xlu0 %3489
        %3491 = vrot.lane.b32.xlu0 %v3435, 72
        %v3492 = vpop.permute.xlu0 %3491
        %3493 = vrot.lane.b32.xlu0 %v3486, 72
        %v3494 = vpop.permute.xlu0 %3493
        %v3499 = vadd.f32 %v3482, %v3488
        %v3500 = vadd.f32 %v3483, %v3490
        %v3501 = vadd.f32 %v3484, %v3492
        %v3502 = vadd.f32 %v3485, %v3494
        %v3503 = vrot.slane %v3371, 2
        %3504 = vrot.lane.b32.xlu0 %v3400, 64
        %v3505 = vpop.permute.xlu0 %3504
        %3506 = vrot.lane.b32.xlu0 %v3401, 64
        %v3507 = vpop.permute.xlu0 %3506
        %3508 = vrot.lane.b32.xlu0 %v3452, 64
        %v3509 = vpop.permute.xlu0 %3508
        %3510 = vrot.lane.b32.xlu0 %v3503, 64
        %v3511 = vpop.permute.xlu0 %3510
        %v3516 = vadd.f32 %v3499, %v3505
        %v3517 = vadd.f32 %v3500, %v3507
        %v3518 = vadd.f32 %v3501, %v3509
        %v3519 = vadd.f32 %v3502, %v3511
        %v3520 = vld [vmem:[%s6] sm:$0x1]
        %v3522 = vlaneseq
        %v3523 = vshrl.u32 %v3522, 7
        %v3524 = vsub.s32 0, %v3523
        %v3525 = vrot.slane %v3520, %v3524
        %v3527 = vadd.f32 %v3516, %v3525
        %v3528 = vadd.f32 %v3517, %v3525
        %v3529 = vadd.f32 %v3518, %v3525
        %v3530 = vadd.f32 %v3519, %v3525
        %v3531 = vmax.f32 %v3527, %v3528
        %v3532 = vmax.f32 %v3529, %v3530
        %v3534 = vrot.slane %v3531, 1
        %v3536 = vmax.f32 %v3531, %v3534
        %v3537 = vmax.f32 %v3536, 0.0
        %v3539 = vrot.slane %v3532, 1
        %v3541 = vmax.f32 %v3532, %v3539
        %v3542 = vmax.f32 %v3541, 0.0
        %v3544 = vrot.slane %v3537, 2
        %3545 = vrot.lane.b32.xlu0 %v3544, 8
        %v3546 = vpop.permute.xlu0 %3545
        %3549 = vrot.lane.b32.xlu0 %v3542, 16
        %v3550 = vpop.permute.xlu0 %3549
        %v3552 = vrot.slane %v3542, 2
        %3553 = vrot.lane.b32.xlu0 %v3552, 24
        %v3554 = vpop.permute.xlu0 %3553
        %vm3556 = vcmask 64512
        %v3557 = vsel %vm3556, %v3537, %v3546
        %v3558 = vsel %vm1645, %v3557, %v3550
        %v3559 = vsel %vm1326, %v3558, %v3554
        %v3560 = vld [vmem:[%s7] sm:$0xff]
        %v3561 = vld [vmem:[%s7 + $0x8] sm:$0xff]
        %v3562 = vld [vmem:[%s7 + $0x10] sm:$0xff]
        %v3563 = vld [vmem:[%s7 + $0x18] sm:$0xff]
        %v3564 = vld [vmem:[%s8] sm:$0x1]
        %vm3565 = vcmask 261120
        %v3567 = vsel %vm3565, %v3559, 0
        %3569 = vmatprep.subr.mxu0 0.0
        %3570 = vmatpush1.msra.mxu0 %v3560
        %3571 = vmatprep.subr.mxu0 0.0
        %3572 = vmatpush1.msra.mxu0 %v3561
        %3573 = vmatprep.subr.mxu0 0.0
        %3574 = vmatpush1.msra.mxu0 %v3562
        %3575 = vmatprep.subr.mxu0 0.0
        %3576 = vmatpush1.msra.mxu0 %v3563
        %3577 = vmatprep.subr.mxu0 0.0
        %3578 = vmatpush1.msra.mxu0 0.0
        %3579 = vmatprep.subr.mxu0 0.0
        %3580 = vmatpush1.msra.mxu0 0.0
        %3581 = vmatprep.subr.mxu0 0.0
        %3582 = vmatpush1.msra.mxu0 0.0
        %3583 = vmatprep.subr.mxu0 0.0
        %3584 = vmatpush1.msra.mxu0 0.0
        %3585 = vmatprep.subr.mxu0 0.0
        %3586 = vmatpush1.msra.mxu0 0.0
        %3587 = vmatprep.subr.mxu0 0.0
        %3588 = vmatpush1.msra.mxu0 0.0
        %3589 = vmatprep.subr.mxu0 0.0
        %3590 = vmatpush1.msra.mxu0 0.0
        %3591 = vmatprep.subr.mxu0 0.0
        %3592 = vmatpush1.msra.mxu0 0.0
        %3593 = vmatprep.subr.mxu0 0.0
        %3594 = vmatpush1.msra.mxu0 0.0
        %3595 = vmatprep.subr.mxu0 0.0
        %3596 = vmatpush1.msra.mxu0 0.0
        %3597 = vmatprep.subr.mxu0 0.0
        %3598 = vmatpush1.msra.mxu0 0.0
        %3599 = vmatprep.subr.mxu0 0.0
        %3600 = vmatpush1.msra.mxu0 0.0
        %3601 = vmatprep.subr.mxu0 0.0
        %3602 = vmatpush1.msra.mxu0 0.0
        %3603 = vmatprep.subr.mxu0 0.0
        %3604 = vmatpush1.msra.mxu0 0.0
        %3605 = vmatprep.subr.mxu0 0.0
        %3606 = vmatpush1.msra.mxu0 0.0
        %3607 = vmatprep.subr.mxu0 0.0
        %3608 = vmatpush1.msra.mxu0 0.0
        %3609 = vmatprep.subr.mxu0 0.0
        %3610 = vmatpush1.msra.mxu0 0.0
        %3611 = vmatprep.subr.mxu0 0.0
        %3612 = vmatpush1.msra.mxu0 0.0
        %3613 = vmatprep.subr.mxu0 0.0
        %3614 = vmatpush1.msra.mxu0 0.0
        %3615 = vmatprep.subr.mxu0 0.0
        %3616 = vmatpush1.msra.mxu0 0.0
        %3617 = vmatprep.subr.mxu0 0.0
        %3618 = vmatpush1.msra.mxu0 0.0
        %3619 = vmatprep.subr.mxu0 0.0
        %3620 = vmatpush1.msra.mxu0 0.0
        %3621 = vmatprep.subr.mxu0 0.0
        %3622 = vmatpush1.msra.mxu0 0.0
        %3623 = vmatprep.subr.mxu0 0.0
        %3624 = vmatpush1.msra.mxu0 0.0
        %3625 = vmatprep.subr.mxu0 0.0
        %3626 = vmatpush1.msra.mxu0 0.0
        %3627 = vmatprep.subr.mxu0 0.0
        %3628 = vmatpush1.msra.mxu0 0.0
        %3629 = vmatprep.subr.mxu0 0.0
        %3630 = vmatpush1.msra.mxu0 0.0
        %3631 = vmatprep.subr.mxu0 0.0
        %3632 = vmatpush1.msra.mxu0 0.0
        %3633 = vmatprep.mubr.f32.mxu0 0.0
        %3634 = vmatmul.mubr.f32.gmra.mrb[0].mxu0 %v3567
        %v3635 = vpop.f32.mrb[0].mxu0
        %v3636 = vadd.f32 %v3564, %v3635
        %v3637 = vpop.f32.mrb[0].mxu0
        %3638 = vdwg.mxu0
        %v3639 = vmax.f32 %v3636, 0.0
        %v3640 = vld [vmem:[%s9] sm:$0xff]
        %v3641 = vld [vmem:[%s9 + $0x8] sm:$0xff]
        %v3642 = vld [vmem:[%s9 + $0x10] sm:$0xff]
        %v3643 = vld [vmem:[%s9 + $0x18] sm:$0xff]
        %v3644 = vld [vmem:[%s9 + $0x20] sm:$0xff]
        %v3645 = vld [vmem:[%s9 + $0x28] sm:$0xff]
        %v3646 = vld [vmem:[%s9 + $0x30] sm:$0xff]
        %v3647 = vld [vmem:[%s9 + $0x38] sm:$0xff]
        %v3648 = vld [vmem:[%s10] sm:$0x1]
        %vm3649 = vcmask 523264
        %v3651 = vsel %vm3649, %v3639, 0
        %3653 = vmatprep.subr.mxu0 0.0
        %3654 = vmatpush1.msra.mxu0 %v3640
        %3655 = vmatprep.subr.mxu0 0.0
        %3656 = vmatpush1.msra.mxu0 %v3641
        %3657 = vmatprep.subr.mxu0 0.0
        %3658 = vmatpush1.msra.mxu0 %v3642
        %3659 = vmatprep.subr.mxu0 0.0
        %3660 = vmatpush1.msra.mxu0 %v3643
        %3661 = vmatprep.subr.mxu0 0.0
        %3662 = vmatpush1.msra.mxu0 %v3644
        %3663 = vmatprep.subr.mxu0 0.0
        %3664 = vmatpush1.msra.mxu0 %v3645
        %3665 = vmatprep.subr.mxu0 0.0
        %3666 = vmatpush1.msra.mxu0 %v3646
        %3667 = vmatprep.subr.mxu0 0.0
        %3668 = vmatpush1.msra.mxu0 %v3647
        %3669 = vmatprep.subr.mxu0 0.0
        %3670 = vmatpush1.msra.mxu0 0.0
        %3671 = vmatprep.subr.mxu0 0.0
        %3672 = vmatpush1.msra.mxu0 0.0
        %3673 = vmatprep.subr.mxu0 0.0
        %3674 = vmatpush1.msra.mxu0 0.0
        %3675 = vmatprep.subr.mxu0 0.0
        %3676 = vmatpush1.msra.mxu0 0.0
        %3677 = vmatprep.subr.mxu0 0.0
        %3678 = vmatpush1.msra.mxu0 0.0
        %3679 = vmatprep.subr.mxu0 0.0
        %3680 = vmatpush1.msra.mxu0 0.0
        %3681 = vmatprep.subr.mxu0 0.0
        %3682 = vmatpush1.msra.mxu0 0.0
        %3683 = vmatprep.subr.mxu0 0.0
        %3684 = vmatpush1.msra.mxu0 0.0
        %3685 = vmatprep.subr.mxu0 0.0
        %3686 = vmatpush1.msra.mxu0 0.0
        %3687 = vmatprep.subr.mxu0 0.0
        %3688 = vmatpush1.msra.mxu0 0.0
        %3689 = vmatprep.subr.mxu0 0.0
        %3690 = vmatpush1.msra.mxu0 0.0
        %3691 = vmatprep.subr.mxu0 0.0
        %3692 = vmatpush1.msra.mxu0 0.0
        %3693 = vmatprep.subr.mxu0 0.0
        %3694 = vmatpush1.msra.mxu0 0.0
        %3695 = vmatprep.subr.mxu0 0.0
        %3696 = vmatpush1.msra.mxu0 0.0
        %3697 = vmatprep.subr.mxu0 0.0
        %3698 = vmatpush1.msra.mxu0 0.0
        %3699 = vmatprep.subr.mxu0 0.0
        %3700 = vmatpush1.msra.mxu0 0.0
        %3701 = vmatprep.subr.mxu0 0.0
        %3702 = vmatpush1.msra.mxu0 0.0
        %3703 = vmatprep.subr.mxu0 0.0
        %3704 = vmatpush1.msra.mxu0 0.0
        %3705 = vmatprep.subr.mxu0 0.0
        %3706 = vmatpush1.msra.mxu0 0.0
        %3707 = vmatprep.subr.mxu0 0.0
        %3708 = vmatpush1.msra.mxu0 0.0
        %3709 = vmatprep.subr.mxu0 0.0
        %3710 = vmatpush1.msra.mxu0 0.0
        %3711 = vmatprep.subr.mxu0 0.0
        %3712 = vmatpush1.msra.mxu0 0.0
        %3713 = vmatprep.subr.mxu0 0.0
        %3714 = vmatpush1.msra.mxu0 0.0
        %3715 = vmatprep.subr.mxu0 0.0
        %3716 = vmatpush1.msra.mxu0 0.0
        %3717 = vmatprep.mubr.f32.mxu0 0.0
        %3718 = vmatmul.mubr.f32.gmra.mrb[0].mxu0 %v3651
        %v3719 = vpop.f32.mrb[0].mxu0
        %v3720 = vadd.f32 %v3648, %v3719
        %v3721 = vpop.f32.mrb[0].mxu0
        %3722 = vdwg.mxu0
        %v3723 = vmax.f32 %v3720, 0.0
        %v3724 = vld [vmem:[%s11] sm:$0xff]
        %v3725 = vld [vmem:[%s11 + $0x8] sm:$0xff]
        %v3726 = vld [vmem:[%s11 + $0x10] sm:$0xff]
        %v3727 = vld [vmem:[%s11 + $0x18] sm:$0xff]
        %v3728 = vld [vmem:[%s11 + $0x20] sm:$0xff]
        %v3729 = vld [vmem:[%s11 + $0x28] sm:$0xff]
        %v3730 = vld [vmem:[%s11 + $0x30] sm:$0xff]
        %v3731 = vld [vmem:[%s11 + $0x38] sm:$0xff]
        %v3732 = vld [vmem:[%s11 + $0x40] sm:$0xff]
        %v3733 = vld [vmem:[%s11 + $0x48] sm:$0xff]
        %v3734 = vld [vmem:[%s11 + $0x50] sm:$0xff]
        %v3735 = vld [vmem:[%s11 + $0x58] sm:$0xff]
        %v3736 = vld [vmem:[%s11 + $0x60] sm:$0xff]
        %v3737 = vld [vmem:[%s11 + $0x68] sm:$0xff]
        %v3738 = vld [vmem:[%s11 + $0x70] sm:$0xff]
        %v3739 = vld [vmem:[%s11 + $0x78] sm:$0xff]
        %v3740 = vld [vmem:[%s12] sm:$0x1]
        %3741 = vmatprep.subr.mxu0 0.0
        %3742 = vmatpush1.msra.mxu0 %v3724
        %3743 = vmatprep.subr.mxu0 0.0
        %3744 = vmatpush1.msra.mxu0 %v3725
        %3745 = vmatprep.subr.mxu0 0.0
        %3746 = vmatpush1.msra.mxu0 %v3726
        %3747 = vmatprep.subr.mxu0 0.0
        %3748 = vmatpush1.msra.mxu0 %v3727
        %3749 = vmatprep.subr.mxu0 0.0
        %3750 = vmatpush1.msra.mxu0 %v3728
        %3751 = vmatprep.subr.mxu0 0.0
        %3752 = vmatpush1.msra.mxu0 %v3729
        %3753 = vmatprep.subr.mxu0 0.0
        %3754 = vmatpush1.msra.mxu0 %v3730
        %3755 = vmatprep.subr.mxu0 0.0
        %3756 = vmatpush1.msra.mxu0 %v3731
        %3757 = vmatprep.subr.mxu0 0.0
        %3758 = vmatpush1.msra.mxu0 %v3732
        %3759 = vmatprep.subr.mxu0 0.0
        %3760 = vmatpush1.msra.mxu0 %v3733
        %3761 = vmatprep.subr.mxu0 0.0
        %3762 = vmatpush1.msra.mxu0 %v3734
        %3763 = vmatprep.subr.mxu0 0.0
        %3764 = vmatpush1.msra.mxu0 %v3735
        %3765 = vmatprep.subr.mxu0 0.0
        %3766 = vmatpush1.msra.mxu0 %v3736
        %3767 = vmatprep.subr.mxu0 0.0
        %3768 = vmatpush1.msra.mxu0 %v3737
        %3769 = vmatprep.subr.mxu0 0.0
        %3770 = vmatpush1.msra.mxu0 %v3738
        %3771 = vmatprep.subr.mxu0 0.0
        %3772 = vmatpush1.msra.mxu0 %v3739
        %3773 = vmatprep.subr.mxu0 0.0
        %3774 = vmatpush1.msra.mxu0 0.0
        %3775 = vmatprep.subr.mxu0 0.0
        %3776 = vmatpush1.msra.mxu0 0.0
        %3777 = vmatprep.subr.mxu0 0.0
        %3778 = vmatpush1.msra.mxu0 0.0
        %3779 = vmatprep.subr.mxu0 0.0
        %3780 = vmatpush1.msra.mxu0 0.0
        %3781 = vmatprep.subr.mxu0 0.0
        %3782 = vmatpush1.msra.mxu0 0.0
        %3783 = vmatprep.subr.mxu0 0.0
        %3784 = vmatpush1.msra.mxu0 0.0
        %3785 = vmatprep.subr.mxu0 0.0
        %3786 = vmatpush1.msra.mxu0 0.0
        %3787 = vmatprep.subr.mxu0 0.0
        %3788 = vmatpush1.msra.mxu0 0.0
        %3789 = vmatprep.subr.mxu0 0.0
        %3790 = vmatpush1.msra.mxu0 0.0
        %3791 = vmatprep.subr.mxu0 0.0
        %3792 = vmatpush1.msra.mxu0 0.0
        %3793 = vmatprep.subr.mxu0 0.0
        %3794 = vmatpush1.msra.mxu0 0.0
        %3795 = vmatprep.subr.mxu0 0.0
        %3796 = vmatpush1.msra.mxu0 0.0
        %3797 = vmatprep.subr.mxu0 0.0
        %3798 = vmatpush1.msra.mxu0 0.0
        %3799 = vmatprep.subr.mxu0 0.0
        %3800 = vmatpush1.msra.mxu0 0.0
        %3801 = vmatprep.subr.mxu0 0.0
        %3802 = vmatpush1.msra.mxu0 0.0
        %3803 = vmatprep.subr.mxu0 0.0
        %3804 = vmatpush1.msra.mxu0 0.0
        %3805 = vmatprep.mubr.f32.mxu0 0.0
        %3806 = vmatmul.mubr.f32.gmra.mrb[0].mxu0 %v3723
        %v3807 = vpop.f32.mrb[0].mxu0
        %v3808 = vadd.f32 %v3740, %v3807
        %v3809 = vpop.f32.mrb[0].mxu0
        %3810 = vdwg.mxu0
        %vm3811 = vcmask 73728
        %3812 = vst.msk [vmem:[%s432] sm:$0x1] %vm3811, %v3808
        %s3813 = sand.u32 %s313, 1
        %s3814 = scalar_lea.sflag [#allocation4], %s3813
        %s3815 = sand.u32 %s313, 1
        %s3816 = scalar_lea.vmem [#allocation3], %s3815
        // Predicated region
        $region73: #{forward.1} parent=71 // pred_check
          %p3817 = pneg %p323
        $region74: #{forward.1} parent=71 // pred_check_branch
          %3819 = sbr.rel (%p3817) target = $region76
        $region75: #{forward.1} parent=71 // pred_region
          %s3821 = ssub.s32 16, 16
          %3822 = vsyncadd %s3814, %s3821
          %s3823 = smul.addr %s27, 16
          %s3824 = scalar_lea.hbm %s13, %s3823
          %s3826 = sshll.u32 %s3816, 4
          %s3827 = int_to_ptr.vmem [resolvable:$true] %s3826
          %3829 = dma.vmem_to_hbm [thread:$0]  %s3827, 16, %s3824, %s3814
        $region76: #{forward.1} parent=71 // pred_fallthru
          _
      $region72: #{forward.1} parent=5 // pred_fallthru
        _
      %p3830 = scmp.le.s32.totalorder 2, %s22
      // Predicated region
      $region77: #{forward.1} parent=5 // pred_check
        %p3831 = pneg %p3830
      $region78: #{forward.1} parent=5 // pred_check_branch
        %3833 = sbr.rel (%p3831) target = $region80
      $region79: #{forward.1} parent=5 // pred_region
        %s3834 = ssub.s32 %s22, 2
        // Predicated region
        $region81: #{forward.1} parent=79 // pred_check
          %p3835 = pneg %p329
        $region82: #{forward.1} parent=79 // pred_check_branch
          %3837 = sbr.rel (%p3835) target = $region84
        $region83: #{forward.1} parent=79 // pred_region
          %s3838 = sand.u32 %s314, 1
          %s3839 = scalar_lea.sflag [#allocation4], %s3838
          %s3840 = sand.u32 %s314, 1
          %s3841 = scalar_lea.vmem [#allocation3], %s3840
          %3842 = dma.done %s3839, 16
        $region84: #{forward.1} parent=79 // pred_fallthru
          _
      $region80: #{forward.1} parent=5 // pred_fallthru
        _
    $region6: #{forward.1} parent=1 // loop_footer
      %s26 = sadd.s32 1, %s22
    $region7: #{forward.1} parent=1 // loop_footer_branch
      %21 = sbr.rel target = $region3
    $region8: #{forward.1} parent=1 // loop_exit
      _
    %3843 = vsyncpa [#allocation4], 1
    %s3844 = scalar_lea.sflag [#allocation4], 1
    %3845 = vsyncpa %s3844, 1

</llo_original>
